<compile_context>
chip_gen: v7x
topology: tpu7x:2x2x1
jax: 0.10.0
libtpu: 0.0.40
codegen_flags: <defaults>
</compile_context>

<pallas_src>
import jax
import jax.numpy as jnp
from jax.experimental import pallas as pl
from jax.experimental.pallas import tpu as pltpu

IN_DIM = 28 * 28      # 784
HID = 400
LATENT = 2

# lane-aligned (multiple-of-128) padded sizes
IN_PAD = 896          # 784 -> 896
HID_PAD = 512         # 400 -> 512
LAT_PAD = 128         # packed latent lane width: [mu(2) | logvar(2) | z(2) | zeros]

TB_MAX = 256          # max batch-tile rows per grid step


def _round_up(n, m):
    return ((n + m - 1) // m) * m


def vae_fwd_kernel(x_ref, eps_ref,
                   w1_ref, b1_ref,
                   wenc_ref, benc_ref,
                   w3_ref, b3_ref,
                   w4_ref, b4_ref,
                   y_ref, lat_ref):
    # ---- encode: fc1 + relu (MXU bf16 operands, f32 accumulate) ----
    x = x_ref[...]                                               # (TB, IN_PAD) f32
    h1 = jnp.dot(x.astype(jnp.bfloat16), w1_ref[...],
                 preferred_element_type=jnp.float32) + b1_ref[...]
    h1 = jnp.maximum(h1, 0.0)                                    # (TB, HID_PAD)

    # ---- fused encoder heads: lanes 0:2 = mu, 2:4 = logvar, rest 0 ----
    henc = jnp.dot(h1.astype(jnp.bfloat16), wenc_ref[...],
                   preferred_element_type=jnp.float32) + benc_ref[...]
    mu = henc[:, 0:LATENT]                                       # (TB, 2)
    logvar = henc[:, LATENT:2 * LATENT]                          # (TB, 2)

    # ---- reparameterize (f32, VPU/EUP) ----
    std = jnp.exp(0.5 * logvar)
    z = mu + eps_ref[...] * std                                  # (TB, 2)

    # ---- decode: fc3 as a VPU outer product (K=2 would waste the MXU) ----
    h3 = (z[:, 0:1] * w3_ref[0:1, :]
          + z[:, 1:2] * w3_ref[1:2, :]
          + b3_ref[...])
    h3 = jnp.maximum(h3, 0.0)                                    # (TB, HID_PAD)

    # ---- decode: fc4 + sigmoid ----
    logits = jnp.dot(h3.astype(jnp.bfloat16), w4_ref[...],
                     preferred_element_type=jnp.float32) + b4_ref[...]
    y_ref[...] = jax.nn.sigmoid(logits)                          # (TB, IN_PAD)

    # ---- packed lane-dense latent output: [mu | logvar | z | zeros] ----
    lat_ref[...] = henc
    lat_ref[:, 2 * LATENT:3 * LATENT] = z


def init_params(key):
    """nn.Linear-style init (uniform +-1/sqrt(fan_in)); weights stored transposed
    as (in_features, out_features), all f32 (the PyTorch-equivalent parameters)."""
    def linear(k, fan_in, fan_out):
        kw, kb = jax.random.split(k)
        bound = 1.0 / jnp.sqrt(fan_in)
        w = jax.random.uniform(kw, (fan_in, fan_out), jnp.float32, -bound, bound)
        b = jax.random.uniform(kb, (fan_out,), jnp.float32, -bound, bound)
        return w, b

    k1, k21, k22, k3, k4 = jax.random.split(key, 5)
    p = {}
    p["w1"],  p["b1"]  = linear(k1,  IN_DIM, HID)
    p["w21"], p["b21"] = linear(k21, HID, LATENT)
    p["w22"], p["b22"] = linear(k22, HID, LATENT)
    p["w3"],  p["b3"]  = linear(k3,  LATENT, HID)
    p["w4"],  p["b4"]  = linear(k4,  HID, IN_DIM)
    return p


def pack_params(p):
    """Zero-pad to lane multiples, fuse fc21|fc22, cast MXU weights to bf16."""
    def pad2(a, rows, cols):
        return jnp.pad(a, ((0, rows - a.shape[0]), (0, cols - a.shape[1])))

    w1 = pad2(p["w1"], IN_PAD, HID_PAD).astype(jnp.bfloat16)
    b1 = pad2(p["b1"][None, :], 1, HID_PAD)

    wenc = jnp.zeros((HID_PAD, LAT_PAD), jnp.float32)
    wenc = wenc.at[:HID, 0:LATENT].set(p["w21"])
    wenc = wenc.at[:HID, LATENT:2 * LATENT].set(p["w22"])
    wenc = wenc.astype(jnp.bfloat16)
    benc = jnp.zeros((1, LAT_PAD), jnp.float32)
    benc = benc.at[0, 0:LATENT].set(p["b21"])
    benc = benc.at[0, LATENT:2 * LATENT].set(p["b22"])

    w3 = pad2(p["w3"], LATENT, HID_PAD)            # stays f32: used on the VPU
    b3 = pad2(p["b3"][None, :], 1, HID_PAD)

    w4 = pad2(p["w4"], HID_PAD, IN_PAD).astype(jnp.bfloat16)
    b4 = pad2(p["b4"][None, :], 1, IN_PAD)

    return dict(w1=w1, b1=b1, wenc=wenc, benc=benc, w3=w3, b3=b3, w4=w4, b4=b4)


@jax.jit
def vae_forward(x_nchw, eps, kp):
    B = x_nchw.shape[0]
    TB = min(TB_MAX, _round_up(B, 8))
    B_pad = _round_up(B, TB)

    x = x_nchw.reshape(B, IN_DIM).astype(jnp.float32)            # x.view(-1, 784)
    x = jnp.pad(x, ((0, B_pad - B), (0, IN_PAD - IN_DIM)))
    eps_p = jnp.pad(eps.astype(jnp.float32), ((0, B_pad - B), (0, 0)))

    grid = (B_pad // TB,)

    def batch_spec(cols):
        return pl.BlockSpec((TB, cols), lambda i: (i, 0))

    def const_spec(shape):
        return pl.BlockSpec(shape, lambda i: (0, 0))

    in_specs = [
        batch_spec(IN_PAD),                  # x
        batch_spec(LATENT),                  # eps
        const_spec((IN_PAD, HID_PAD)),       # w1  (bf16, VMEM-resident)
        const_spec((1, HID_PAD)),            # b1
        const_spec((HID_PAD, LAT_PAD)),      # wenc (fused fc21|fc22, bf16)
        const_spec((1, LAT_PAD)),            # benc
        const_spec((LATENT, HID_PAD)),       # w3  (f32, VPU outer product)
        const_spec((1, HID_PAD)),            # b3
        const_spec((HID_PAD, IN_PAD)),       # w4  (bf16)
        const_spec((1, IN_PAD)),             # b4
    ]
    out_specs = (batch_spec(IN_PAD), batch_spec(LAT_PAD))
    out_shape = (jax.ShapeDtypeStruct((B_pad, IN_PAD), jnp.float32),   # y (padded)
                 jax.ShapeDtypeStruct((B_pad, LAT_PAD), jnp.float32))  # [mu|logvar|z]

    # advisory cost estimate so XLA schedules neighbouring ops sensibly
    flops = 2 * B_pad * (IN_PAD * HID_PAD + HID_PAD * LAT_PAD
                         + 2 * HID_PAD + HID_PAD * IN_PAD)
    transcendentals = B_pad * (LATENT + IN_PAD)       # exp(0.5*logvar) + sigmoid
    bytes_accessed = (
        x.size * 4 + eps_p.size * 4
        + (kp["w1"].size + kp["wenc"].size + kp["w4"].size) * 2
        + kp["w3"].size * 4
        + (kp["b1"].size + kp["benc"].size + kp["b3"].size + kp["b4"].size) * 4
        + B_pad * (IN_PAD + LAT_PAD) * 4)

    y_pad, lat = pl.pallas_call(
        vae_fwd_kernel,
        out_shape=out_shape,
        grid=grid,
        in_specs=in_specs,
        out_specs=out_specs,
        compiler_params=pltpu.CompilerParams(
            dimension_semantics=("parallel",),
            vmem_limit_bytes=32 << 20),
        cost_estimate=pl.CostEstimate(flops=flops,
                                      transcendentals=transcendentals,
                                      bytes_accessed=bytes_accessed),
    )(x, eps_p,
      kp["w1"], kp["b1"], kp["wenc"], kp["benc"],
      kp["w3"], kp["b3"], kp["w4"], kp["b4"])

    y = y_pad[:B, :IN_DIM].reshape(B, 1, 28, 28)                 # y.view(-1,1,28,28)
    mu = lat[:B, 0:LATENT]
    logvar = lat[:B, LATENT:2 * LATENT]
    z = lat[:B, 2 * LATENT:3 * LATENT]
    return y, mu, logvar, z


def vae_reference(x_nchw, eps, p):
    """Pure-JAX f32 reference of the PyTorch forward (sanity check)."""
    B = x_nchw.shape[0]
    x = x_nchw.reshape(B, IN_DIM).astype(jnp.float32)
    h1 = jnp.maximum(x @ p["w1"] + p["b1"], 0.0)
    mu = h1 @ p["w21"] + p["b21"]
    logvar = h1 @ p["w22"] + p["b22"]
    z = mu + eps * jnp.exp(0.5 * logvar)
    h3 = jnp.maximum(z @ p["w3"] + p["b3"], 0.0)
    y = jax.nn.sigmoid(h3 @ p["w4"] + p["b4"])
    return y.reshape(B, 1, 28, 28), mu, logvar, z


if __name__ == "__main__":
    key = jax.random.PRNGKey(0)
    k_param, k_x, k_eps = jax.random.split(key, 3)

    params = init_params(k_param)
    packed = pack_params(params)

    B = 8
    x = jax.random.normal(k_x, (B, 1, 28, 28), jnp.float32)      # NCHW input
    # reparameterization noise (torch.randn_like) supplied explicitly
    eps = jax.random.normal(k_eps, (B, LATENT), jnp.float32)

    y, mu, logvar, z = vae_forward(x, eps, packed)
    jax.block_until_ready((y, mu, logvar, z))

    assert y.shape == (B, 1, 28, 28)
    assert mu.shape == (B, LATENT) and logvar.shape == (B, LATENT) and z.shape == (B, LATENT)

    # loose sanity check vs f32 reference (kernel uses bf16 MXU operands)
    y_r, mu_r, lv_r, z_r = vae_reference(x, eps, params)
    assert float(jnp.max(jnp.abs(y - y_r))) < 0.08
    assert float(jnp.max(jnp.abs(mu - mu_r))) < 0.08
    assert float(jnp.max(jnp.abs(logvar - lv_r))) < 0.08
    assert float(jnp.max(jnp.abs(z - z_r))) < 0.15

    print("KERNEL_OK")
</pallas_src>

<mosaic_0001>
module attributes {stable_mosaic.version = 11 : i64} {
  func.func @vae_fwd_kernel(%arg0: i32, %arg1: memref<8x896xf32, #tpu.memory_space<vmem>>, %arg2: memref<8x2xf32, #tpu.memory_space<vmem>>, %arg3: memref<896x512xbf16, #tpu.memory_space<vmem>>, %arg4: memref<1x512xf32, #tpu.memory_space<vmem>>, %arg5: memref<512x128xbf16, #tpu.memory_space<vmem>>, %arg6: memref<1x128xf32, #tpu.memory_space<vmem>>, %arg7: memref<2x512xf32, #tpu.memory_space<vmem>>, %arg8: memref<1x512xf32, #tpu.memory_space<vmem>>, %arg9: memref<512x896xbf16, #tpu.memory_space<vmem>>, %arg10: memref<1x896xf32, #tpu.memory_space<vmem>>, %arg11: memref<8x896xf32, #tpu.memory_space<vmem>>, %arg12: memref<8x128xf32, #tpu.memory_space<vmem>>) attributes {dimension_semantics = [#tpu.dimension_semantics<parallel>], iteration_bounds = array<i64: 1>, scalar_prefetch = 0 : i64, scratch_operands = 0 : i64, tpu.core_type = #tpu.core_type<tc>, window_params = [{transform_indices = @transform_0, window_bounds = array<i64: 8, 896>}, {transform_indices = @transform_1, window_bounds = array<i64: 8, 2>}, {pipeline_mode = #tpu.pipeline_mode<synchronous>, transform_indices = @transform_2, window_bounds = array<i64: 896, 512>}, {pipeline_mode = #tpu.pipeline_mode<synchronous>, transform_indices = @transform_3, window_bounds = array<i64: 1, 512>}, {pipeline_mode = #tpu.pipeline_mode<synchronous>, transform_indices = @transform_4, window_bounds = array<i64: 512, 128>}, {pipeline_mode = #tpu.pipeline_mode<synchronous>, transform_indices = @transform_5, window_bounds = array<i64: 1, 128>}, {pipeline_mode = #tpu.pipeline_mode<synchronous>, transform_indices = @transform_6, window_bounds = array<i64: 2, 512>}, {pipeline_mode = #tpu.pipeline_mode<synchronous>, transform_indices = @transform_7, window_bounds = array<i64: 1, 512>}, {pipeline_mode = #tpu.pipeline_mode<synchronous>, transform_indices = @transform_8, window_bounds = array<i64: 512, 896>}, {pipeline_mode = #tpu.pipeline_mode<synchronous>, transform_indices = @transform_9, window_bounds = array<i64: 1, 896>}, {transform_indices = @transform_10, window_bounds = array<i64: 8, 896>}, {transform_indices = @transform_11, window_bounds = array<i64: 8, 128>}]} {
    %c0 = arith.constant 0 : index
    %c0_0 = arith.constant 0 : index
    %0 = vector.load %arg1[%c0, %c0_0] : memref<8x896xf32, #tpu.memory_space<vmem>>, vector<8x896xf32>
    %1 = arith.truncf %0 : vector<8x896xf32> to vector<8x896xbf16>
    %c0_1 = arith.constant 0 : index
    %c0_2 = arith.constant 0 : index
    %2 = vector.load %arg3[%c0_1, %c0_2] : memref<896x512xbf16, #tpu.memory_space<vmem>>, vector<896x512xbf16>
    %cst = arith.constant dense<0.000000e+00> : vector<8x512xf32>
    %3 = tpu.matmul %1, %2, %cst {dimension_numbers = #tpu.dot_dimension_numbers<[1], [0], [0], [1], [0, 0, 1, 1], [], []>} : vector<8x896xbf16>, vector<896x512xbf16>, vector<8x512xf32> -> vector<8x512xf32>
    %c0_3 = arith.constant 0 : index
    %c0_4 = arith.constant 0 : index
    %4 = vector.load %arg4[%c0_3, %c0_4] : memref<1x512xf32, #tpu.memory_space<vmem>>, vector<1x512xf32>
    %5 = vector.broadcast %4 : vector<1x512xf32> to vector<8x512xf32>
    %6 = arith.addf %3, %5 : vector<8x512xf32>
    %cst_5 = arith.constant 0.000000e+00 : f32
    %7 = vector.broadcast %cst_5 : f32 to vector<8x512xf32>
    %8 = arith.maximumf %6, %7 : vector<8x512xf32>
    %9 = arith.truncf %8 : vector<8x512xf32> to vector<8x512xbf16>
    %c0_6 = arith.constant 0 : index
    %c0_7 = arith.constant 0 : index
    %10 = vector.load %arg5[%c0_6, %c0_7] : memref<512x128xbf16, #tpu.memory_space<vmem>>, vector<512x128xbf16>
    %cst_8 = arith.constant dense<0.000000e+00> : vector<8x128xf32>
    %11 = tpu.matmul %9, %10, %cst_8 {dimension_numbers = #tpu.dot_dimension_numbers<[1], [0], [0], [1], [0, 0, 1, 1], [], []>} : vector<8x512xbf16>, vector<512x128xbf16>, vector<8x128xf32> -> vector<8x128xf32>
    %c0_9 = arith.constant 0 : index
    %c0_10 = arith.constant 0 : index
    %12 = vector.load %arg6[%c0_9, %c0_10] : memref<1x128xf32, #tpu.memory_space<vmem>>, vector<1x128xf32>
    %13 = vector.broadcast %12 : vector<1x128xf32> to vector<8x128xf32>
    %14 = arith.addf %11, %13 : vector<8x128xf32>
    %15 = vector.extract_strided_slice %14 {offsets = [0, 0], sizes = [8, 2], strides = [1, 1]} : vector<8x128xf32> to vector<8x2xf32>
    %16 = vector.extract_strided_slice %14 {offsets = [0, 2], sizes = [8, 2], strides = [1, 1]} : vector<8x128xf32> to vector<8x2xf32>
    %cst_11 = arith.constant 5.000000e-01 : f32
    %17 = vector.broadcast %cst_11 : f32 to vector<8x2xf32>
    %18 = arith.mulf %17, %16 : vector<8x2xf32>
    %19 = math.exp %18 : vector<8x2xf32>
    %c0_12 = arith.constant 0 : index
    %c0_13 = arith.constant 0 : index
    %20 = vector.load %arg2[%c0_12, %c0_13] : memref<8x2xf32, #tpu.memory_space<vmem>>, vector<8x2xf32>
    %21 = arith.mulf %20, %19 : vector<8x2xf32>
    %22 = arith.addf %15, %21 : vector<8x2xf32>
    %23 = vector.extract_strided_slice %22 {offsets = [0, 0], sizes = [8, 1], strides = [1, 1]} : vector<8x2xf32> to vector<8x1xf32>
    %c0_14 = arith.constant 0 : index
    %c0_15 = arith.constant 0 : index
    %24 = vector.load %arg7[%c0_14, %c0_15] : memref<2x512xf32, #tpu.memory_space<vmem>>, vector<1x512xf32>
    %25 = vector.broadcast %23 : vector<8x1xf32> to vector<8x512xf32>
    %26 = vector.broadcast %24 : vector<1x512xf32> to vector<8x512xf32>
    %27 = arith.mulf %25, %26 : vector<8x512xf32>
    %28 = vector.extract_strided_slice %22 {offsets = [0, 1], sizes = [8, 1], strides = [1, 1]} : vector<8x2xf32> to vector<8x1xf32>
    %c1 = arith.constant 1 : index
    %c0_16 = arith.constant 0 : index
    %29 = vector.load %arg7[%c1, %c0_16] : memref<2x512xf32, #tpu.memory_space<vmem>>, vector<1x512xf32>
    %30 = vector.broadcast %28 : vector<8x1xf32> to vector<8x512xf32>
    %31 = vector.broadcast %29 : vector<1x512xf32> to vector<8x512xf32>
    %32 = arith.mulf %30, %31 : vector<8x512xf32>
    %33 = arith.addf %27, %32 : vector<8x512xf32>
    %c0_17 = arith.constant 0 : index
    %c0_18 = arith.constant 0 : index
    %34 = vector.load %arg8[%c0_17, %c0_18] : memref<1x512xf32, #tpu.memory_space<vmem>>, vector<1x512xf32>
    %35 = vector.broadcast %34 : vector<1x512xf32> to vector<8x512xf32>
    %36 = arith.addf %33, %35 : vector<8x512xf32>
    %cst_19 = arith.constant 0.000000e+00 : f32
    %37 = vector.broadcast %cst_19 : f32 to vector<8x512xf32>
    %38 = arith.maximumf %36, %37 : vector<8x512xf32>
    %39 = arith.truncf %38 : vector<8x512xf32> to vector<8x512xbf16>
    %c0_20 = arith.constant 0 : index
    %c0_21 = arith.constant 0 : index
    %40 = vector.load %arg9[%c0_20, %c0_21] : memref<512x896xbf16, #tpu.memory_space<vmem>>, vector<512x896xbf16>
    %cst_22 = arith.constant dense<0.000000e+00> : vector<8x896xf32>
    %41 = tpu.matmul %39, %40, %cst_22 {dimension_numbers = #tpu.dot_dimension_numbers<[1], [0], [0], [1], [0, 0, 1, 1], [], []>} : vector<8x512xbf16>, vector<512x896xbf16>, vector<8x896xf32> -> vector<8x896xf32>
    %c0_23 = arith.constant 0 : index
    %c0_24 = arith.constant 0 : index
    %42 = vector.load %arg10[%c0_23, %c0_24] : memref<1x896xf32, #tpu.memory_space<vmem>>, vector<1x896xf32>
    %43 = vector.broadcast %42 : vector<1x896xf32> to vector<8x896xf32>
    %44 = arith.addf %41, %43 : vector<8x896xf32>
    %45 = arith.negf %44 : vector<8x896xf32>
    %46 = math.exp %45 : vector<8x896xf32>
    %cst_25 = arith.constant 1.000000e+00 : f32
    %47 = vector.broadcast %cst_25 : f32 to vector<8x896xf32>
    %48 = arith.addf %47, %46 : vector<8x896xf32>
    %49 = arith.divf %47, %48 : vector<8x896xf32>
    %c0_26 = arith.constant 0 : index
    %c0_27 = arith.constant 0 : index
    %50 = vector.load %arg11[%c0_26, %c0_27] : memref<8x896xf32, #tpu.memory_space<vmem>>, vector<8x896xf32>
    tpu.vector_store %arg11[%c0_26, %c0_27], %49 {strides = array<i32>} : memref<8x896xf32, #tpu.memory_space<vmem>>, vector<8x896xf32>,
    %c0_28 = arith.constant 0 : index
    %c0_29 = arith.constant 0 : index
    %51 = vector.load %arg12[%c0_28, %c0_29] : memref<8x128xf32, #tpu.memory_space<vmem>>, vector<8x128xf32>
    tpu.vector_store %arg12[%c0_28, %c0_29], %14 {strides = array<i32>} : memref<8x128xf32, #tpu.memory_space<vmem>>, vector<8x128xf32>,
    %c0_30 = arith.constant 0 : index
    %c4 = arith.constant 4 : index
    %52 = vector.load %arg12[%c0_30, %c4] : memref<8x128xf32, #tpu.memory_space<vmem>>, vector<8x2xf32>
    tpu.vector_store %arg12[%c0_30, %c4], %22 {strides = array<i32>} : memref<8x128xf32, #tpu.memory_space<vmem>>, vector<8x2xf32>,
    return
  }
  func.func @transform_0(%arg0: i32) -> (i32, i32) {
    %c0_i32 = arith.constant 0 : i32
    %c0_i32_0 = arith.constant 0 : i32
    return %arg0, %c0_i32 : i32, i32
  }
  func.func @transform_1(%arg0: i32) -> (i32, i32) {
    %c0_i32 = arith.constant 0 : i32
    %c0_i32_0 = arith.constant 0 : i32
    return %arg0, %c0_i32 : i32, i32
  }
  func.func @transform_2(%arg0: i32) -> (i32, i32) {
    %c0_i32 = arith.constant 0 : i32
    %c0_i32_0 = arith.constant 0 : i32
    %c0_i32_1 = arith.constant 0 : i32
    return %c0_i32, %c0_i32_0 : i32, i32
  }
  func.func @transform_3(%arg0: i32) -> (i32, i32) {
    %c0_i32 = arith.constant 0 : i32
    %c0_i32_0 = arith.constant 0 : i32
    %c0_i32_1 = arith.constant 0 : i32
    return %c0_i32, %c0_i32_0 : i32, i32
  }
  func.func @transform_4(%arg0: i32) -> (i32, i32) {
    %c0_i32 = arith.constant 0 : i32
    %c0_i32_0 = arith.constant 0 : i32
    %c0_i32_1 = arith.constant 0 : i32
    return %c0_i32, %c0_i32_0 : i32, i32
  }
  func.func @transform_5(%arg0: i32) -> (i32, i32) {
    %c0_i32 = arith.constant 0 : i32
    %c0_i32_0 = arith.constant 0 : i32
    %c0_i32_1 = arith.constant 0 : i32
    return %c0_i32, %c0_i32_0 : i32, i32
  }
  func.func @transform_6(%arg0: i32) -> (i32, i32) {
    %c0_i32 = arith.constant 0 : i32
    %c0_i32_0 = arith.constant 0 : i32
    %c0_i32_1 = arith.constant 0 : i32
    return %c0_i32, %c0_i32_0 : i32, i32
  }
  func.func @transform_7(%arg0: i32) -> (i32, i32) {
    %c0_i32 = arith.constant 0 : i32
    %c0_i32_0 = arith.constant 0 : i32
    %c0_i32_1 = arith.constant 0 : i32
    return %c0_i32, %c0_i32_0 : i32, i32
  }
  func.func @transform_8(%arg0: i32) -> (i32, i32) {
    %c0_i32 = arith.constant 0 : i32
    %c0_i32_0 = arith.constant 0 : i32
    %c0_i32_1 = arith.constant 0 : i32
    return %c0_i32, %c0_i32_0 : i32, i32
  }
  func.func @transform_9(%arg0: i32) -> (i32, i32) {
    %c0_i32 = arith.constant 0 : i32
    %c0_i32_0 = arith.constant 0 : i32
    %c0_i32_1 = arith.constant 0 : i32
    return %c0_i32, %c0_i32_0 : i32, i32
  }
  func.func @transform_10(%arg0: i32) -> (i32, i32) {
    %c0_i32 = arith.constant 0 : i32
    %c0_i32_0 = arith.constant 0 : i32
    return %arg0, %c0_i32 : i32, i32
  }
  func.func @transform_11(%arg0: i32) -> (i32, i32) {
    %c0_i32 = arith.constant 0 : i32
    %c0_i32_0 = arith.constant 0 : i32
    return %arg0, %c0_i32 : i32, i32
  }
}

</mosaic_0001>

<llo_original>
// kernel: vae_forward.1
$region0: #{vae_forward.1}
  #allocation0 [shape = 'u32[]', space=smem, size = 0x4, offset = 0x4, fixed_abs, tag = 'smem constant byte address 0x4 - core index']
  #allocation1 [shape = 'u32[144,128]{1,0:T(1,128)}', space=vmem, size = 0x12000, scoped, tag = 'internal scratch']
  %s0 = inlined_call_operand.vmem [shape: f32[8,896], index: 0, kind: input, shape index: {}]
  %s1 = inlined_call_operand.vmem [shape: f32[8,2], index: 1, kind: input, shape index: {}]
  %s2 = inlined_call_operand.hbm [shape: bf16[896,512], index: 2, kind: input, shape index: {}]
  %s3 = inlined_call_operand.vmem [shape: f32[1,512], index: 3, kind: input, shape index: {}]
  %s4 = inlined_call_operand.vmem [shape: bf16[512,128], index: 4, kind: input, shape index: {}]
  %s5 = inlined_call_operand.vmem [shape: f32[1,128], index: 5, kind: input, shape index: {}]
  %s6 = inlined_call_operand.vmem [shape: f32[2,512], index: 6, kind: input, shape index: {}]
  %s7 = inlined_call_operand.vmem [shape: f32[1,512], index: 7, kind: input, shape index: {}]
  %s8 = inlined_call_operand.hbm [shape: bf16[512,896], index: 8, kind: input, shape index: {}]
  %s9 = inlined_call_operand.vmem [shape: f32[1,896], index: 9, kind: input, shape index: {}]
  %s10 = inlined_call_operand.vmem [shape: f32[8,896], index: 10, kind: output, shape index: {0}]
  %s11 = inlined_call_operand.vmem [shape: f32[8,128], index: 11, kind: output, shape index: {1}]
  %12 = xla_tuple %s10, %s11
  %s13 = sld [smem:[#allocation0]]
  $region66: #{vae_forward.1} parent=0
    _
  %s15 = ssub.s32 1, %s13
  %s16 = scalar_select 0, %s15, %s13
  $region1: #{vae_forward.1} parent=0
    #allocation2 [shape = 'u8[917504]{0}', space=vmem, size = 0xe0000, scoped, tag = 'input window, operand 2, single buffered']
    #allocation3 [shape = 's32[1]{0}', space=sflag, size = 0x4, scoped, tag = 'scoped memory for vae_forward.1']
    #allocation4 [shape = 'u8[917504]{0}', space=vmem, size = 0xe0000, scoped, tag = 'input window, operand 8, single buffered']
    #allocation5 [shape = 's32[1]{0}', space=sflag, size = 0x4, scoped, tag = 'scoped memory for vae_forward.1']
    %17 = vsyncpa [#allocation3], 0
    %18 = vsyncpa [#allocation5], 0
    // Predicated region
    $region2: #{vae_forward.1} parent=1 // pred_check
      _
    $region3: #{vae_forward.1} parent=1 // pred_check_branch
      %20 = sbr.rel (0) target = $region5
    $region4: #{vae_forward.1} parent=1 // pred_region
      _
    $region5: #{vae_forward.1} parent=1 // pred_fallthru
      _
    // Predicated region
    $region6: #{vae_forward.1} parent=1 // pred_check
      _
    $region7: #{vae_forward.1} parent=1 // pred_check_branch
      %22 = sbr.rel (0) target = $region9
    $region8: #{vae_forward.1} parent=1 // pred_region
      _
    $region9: #{vae_forward.1} parent=1 // pred_fallthru
      _
    // Predicated region
    $region10: #{vae_forward.1} parent=1 // pred_check
      _
    $region11: #{vae_forward.1} parent=1 // pred_check_branch
      %24 = sbr.rel (0) target = $region13
    $region12: #{vae_forward.1} parent=1 // pred_region
      %s26 = ssub.s32 28672, 28672
      %27 = vsyncadd [#allocation3], %s26
      %s28 = sshll.u32 [#allocation2], 4
      %s29 = int_to_ptr.vmem [resolvable:$true] %s28
      %34 = dma.hbm_to_vmem [thread:$0]  %s2, 28672, %s29, [#allocation3], 256, 256, 16
    $region13: #{vae_forward.1} parent=1 // pred_fallthru
      _
    // Predicated region
    $region14: #{vae_forward.1} parent=1 // pred_check
      _
    $region15: #{vae_forward.1} parent=1 // pred_check_branch
      %36 = sbr.rel (0) target = $region17
    $region16: #{vae_forward.1} parent=1 // pred_region
      _
    $region17: #{vae_forward.1} parent=1 // pred_fallthru
      _
    // Predicated region
    $region18: #{vae_forward.1} parent=1 // pred_check
      _
    $region19: #{vae_forward.1} parent=1 // pred_check_branch
      %38 = sbr.rel (0) target = $region21
    $region20: #{vae_forward.1} parent=1 // pred_region
      _
    $region21: #{vae_forward.1} parent=1 // pred_fallthru
      _
    // Predicated region
    $region22: #{vae_forward.1} parent=1 // pred_check
      _
    $region23: #{vae_forward.1} parent=1 // pred_check_branch
      %40 = sbr.rel (0) target = $region25
    $region24: #{vae_forward.1} parent=1 // pred_region
      _
    $region25: #{vae_forward.1} parent=1 // pred_fallthru
      _
    // Predicated region
    $region26: #{vae_forward.1} parent=1 // pred_check
      _
    $region27: #{vae_forward.1} parent=1 // pred_check_branch
      %42 = sbr.rel (0) target = $region29
    $region28: #{vae_forward.1} parent=1 // pred_region
      _
    $region29: #{vae_forward.1} parent=1 // pred_fallthru
      _
    // Predicated region
    $region30: #{vae_forward.1} parent=1 // pred_check
      _
    $region31: #{vae_forward.1} parent=1 // pred_check_branch
      %44 = sbr.rel (0) target = $region33
    $region32: #{vae_forward.1} parent=1 // pred_region
      _
    $region33: #{vae_forward.1} parent=1 // pred_fallthru
      _
    // Predicated region
    $region34: #{vae_forward.1} parent=1 // pred_check
      _
    $region35: #{vae_forward.1} parent=1 // pred_check_branch
      %46 = sbr.rel (0) target = $region37
    $region36: #{vae_forward.1} parent=1 // pred_region
      %s48 = ssub.s32 28672, 28672
      %49 = vsyncadd [#allocation5], %s48
      %s50 = sshll.u32 [#allocation4], 4
      %s51 = int_to_ptr.vmem [resolvable:$true] %s50
      %56 = dma.hbm_to_vmem [thread:$0]  %s8, 28672, %s51, [#allocation5], 448, 448, 28
    $region37: #{vae_forward.1} parent=1 // pred_fallthru
      _
    // Predicated region
    $region38: #{vae_forward.1} parent=1 // pred_check
      _
    $region39: #{vae_forward.1} parent=1 // pred_check_branch
      %58 = sbr.rel (0) target = $region41
    $region40: #{vae_forward.1} parent=1 // pred_region
      _
    $region41: #{vae_forward.1} parent=1 // pred_fallthru
      _
    // Predicated region
    $region42: #{vae_forward.1} parent=1 // pred_check
      _
    $region43: #{vae_forward.1} parent=1 // pred_check_branch
      %60 = sbr.rel (0) target = $region45
    $region44: #{vae_forward.1} parent=1 // pred_region
      %61 = dma.done [#allocation3], 28672
    $region45: #{vae_forward.1} parent=1 // pred_fallthru
      _
    // Predicated region
    $region46: #{vae_forward.1} parent=1 // pred_check
      _
    $region47: #{vae_forward.1} parent=1 // pred_check_branch
      %63 = sbr.rel (0) target = $region49
    $region48: #{vae_forward.1} parent=1 // pred_region
      %64 = dma.done [#allocation5], 28672
    $region49: #{vae_forward.1} parent=1 // pred_fallthru
      _
    %v66 = vld [vmem:[%s0] sm:$0xff]
    %v67 = vld [vmem:[%s0 + $0x8] sm:$0xff]
    %v68 = vld [vmem:[%s0 + $0x10] sm:$0xff]
    %v69 = vld [vmem:[%s0 + $0x18] sm:$0xff]
    %v70 = vld [vmem:[%s0 + $0x20] sm:$0xff]
    %v71 = vld [vmem:[%s0 + $0x28] sm:$0xff]
    %v72 = vld [vmem:[%s0 + $0x30] sm:$0xff]
    %v73 = vpack.c.bf16 %v66, %v66
    %v74 = vpack.c.bf16 %v67, %v67
    %v75 = vpack.c.bf16 %v68, %v68
    %v76 = vpack.c.bf16 %v69, %v69
    %v77 = vpack.c.bf16 %v70, %v70
    %v78 = vpack.c.bf16 %v71, %v71
    %v79 = vpack.c.bf16 %v72, %v72
    %v80 = vld [vmem:[#allocation2] sm:$0xff]
    %v81 = vld [vmem:[#allocation2 + $0x8] sm:$0xff]
    %v82 = vld [vmem:[#allocation2 + $0x10] sm:$0xff]
    %v83 = vld [vmem:[#allocation2 + $0x18] sm:$0xff]
    %v84 = vld [vmem:[#allocation2 + $0x20] sm:$0xff]
    %v85 = vld [vmem:[#allocation2 + $0x28] sm:$0xff]
    %v86 = vld [vmem:[#allocation2 + $0x30] sm:$0xff]
    %v87 = vld [vmem:[#allocation2 + $0x38] sm:$0xff]
    %v88 = vld [vmem:[#allocation2 + $0x40] sm:$0xff]
    %v89 = vld [vmem:[#allocation2 + $0x48] sm:$0xff]
    %v90 = vld [vmem:[#allocation2 + $0x50] sm:$0xff]
    %v91 = vld [vmem:[#allocation2 + $0x58] sm:$0xff]
    %v92 = vld [vmem:[#allocation2 + $0x60] sm:$0xff]
    %v93 = vld [vmem:[#allocation2 + $0x68] sm:$0xff]
    %v94 = vld [vmem:[#allocation2 + $0x70] sm:$0xff]
    %v95 = vld [vmem:[#allocation2 + $0x78] sm:$0xff]
    %v96 = vld [vmem:[#allocation2 + $0x80] sm:$0xff]
    %v97 = vld [vmem:[#allocation2 + $0x88] sm:$0xff]
    %v98 = vld [vmem:[#allocation2 + $0x90] sm:$0xff]
    %v99 = vld [vmem:[#allocation2 + $0x98] sm:$0xff]
    %v100 = vld [vmem:[#allocation2 + $0xa0] sm:$0xff]
    %v101 = vld [vmem:[#allocation2 + $0xa8] sm:$0xff]
    %v102 = vld [vmem:[#allocation2 + $0xb0] sm:$0xff]
    %v103 = vld [vmem:[#allocation2 + $0xb8] sm:$0xff]
    %v104 = vld [vmem:[#allocation2 + $0xc0] sm:$0xff]
    %v105 = vld [vmem:[#allocation2 + $0xc8] sm:$0xff]
    %v106 = vld [vmem:[#allocation2 + $0xd0] sm:$0xff]
    %v107 = vld [vmem:[#allocation2 + $0xd8] sm:$0xff]
    %v108 = vld [vmem:[#allocation2 + $0xe0] sm:$0xff]
    %v109 = vld [vmem:[#allocation2 + $0xe8] sm:$0xff]
    %v110 = vld [vmem:[#allocation2 + $0xf0] sm:$0xff]
    %v111 = vld [vmem:[#allocation2 + $0xf8] sm:$0xff]
    %v112 = vld [vmem:[#allocation2 + $0x100] sm:$0xff]
    %v113 = vld [vmem:[#allocation2 + $0x108] sm:$0xff]
    %v114 = vld [vmem:[#allocation2 + $0x110] sm:$0xff]
    %v115 = vld [vmem:[#allocation2 + $0x118] sm:$0xff]
    %v116 = vld [vmem:[#allocation2 + $0x120] sm:$0xff]
    %v117 = vld [vmem:[#allocation2 + $0x128] sm:$0xff]
    %v118 = vld [vmem:[#allocation2 + $0x130] sm:$0xff]
    %v119 = vld [vmem:[#allocation2 + $0x138] sm:$0xff]
    %v120 = vld [vmem:[#allocation2 + $0x140] sm:$0xff]
    %v121 = vld [vmem:[#allocation2 + $0x148] sm:$0xff]
    %v122 = vld [vmem:[#allocation2 + $0x150] sm:$0xff]
    %v123 = vld [vmem:[#allocation2 + $0x158] sm:$0xff]
    %v124 = vld [vmem:[#allocation2 + $0x160] sm:$0xff]
    %v125 = vld [vmem:[#allocation2 + $0x168] sm:$0xff]
    %v126 = vld [vmem:[#allocation2 + $0x170] sm:$0xff]
    %v127 = vld [vmem:[#allocation2 + $0x178] sm:$0xff]
    %v128 = vld [vmem:[#allocation2 + $0x180] sm:$0xff]
    %v129 = vld [vmem:[#allocation2 + $0x188] sm:$0xff]
    %v130 = vld [vmem:[#allocation2 + $0x190] sm:$0xff]
    %v131 = vld [vmem:[#allocation2 + $0x198] sm:$0xff]
    %v132 = vld [vmem:[#allocation2 + $0x1a0] sm:$0xff]
    %v133 = vld [vmem:[#allocation2 + $0x1a8] sm:$0xff]
    %v134 = vld [vmem:[#allocation2 + $0x1b0] sm:$0xff]
    %v135 = vld [vmem:[#allocation2 + $0x1b8] sm:$0xff]
    %v136 = vld [vmem:[#allocation2 + $0x1c0] sm:$0xff]
    %v137 = vld [vmem:[#allocation2 + $0x1c8] sm:$0xff]
    %v138 = vld [vmem:[#allocation2 + $0x1d0] sm:$0xff]
    %v139 = vld [vmem:[#allocation2 + $0x1d8] sm:$0xff]
    %v140 = vld [vmem:[#allocation2 + $0x1e0] sm:$0xff]
    %v141 = vld [vmem:[#allocation2 + $0x1e8] sm:$0xff]
    %v142 = vld [vmem:[#allocation2 + $0x1f0] sm:$0xff]
    %v143 = vld [vmem:[#allocation2 + $0x1f8] sm:$0xff]
    %v144 = vld [vmem:[#allocation2 + $0x200] sm:$0xff]
    %v145 = vld [vmem:[#allocation2 + $0x208] sm:$0xff]
    %v146 = vld [vmem:[#allocation2 + $0x210] sm:$0xff]
    %v147 = vld [vmem:[#allocation2 + $0x218] sm:$0xff]
    %v148 = vld [vmem:[#allocation2 + $0x220] sm:$0xff]
    %v149 = vld [vmem:[#allocation2 + $0x228] sm:$0xff]
    %v150 = vld [vmem:[#allocation2 + $0x230] sm:$0xff]
    %v151 = vld [vmem:[#allocation2 + $0x238] sm:$0xff]
    %v152 = vld [vmem:[#allocation2 + $0x240] sm:$0xff]
    %v153 = vld [vmem:[#allocation2 + $0x248] sm:$0xff]
    %v154 = vld [vmem:[#allocation2 + $0x250] sm:$0xff]
    %v155 = vld [vmem:[#allocation2 + $0x258] sm:$0xff]
    %v156 = vld [vmem:[#allocation2 + $0x260] sm:$0xff]
    %v157 = vld [vmem:[#allocation2 + $0x268] sm:$0xff]
    %v158 = vld [vmem:[#allocation2 + $0x270] sm:$0xff]
    %v159 = vld [vmem:[#allocation2 + $0x278] sm:$0xff]
    %v160 = vld [vmem:[#allocation2 + $0x280] sm:$0xff]
    %v161 = vld [vmem:[#allocation2 + $0x288] sm:$0xff]
    %v162 = vld [vmem:[#allocation2 + $0x290] sm:$0xff]
    %v163 = vld [vmem:[#allocation2 + $0x298] sm:$0xff]
    %v164 = vld [vmem:[#allocation2 + $0x2a0] sm:$0xff]
    %v165 = vld [vmem:[#allocation2 + $0x2a8] sm:$0xff]
    %v166 = vld [vmem:[#allocation2 + $0x2b0] sm:$0xff]
    %v167 = vld [vmem:[#allocation2 + $0x2b8] sm:$0xff]
    %v168 = vld [vmem:[#allocation2 + $0x2c0] sm:$0xff]
    %v169 = vld [vmem:[#allocation2 + $0x2c8] sm:$0xff]
    %v170 = vld [vmem:[#allocation2 + $0x2d0] sm:$0xff]
    %v171 = vld [vmem:[#allocation2 + $0x2d8] sm:$0xff]
    %v172 = vld [vmem:[#allocation2 + $0x2e0] sm:$0xff]
    %v173 = vld [vmem:[#allocation2 + $0x2e8] sm:$0xff]
    %v174 = vld [vmem:[#allocation2 + $0x2f0] sm:$0xff]
    %v175 = vld [vmem:[#allocation2 + $0x2f8] sm:$0xff]
    %v176 = vld [vmem:[#allocation2 + $0x300] sm:$0xff]
    %v177 = vld [vmem:[#allocation2 + $0x308] sm:$0xff]
    %v178 = vld [vmem:[#allocation2 + $0x310] sm:$0xff]
    %v179 = vld [vmem:[#allocation2 + $0x318] sm:$0xff]
    %v180 = vld [vmem:[#allocation2 + $0x320] sm:$0xff]
    %v181 = vld [vmem:[#allocation2 + $0x328] sm:$0xff]
    %v182 = vld [vmem:[#allocation2 + $0x330] sm:$0xff]
    %v183 = vld [vmem:[#allocation2 + $0x338] sm:$0xff]
    %v184 = vld [vmem:[#allocation2 + $0x340] sm:$0xff]
    %v185 = vld [vmem:[#allocation2 + $0x348] sm:$0xff]
    %v186 = vld [vmem:[#allocation2 + $0x350] sm:$0xff]
    %v187 = vld [vmem:[#allocation2 + $0x358] sm:$0xff]
    %v188 = vld [vmem:[#allocation2 + $0x360] sm:$0xff]
    %v189 = vld [vmem:[#allocation2 + $0x368] sm:$0xff]
    %v190 = vld [vmem:[#allocation2 + $0x370] sm:$0xff]
    %v191 = vld [vmem:[#allocation2 + $0x378] sm:$0xff]
    %v192 = vld [vmem:[#allocation2 + $0x380] sm:$0xff]
    %v193 = vld [vmem:[#allocation2 + $0x388] sm:$0xff]
    %v194 = vld [vmem:[#allocation2 + $0x390] sm:$0xff]
    %v195 = vld [vmem:[#allocation2 + $0x398] sm:$0xff]
    %v196 = vld [vmem:[#allocation2 + $0x3a0] sm:$0xff]
    %v197 = vld [vmem:[#allocation2 + $0x3a8] sm:$0xff]
    %v198 = vld [vmem:[#allocation2 + $0x3b0] sm:$0xff]
    %v199 = vld [vmem:[#allocation2 + $0x3b8] sm:$0xff]
    %v200 = vld [vmem:[#allocation2 + $0x3c0] sm:$0xff]
    %v201 = vld [vmem:[#allocation2 + $0x3c8] sm:$0xff]
    %v202 = vld [vmem:[#allocation2 + $0x3d0] sm:$0xff]
    %v203 = vld [vmem:[#allocation2 + $0x3d8] sm:$0xff]
    %v204 = vld [vmem:[#allocation2 + $0x3e0] sm:$0xff]
    %v205 = vld [vmem:[#allocation2 + $0x3e8] sm:$0xff]
    %v206 = vld [vmem:[#allocation2 + $0x3f0] sm:$0xff]
    %v207 = vld [vmem:[#allocation2 + $0x3f8] sm:$0xff]
    %v208 = vld [vmem:[#allocation2 + $0x400] sm:$0xff]
    %v209 = vld [vmem:[#allocation2 + $0x408] sm:$0xff]
    %v210 = vld [vmem:[#allocation2 + $0x410] sm:$0xff]
    %v211 = vld [vmem:[#allocation2 + $0x418] sm:$0xff]
    %v212 = vld [vmem:[#allocation2 + $0x420] sm:$0xff]
    %v213 = vld [vmem:[#allocation2 + $0x428] sm:$0xff]
    %v214 = vld [vmem:[#allocation2 + $0x430] sm:$0xff]
    %v215 = vld [vmem:[#allocation2 + $0x438] sm:$0xff]
    %v216 = vld [vmem:[#allocation2 + $0x440] sm:$0xff]
    %v217 = vld [vmem:[#allocation2 + $0x448] sm:$0xff]
    %v218 = vld [vmem:[#allocation2 + $0x450] sm:$0xff]
    %v219 = vld [vmem:[#allocation2 + $0x458] sm:$0xff]
    %v220 = vld [vmem:[#allocation2 + $0x460] sm:$0xff]
    %v221 = vld [vmem:[#allocation2 + $0x468] sm:$0xff]
    %v222 = vld [vmem:[#allocation2 + $0x470] sm:$0xff]
    %v223 = vld [vmem:[#allocation2 + $0x478] sm:$0xff]
    %v224 = vld [vmem:[#allocation2 + $0x480] sm:$0xff]
    %v225 = vld [vmem:[#allocation2 + $0x488] sm:$0xff]
    %v226 = vld [vmem:[#allocation2 + $0x490] sm:$0xff]
    %v227 = vld [vmem:[#allocation2 + $0x498] sm:$0xff]
    %v228 = vld [vmem:[#allocation2 + $0x4a0] sm:$0xff]
    %v229 = vld [vmem:[#allocation2 + $0x4a8] sm:$0xff]
    %v230 = vld [vmem:[#allocation2 + $0x4b0] sm:$0xff]
    %v231 = vld [vmem:[#allocation2 + $0x4b8] sm:$0xff]
    %v232 = vld [vmem:[#allocation2 + $0x4c0] sm:$0xff]
    %v233 = vld [vmem:[#allocation2 + $0x4c8] sm:$0xff]
    %v234 = vld [vmem:[#allocation2 + $0x4d0] sm:$0xff]
    %v235 = vld [vmem:[#allocation2 + $0x4d8] sm:$0xff]
    %v236 = vld [vmem:[#allocation2 + $0x4e0] sm:$0xff]
    %v237 = vld [vmem:[#allocation2 + $0x4e8] sm:$0xff]
    %v238 = vld [vmem:[#allocation2 + $0x4f0] sm:$0xff]
    %v239 = vld [vmem:[#allocation2 + $0x4f8] sm:$0xff]
    %v240 = vld [vmem:[#allocation2 + $0x500] sm:$0xff]
    %v241 = vld [vmem:[#allocation2 + $0x508] sm:$0xff]
    %v242 = vld [vmem:[#allocation2 + $0x510] sm:$0xff]
    %v243 = vld [vmem:[#allocation2 + $0x518] sm:$0xff]
    %v244 = vld [vmem:[#allocation2 + $0x520] sm:$0xff]
    %v245 = vld [vmem:[#allocation2 + $0x528] sm:$0xff]
    %v246 = vld [vmem:[#allocation2 + $0x530] sm:$0xff]
    %v247 = vld [vmem:[#allocation2 + $0x538] sm:$0xff]
    %v248 = vld [vmem:[#allocation2 + $0x540] sm:$0xff]
    %v249 = vld [vmem:[#allocation2 + $0x548] sm:$0xff]
    %v250 = vld [vmem:[#allocation2 + $0x550] sm:$0xff]
    %v251 = vld [vmem:[#allocation2 + $0x558] sm:$0xff]
    %v252 = vld [vmem:[#allocation2 + $0x560] sm:$0xff]
    %v253 = vld [vmem:[#allocation2 + $0x568] sm:$0xff]
    %v254 = vld [vmem:[#allocation2 + $0x570] sm:$0xff]
    %v255 = vld [vmem:[#allocation2 + $0x578] sm:$0xff]
    %v256 = vld [vmem:[#allocation2 + $0x580] sm:$0xff]
    %v257 = vld [vmem:[#allocation2 + $0x588] sm:$0xff]
    %v258 = vld [vmem:[#allocation2 + $0x590] sm:$0xff]
    %v259 = vld [vmem:[#allocation2 + $0x598] sm:$0xff]
    %v260 = vld [vmem:[#allocation2 + $0x5a0] sm:$0xff]
    %v261 = vld [vmem:[#allocation2 + $0x5a8] sm:$0xff]
    %v262 = vld [vmem:[#allocation2 + $0x5b0] sm:$0xff]
    %v263 = vld [vmem:[#allocation2 + $0x5b8] sm:$0xff]
    %v264 = vld [vmem:[#allocation2 + $0x5c0] sm:$0xff]
    %v265 = vld [vmem:[#allocation2 + $0x5c8] sm:$0xff]
    %v266 = vld [vmem:[#allocation2 + $0x5d0] sm:$0xff]
    %v267 = vld [vmem:[#allocation2 + $0x5d8] sm:$0xff]
    %v268 = vld [vmem:[#allocation2 + $0x5e0] sm:$0xff]
    %v269 = vld [vmem:[#allocation2 + $0x5e8] sm:$0xff]
    %v270 = vld [vmem:[#allocation2 + $0x5f0] sm:$0xff]
    %v271 = vld [vmem:[#allocation2 + $0x5f8] sm:$0xff]
    %v272 = vld [vmem:[#allocation2 + $0x600] sm:$0xff]
    %v273 = vld [vmem:[#allocation2 + $0x608] sm:$0xff]
    %v274 = vld [vmem:[#allocation2 + $0x610] sm:$0xff]
    %v275 = vld [vmem:[#allocation2 + $0x618] sm:$0xff]
    %v276 = vld [vmem:[#allocation2 + $0x620] sm:$0xff]
    %v277 = vld [vmem:[#allocation2 + $0x628] sm:$0xff]
    %v278 = vld [vmem:[#allocation2 + $0x630] sm:$0xff]
    %v279 = vld [vmem:[#allocation2 + $0x638] sm:$0xff]
    %v280 = vld [vmem:[#allocation2 + $0x640] sm:$0xff]
    %v281 = vld [vmem:[#allocation2 + $0x648] sm:$0xff]
    %v282 = vld [vmem:[#allocation2 + $0x650] sm:$0xff]
    %v283 = vld [vmem:[#allocation2 + $0x658] sm:$0xff]
    %v284 = vld [vmem:[#allocation2 + $0x660] sm:$0xff]
    %v285 = vld [vmem:[#allocation2 + $0x668] sm:$0xff]
    %v286 = vld [vmem:[#allocation2 + $0x670] sm:$0xff]
    %v287 = vld [vmem:[#allocation2 + $0x678] sm:$0xff]
    %v288 = vld [vmem:[#allocation2 + $0x680] sm:$0xff]
    %v289 = vld [vmem:[#allocation2 + $0x688] sm:$0xff]
    %v290 = vld [vmem:[#allocation2 + $0x690] sm:$0xff]
    %v291 = vld [vmem:[#allocation2 + $0x698] sm:$0xff]
    %v292 = vld [vmem:[#allocation2 + $0x6a0] sm:$0xff]
    %v293 = vld [vmem:[#allocation2 + $0x6a8] sm:$0xff]
    %v294 = vld [vmem:[#allocation2 + $0x6b0] sm:$0xff]
    %v295 = vld [vmem:[#allocation2 + $0x6b8] sm:$0xff]
    %v296 = vld [vmem:[#allocation2 + $0x6c0] sm:$0xff]
    %v297 = vld [vmem:[#allocation2 + $0x6c8] sm:$0xff]
    %v298 = vld [vmem:[#allocation2 + $0x6d0] sm:$0xff]
    %v299 = vld [vmem:[#allocation2 + $0x6d8] sm:$0xff]
    %v300 = vld [vmem:[#allocation2 + $0x6e0] sm:$0xff]
    %v301 = vld [vmem:[#allocation2 + $0x6e8] sm:$0xff]
    %v302 = vld [vmem:[#allocation2 + $0x6f0] sm:$0xff]
    %v303 = vld [vmem:[#allocation2 + $0x6f8] sm:$0xff]
    %v304 = vld [vmem:[%s3] sm:$0xf]
    %v306 = vlaneseq
    %v307 = vshrl.u32 %v306, 7
    %v308 = vsub.s32 0, %v307
    %v309 = vrot.slane %v304, %v308
    %v310 = vlaneseq
    %v311 = vshrl.u32 %v310, 7
    %v312 = vsub.s32 1, %v311
    %v313 = vrot.slane %v304, %v312
    %v314 = vlaneseq
    %v315 = vshrl.u32 %v314, 7
    %v316 = vsub.s32 2, %v315
    %v317 = vrot.slane %v304, %v316
    %v318 = vlaneseq
    %v319 = vshrl.u32 %v318, 7
    %v320 = vsub.s32 3, %v319
    %v321 = vrot.slane %v304, %v320
    %v550 = vunpack.c.l.b16 %v80
    %v551 = vunpack.c.h.b16 %v80
    %v552 = vunpack.c.l.b16 %v81
    %v553 = vunpack.c.h.b16 %v81
    %v554 = vunpack.c.l.b16 %v82
    %v555 = vunpack.c.h.b16 %v82
    %v556 = vunpack.c.l.b16 %v83
    %v557 = vunpack.c.h.b16 %v83
    %v558 = vunpack.c.l.b16 %v84
    %v559 = vunpack.c.h.b16 %v84
    %v560 = vunpack.c.l.b16 %v85
    %v561 = vunpack.c.h.b16 %v85
    %v562 = vunpack.c.l.b16 %v86
    %v563 = vunpack.c.h.b16 %v86
    %v564 = vunpack.c.l.b16 %v87
    %v565 = vunpack.c.h.b16 %v87
    %v566 = vunpack.c.l.b16 %v88
    %v567 = vunpack.c.h.b16 %v88
    %v568 = vunpack.c.l.b16 %v89
    %v569 = vunpack.c.h.b16 %v89
    %v570 = vunpack.c.l.b16 %v90
    %v571 = vunpack.c.h.b16 %v90
    %v572 = vunpack.c.l.b16 %v91
    %v573 = vunpack.c.h.b16 %v91
    %v574 = vunpack.c.l.b16 %v92
    %v575 = vunpack.c.h.b16 %v92
    %v576 = vunpack.c.l.b16 %v93
    %v577 = vunpack.c.h.b16 %v93
    %v578 = vunpack.c.l.b16 %v94
    %v579 = vunpack.c.h.b16 %v94
    %v580 = vunpack.c.l.b16 %v95
    %v581 = vunpack.c.h.b16 %v95
    %v582 = vunpack.c.l.b16 %v96
    %v583 = vunpack.c.h.b16 %v96
    %v584 = vunpack.c.l.b16 %v97
    %v585 = vunpack.c.h.b16 %v97
    %v586 = vunpack.c.l.b16 %v98
    %v587 = vunpack.c.h.b16 %v98
    %v588 = vunpack.c.l.b16 %v99
    %v589 = vunpack.c.h.b16 %v99
    %v590 = vunpack.c.l.b16 %v100
    %v591 = vunpack.c.h.b16 %v100
    %v592 = vunpack.c.l.b16 %v101
    %v593 = vunpack.c.h.b16 %v101
    %v594 = vunpack.c.l.b16 %v102
    %v595 = vunpack.c.h.b16 %v102
    %v596 = vunpack.c.l.b16 %v103
    %v597 = vunpack.c.h.b16 %v103
    %v598 = vunpack.c.l.b16 %v104
    %v599 = vunpack.c.h.b16 %v104
    %v600 = vunpack.c.l.b16 %v105
    %v601 = vunpack.c.h.b16 %v105
    %v602 = vunpack.c.l.b16 %v106
    %v603 = vunpack.c.h.b16 %v106
    %v604 = vunpack.c.l.b16 %v107
    %v605 = vunpack.c.h.b16 %v107
    %v606 = vunpack.c.l.b16 %v108
    %v607 = vunpack.c.h.b16 %v108
    %v608 = vunpack.c.l.b16 %v109
    %v609 = vunpack.c.h.b16 %v109
    %v610 = vunpack.c.l.b16 %v110
    %v611 = vunpack.c.h.b16 %v110
    %v612 = vunpack.c.l.b16 %v111
    %v613 = vunpack.c.h.b16 %v111
    %v614 = vunpack.c.l.b16 %v112
    %v615 = vunpack.c.h.b16 %v112
    %v616 = vunpack.c.l.b16 %v113
    %v617 = vunpack.c.h.b16 %v113
    %v618 = vunpack.c.l.b16 %v114
    %v619 = vunpack.c.h.b16 %v114
    %v620 = vunpack.c.l.b16 %v115
    %v621 = vunpack.c.h.b16 %v115
    %v622 = vunpack.c.l.b16 %v116
    %v623 = vunpack.c.h.b16 %v116
    %v624 = vunpack.c.l.b16 %v117
    %v625 = vunpack.c.h.b16 %v117
    %v626 = vunpack.c.l.b16 %v118
    %v627 = vunpack.c.h.b16 %v118
    %v628 = vunpack.c.l.b16 %v119
    %v629 = vunpack.c.h.b16 %v119
    %v630 = vunpack.c.l.b16 %v120
    %v631 = vunpack.c.h.b16 %v120
    %v632 = vunpack.c.l.b16 %v121
    %v633 = vunpack.c.h.b16 %v121
    %v634 = vunpack.c.l.b16 %v122
    %v635 = vunpack.c.h.b16 %v122
    %v636 = vunpack.c.l.b16 %v123
    %v637 = vunpack.c.h.b16 %v123
    %v638 = vunpack.c.l.b16 %v124
    %v639 = vunpack.c.h.b16 %v124
    %v640 = vunpack.c.l.b16 %v125
    %v641 = vunpack.c.h.b16 %v125
    %v642 = vunpack.c.l.b16 %v126
    %v643 = vunpack.c.h.b16 %v126
    %v644 = vunpack.c.l.b16 %v127
    %v645 = vunpack.c.h.b16 %v127
    %v646 = vunpack.c.l.b16 %v128
    %v647 = vunpack.c.h.b16 %v128
    %v648 = vunpack.c.l.b16 %v129
    %v649 = vunpack.c.h.b16 %v129
    %v650 = vunpack.c.l.b16 %v130
    %v651 = vunpack.c.h.b16 %v130
    %v652 = vunpack.c.l.b16 %v131
    %v653 = vunpack.c.h.b16 %v131
    %v654 = vunpack.c.l.b16 %v132
    %v655 = vunpack.c.h.b16 %v132
    %v656 = vunpack.c.l.b16 %v133
    %v657 = vunpack.c.h.b16 %v133
    %v658 = vunpack.c.l.b16 %v134
    %v659 = vunpack.c.h.b16 %v134
    %v660 = vunpack.c.l.b16 %v135
    %v661 = vunpack.c.h.b16 %v135
    %v662 = vunpack.c.l.b16 %v136
    %v663 = vunpack.c.h.b16 %v136
    %v664 = vunpack.c.l.b16 %v137
    %v665 = vunpack.c.h.b16 %v137
    %v666 = vunpack.c.l.b16 %v138
    %v667 = vunpack.c.h.b16 %v138
    %v668 = vunpack.c.l.b16 %v139
    %v669 = vunpack.c.h.b16 %v139
    %v670 = vunpack.c.l.b16 %v140
    %v671 = vunpack.c.h.b16 %v140
    %v672 = vunpack.c.l.b16 %v141
    %v673 = vunpack.c.h.b16 %v141
    %v674 = vunpack.c.l.b16 %v142
    %v675 = vunpack.c.h.b16 %v142
    %v676 = vunpack.c.l.b16 %v143
    %v677 = vunpack.c.h.b16 %v143
    %v678 = vunpack.c.l.b16 %v144
    %v679 = vunpack.c.h.b16 %v144
    %v680 = vunpack.c.l.b16 %v145
    %v681 = vunpack.c.h.b16 %v145
    %v682 = vunpack.c.l.b16 %v146
    %v683 = vunpack.c.h.b16 %v146
    %v684 = vunpack.c.l.b16 %v147
    %v685 = vunpack.c.h.b16 %v147
    %v686 = vunpack.c.l.b16 %v148
    %v687 = vunpack.c.h.b16 %v148
    %v688 = vunpack.c.l.b16 %v149
    %v689 = vunpack.c.h.b16 %v149
    %v690 = vunpack.c.l.b16 %v150
    %v691 = vunpack.c.h.b16 %v150
    %v692 = vunpack.c.l.b16 %v151
    %v693 = vunpack.c.h.b16 %v151
    %v694 = vunpack.c.l.b16 %v152
    %v695 = vunpack.c.h.b16 %v152
    %v696 = vunpack.c.l.b16 %v153
    %v697 = vunpack.c.h.b16 %v153
    %v698 = vunpack.c.l.b16 %v154
    %v699 = vunpack.c.h.b16 %v154
    %v700 = vunpack.c.l.b16 %v155
    %v701 = vunpack.c.h.b16 %v155
    %v702 = vunpack.c.l.b16 %v156
    %v703 = vunpack.c.h.b16 %v156
    %v704 = vunpack.c.l.b16 %v157
    %v705 = vunpack.c.h.b16 %v157
    %v706 = vunpack.c.l.b16 %v158
    %v707 = vunpack.c.h.b16 %v158
    %v708 = vunpack.c.l.b16 %v159
    %v709 = vunpack.c.h.b16 %v159
    %v710 = vunpack.c.l.b16 %v160
    %v711 = vunpack.c.h.b16 %v160
    %v712 = vunpack.c.l.b16 %v161
    %v713 = vunpack.c.h.b16 %v161
    %v714 = vunpack.c.l.b16 %v162
    %v715 = vunpack.c.h.b16 %v162
    %v716 = vunpack.c.l.b16 %v163
    %v717 = vunpack.c.h.b16 %v163
    %v718 = vunpack.c.l.b16 %v164
    %v719 = vunpack.c.h.b16 %v164
    %v720 = vunpack.c.l.b16 %v165
    %v721 = vunpack.c.h.b16 %v165
    %v722 = vunpack.c.l.b16 %v166
    %v723 = vunpack.c.h.b16 %v166
    %v724 = vunpack.c.l.b16 %v167
    %v725 = vunpack.c.h.b16 %v167
    %v726 = vunpack.c.l.b16 %v168
    %v727 = vunpack.c.h.b16 %v168
    %v728 = vunpack.c.l.b16 %v169
    %v729 = vunpack.c.h.b16 %v169
    %v730 = vunpack.c.l.b16 %v170
    %v731 = vunpack.c.h.b16 %v170
    %v732 = vunpack.c.l.b16 %v171
    %v733 = vunpack.c.h.b16 %v171
    %v734 = vunpack.c.l.b16 %v172
    %v735 = vunpack.c.h.b16 %v172
    %v736 = vunpack.c.l.b16 %v173
    %v737 = vunpack.c.h.b16 %v173
    %v738 = vunpack.c.l.b16 %v174
    %v739 = vunpack.c.h.b16 %v174
    %v740 = vunpack.c.l.b16 %v175
    %v741 = vunpack.c.h.b16 %v175
    %v742 = vunpack.c.l.b16 %v176
    %v743 = vunpack.c.h.b16 %v176
    %v744 = vunpack.c.l.b16 %v177
    %v745 = vunpack.c.h.b16 %v177
    %v746 = vunpack.c.l.b16 %v178
    %v747 = vunpack.c.h.b16 %v178
    %v748 = vunpack.c.l.b16 %v179
    %v749 = vunpack.c.h.b16 %v179
    %v750 = vunpack.c.l.b16 %v180
    %v751 = vunpack.c.h.b16 %v180
    %v752 = vunpack.c.l.b16 %v181
    %v753 = vunpack.c.h.b16 %v181
    %v754 = vunpack.c.l.b16 %v182
    %v755 = vunpack.c.h.b16 %v182
    %v756 = vunpack.c.l.b16 %v183
    %v757 = vunpack.c.h.b16 %v183
    %v758 = vunpack.c.l.b16 %v184
    %v759 = vunpack.c.h.b16 %v184
    %v760 = vunpack.c.l.b16 %v185
    %v761 = vunpack.c.h.b16 %v185
    %v762 = vunpack.c.l.b16 %v186
    %v763 = vunpack.c.h.b16 %v186
    %v764 = vunpack.c.l.b16 %v187
    %v765 = vunpack.c.h.b16 %v187
    %v766 = vunpack.c.l.b16 %v188
    %v767 = vunpack.c.h.b16 %v188
    %v768 = vunpack.c.l.b16 %v189
    %v769 = vunpack.c.h.b16 %v189
    %v770 = vunpack.c.l.b16 %v190
    %v771 = vunpack.c.h.b16 %v190
    %v772 = vunpack.c.l.b16 %v191
    %v773 = vunpack.c.h.b16 %v191
    %v774 = vunpack.c.l.b16 %v192
    %v775 = vunpack.c.h.b16 %v192
    %v776 = vunpack.c.l.b16 %v193
    %v777 = vunpack.c.h.b16 %v193
    %v778 = vunpack.c.l.b16 %v194
    %v779 = vunpack.c.h.b16 %v194
    %v780 = vunpack.c.l.b16 %v195
    %v781 = vunpack.c.h.b16 %v195
    %v782 = vunpack.c.l.b16 %v196
    %v783 = vunpack.c.h.b16 %v196
    %v784 = vunpack.c.l.b16 %v197
    %v785 = vunpack.c.h.b16 %v197
    %v786 = vunpack.c.l.b16 %v198
    %v787 = vunpack.c.h.b16 %v198
    %v788 = vunpack.c.l.b16 %v199
    %v789 = vunpack.c.h.b16 %v199
    %v790 = vunpack.c.l.b16 %v200
    %v791 = vunpack.c.h.b16 %v200
    %v792 = vunpack.c.l.b16 %v201
    %v793 = vunpack.c.h.b16 %v201
    %v794 = vunpack.c.l.b16 %v202
    %v795 = vunpack.c.h.b16 %v202
    %v796 = vunpack.c.l.b16 %v203
    %v797 = vunpack.c.h.b16 %v203
    %v798 = vunpack.c.l.b16 %v204
    %v799 = vunpack.c.h.b16 %v204
    %v800 = vunpack.c.l.b16 %v205
    %v801 = vunpack.c.h.b16 %v205
    %v802 = vunpack.c.l.b16 %v206
    %v803 = vunpack.c.h.b16 %v206
    %v804 = vunpack.c.l.b16 %v207
    %v805 = vunpack.c.h.b16 %v207
    %v806 = vunpack.c.l.b16 %v208
    %v807 = vunpack.c.h.b16 %v208
    %v808 = vunpack.c.l.b16 %v209
    %v809 = vunpack.c.h.b16 %v209
    %v810 = vunpack.c.l.b16 %v210
    %v811 = vunpack.c.h.b16 %v210
    %v812 = vunpack.c.l.b16 %v211
    %v813 = vunpack.c.h.b16 %v211
    %v814 = vunpack.c.l.b16 %v212
    %v815 = vunpack.c.h.b16 %v212
    %v816 = vunpack.c.l.b16 %v213
    %v817 = vunpack.c.h.b16 %v213
    %v818 = vunpack.c.l.b16 %v214
    %v819 = vunpack.c.h.b16 %v214
    %v820 = vunpack.c.l.b16 %v215
    %v821 = vunpack.c.h.b16 %v215
    %v822 = vunpack.c.l.b16 %v216
    %v823 = vunpack.c.h.b16 %v216
    %v824 = vunpack.c.l.b16 %v217
    %v825 = vunpack.c.h.b16 %v217
    %v826 = vunpack.c.l.b16 %v218
    %v827 = vunpack.c.h.b16 %v218
    %v828 = vunpack.c.l.b16 %v219
    %v829 = vunpack.c.h.b16 %v219
    %v830 = vunpack.c.l.b16 %v220
    %v831 = vunpack.c.h.b16 %v220
    %v832 = vunpack.c.l.b16 %v221
    %v833 = vunpack.c.h.b16 %v221
    %v834 = vunpack.c.l.b16 %v222
    %v835 = vunpack.c.h.b16 %v222
    %v836 = vunpack.c.l.b16 %v223
    %v837 = vunpack.c.h.b16 %v223
    %v838 = vunpack.c.l.b16 %v224
    %v839 = vunpack.c.h.b16 %v224
    %v840 = vunpack.c.l.b16 %v225
    %v841 = vunpack.c.h.b16 %v225
    %v842 = vunpack.c.l.b16 %v226
    %v843 = vunpack.c.h.b16 %v226
    %v844 = vunpack.c.l.b16 %v227
    %v845 = vunpack.c.h.b16 %v227
    %v846 = vunpack.c.l.b16 %v228
    %v847 = vunpack.c.h.b16 %v228
    %v848 = vunpack.c.l.b16 %v229
    %v849 = vunpack.c.h.b16 %v229
    %v850 = vunpack.c.l.b16 %v230
    %v851 = vunpack.c.h.b16 %v230
    %v852 = vunpack.c.l.b16 %v231
    %v853 = vunpack.c.h.b16 %v231
    %v854 = vunpack.c.l.b16 %v232
    %v855 = vunpack.c.h.b16 %v232
    %v856 = vunpack.c.l.b16 %v233
    %v857 = vunpack.c.h.b16 %v233
    %v858 = vunpack.c.l.b16 %v234
    %v859 = vunpack.c.h.b16 %v234
    %v860 = vunpack.c.l.b16 %v235
    %v861 = vunpack.c.h.b16 %v235
    %v862 = vunpack.c.l.b16 %v236
    %v863 = vunpack.c.h.b16 %v236
    %v864 = vunpack.c.l.b16 %v237
    %v865 = vunpack.c.h.b16 %v237
    %v866 = vunpack.c.l.b16 %v238
    %v867 = vunpack.c.h.b16 %v238
    %v868 = vunpack.c.l.b16 %v239
    %v869 = vunpack.c.h.b16 %v239
    %v870 = vunpack.c.l.b16 %v240
    %v871 = vunpack.c.h.b16 %v240
    %v872 = vunpack.c.l.b16 %v241
    %v873 = vunpack.c.h.b16 %v241
    %v874 = vunpack.c.l.b16 %v242
    %v875 = vunpack.c.h.b16 %v242
    %v876 = vunpack.c.l.b16 %v243
    %v877 = vunpack.c.h.b16 %v243
    %v878 = vunpack.c.l.b16 %v244
    %v879 = vunpack.c.h.b16 %v244
    %v880 = vunpack.c.l.b16 %v245
    %v881 = vunpack.c.h.b16 %v245
    %v882 = vunpack.c.l.b16 %v246
    %v883 = vunpack.c.h.b16 %v246
    %v884 = vunpack.c.l.b16 %v247
    %v885 = vunpack.c.h.b16 %v247
    %v886 = vunpack.c.l.b16 %v248
    %v887 = vunpack.c.h.b16 %v248
    %v888 = vunpack.c.l.b16 %v249
    %v889 = vunpack.c.h.b16 %v249
    %v890 = vunpack.c.l.b16 %v250
    %v891 = vunpack.c.h.b16 %v250
    %v892 = vunpack.c.l.b16 %v251
    %v893 = vunpack.c.h.b16 %v251
    %v894 = vunpack.c.l.b16 %v252
    %v895 = vunpack.c.h.b16 %v252
    %v896 = vunpack.c.l.b16 %v253
    %v897 = vunpack.c.h.b16 %v253
    %v898 = vunpack.c.l.b16 %v254
    %v899 = vunpack.c.h.b16 %v254
    %v900 = vunpack.c.l.b16 %v255
    %v901 = vunpack.c.h.b16 %v255
    %v902 = vunpack.c.l.b16 %v256
    %v903 = vunpack.c.h.b16 %v256
    %v904 = vunpack.c.l.b16 %v257
    %v905 = vunpack.c.h.b16 %v257
    %v906 = vunpack.c.l.b16 %v258
    %v907 = vunpack.c.h.b16 %v258
    %v908 = vunpack.c.l.b16 %v259
    %v909 = vunpack.c.h.b16 %v259
    %v910 = vunpack.c.l.b16 %v260
    %v911 = vunpack.c.h.b16 %v260
    %v912 = vunpack.c.l.b16 %v261
    %v913 = vunpack.c.h.b16 %v261
    %v914 = vunpack.c.l.b16 %v262
    %v915 = vunpack.c.h.b16 %v262
    %v916 = vunpack.c.l.b16 %v263
    %v917 = vunpack.c.h.b16 %v263
    %v918 = vunpack.c.l.b16 %v264
    %v919 = vunpack.c.h.b16 %v264
    %v920 = vunpack.c.l.b16 %v265
    %v921 = vunpack.c.h.b16 %v265
    %v922 = vunpack.c.l.b16 %v266
    %v923 = vunpack.c.h.b16 %v266
    %v924 = vunpack.c.l.b16 %v267
    %v925 = vunpack.c.h.b16 %v267
    %v926 = vunpack.c.l.b16 %v268
    %v927 = vunpack.c.h.b16 %v268
    %v928 = vunpack.c.l.b16 %v269
    %v929 = vunpack.c.h.b16 %v269
    %v930 = vunpack.c.l.b16 %v270
    %v931 = vunpack.c.h.b16 %v270
    %v932 = vunpack.c.l.b16 %v271
    %v933 = vunpack.c.h.b16 %v271
    %v934 = vunpack.c.l.b16 %v272
    %v935 = vunpack.c.h.b16 %v272
    %v936 = vunpack.c.l.b16 %v273
    %v937 = vunpack.c.h.b16 %v273
    %v938 = vunpack.c.l.b16 %v274
    %v939 = vunpack.c.h.b16 %v274
    %v940 = vunpack.c.l.b16 %v275
    %v941 = vunpack.c.h.b16 %v275
    %v942 = vunpack.c.l.b16 %v276
    %v943 = vunpack.c.h.b16 %v276
    %v944 = vunpack.c.l.b16 %v277
    %v945 = vunpack.c.h.b16 %v277
    %v946 = vunpack.c.l.b16 %v278
    %v947 = vunpack.c.h.b16 %v278
    %v948 = vunpack.c.l.b16 %v279
    %v949 = vunpack.c.h.b16 %v279
    %v950 = vunpack.c.l.b16 %v280
    %v951 = vunpack.c.h.b16 %v280
    %v952 = vunpack.c.l.b16 %v281
    %v953 = vunpack.c.h.b16 %v281
    %v954 = vunpack.c.l.b16 %v282
    %v955 = vunpack.c.h.b16 %v282
    %v956 = vunpack.c.l.b16 %v283
    %v957 = vunpack.c.h.b16 %v283
    %v958 = vunpack.c.l.b16 %v284
    %v959 = vunpack.c.h.b16 %v284
    %v960 = vunpack.c.l.b16 %v285
    %v961 = vunpack.c.h.b16 %v285
    %v962 = vunpack.c.l.b16 %v286
    %v963 = vunpack.c.h.b16 %v286
    %v964 = vunpack.c.l.b16 %v287
    %v965 = vunpack.c.h.b16 %v287
    %v966 = vunpack.c.l.b16 %v288
    %v967 = vunpack.c.h.b16 %v288
    %v968 = vunpack.c.l.b16 %v289
    %v969 = vunpack.c.h.b16 %v289
    %v970 = vunpack.c.l.b16 %v290
    %v971 = vunpack.c.h.b16 %v290
    %v972 = vunpack.c.l.b16 %v291
    %v973 = vunpack.c.h.b16 %v291
    %v974 = vunpack.c.l.b16 %v292
    %v975 = vunpack.c.h.b16 %v292
    %v976 = vunpack.c.l.b16 %v293
    %v977 = vunpack.c.h.b16 %v293
    %v978 = vunpack.c.l.b16 %v294
    %v979 = vunpack.c.h.b16 %v294
    %v980 = vunpack.c.l.b16 %v295
    %v981 = vunpack.c.h.b16 %v295
    %v982 = vunpack.c.l.b16 %v296
    %v983 = vunpack.c.h.b16 %v296
    %v984 = vunpack.c.l.b16 %v297
    %v985 = vunpack.c.h.b16 %v297
    %v986 = vunpack.c.l.b16 %v298
    %v987 = vunpack.c.h.b16 %v298
    %v988 = vunpack.c.l.b16 %v299
    %v989 = vunpack.c.h.b16 %v299
    %v990 = vunpack.c.l.b16 %v300
    %v991 = vunpack.c.h.b16 %v300
    %v992 = vunpack.c.l.b16 %v301
    %v993 = vunpack.c.h.b16 %v301
    %v994 = vunpack.c.l.b16 %v302
    %v995 = vunpack.c.h.b16 %v302
    %v996 = vunpack.c.l.b16 %v303
    %v997 = vunpack.c.h.b16 %v303
    %v998 = vpack.c.b16 %v554, %v550
    %v999 = vpack.c.b16 %v555, %v551
    %v1000 = vpack.c.b16 %v556, %v552
    %v1001 = vpack.c.b16 %v557, %v553
    %v1002 = vpack.c.b16 %v562, %v558
    %v1003 = vpack.c.b16 %v563, %v559
    %v1004 = vpack.c.b16 %v564, %v560
    %v1005 = vpack.c.b16 %v565, %v561
    %v1006 = vpack.c.b16 %v570, %v566
    %v1007 = vpack.c.b16 %v571, %v567
    %v1008 = vpack.c.b16 %v572, %v568
    %v1009 = vpack.c.b16 %v573, %v569
    %v1010 = vpack.c.b16 %v578, %v574
    %v1011 = vpack.c.b16 %v579, %v575
    %v1012 = vpack.c.b16 %v580, %v576
    %v1013 = vpack.c.b16 %v581, %v577
    %v1014 = vpack.c.b16 %v586, %v582
    %v1015 = vpack.c.b16 %v587, %v583
    %v1016 = vpack.c.b16 %v588, %v584
    %v1017 = vpack.c.b16 %v589, %v585
    %v1018 = vpack.c.b16 %v594, %v590
    %v1019 = vpack.c.b16 %v595, %v591
    %v1020 = vpack.c.b16 %v596, %v592
    %v1021 = vpack.c.b16 %v597, %v593
    %v1022 = vpack.c.b16 %v602, %v598
    %v1023 = vpack.c.b16 %v603, %v599
    %v1024 = vpack.c.b16 %v604, %v600
    %v1025 = vpack.c.b16 %v605, %v601
    %v1026 = vpack.c.b16 %v610, %v606
    %v1027 = vpack.c.b16 %v611, %v607
    %v1028 = vpack.c.b16 %v612, %v608
    %v1029 = vpack.c.b16 %v613, %v609
    %v1030 = vpack.c.b16 %v618, %v614
    %v1031 = vpack.c.b16 %v619, %v615
    %v1032 = vpack.c.b16 %v620, %v616
    %v1033 = vpack.c.b16 %v621, %v617
    %v1034 = vpack.c.b16 %v626, %v622
    %v1035 = vpack.c.b16 %v627, %v623
    %v1036 = vpack.c.b16 %v628, %v624
    %v1037 = vpack.c.b16 %v629, %v625
    %v1038 = vpack.c.b16 %v634, %v630
    %v1039 = vpack.c.b16 %v635, %v631
    %v1040 = vpack.c.b16 %v636, %v632
    %v1041 = vpack.c.b16 %v637, %v633
    %v1042 = vpack.c.b16 %v642, %v638
    %v1043 = vpack.c.b16 %v643, %v639
    %v1044 = vpack.c.b16 %v644, %v640
    %v1045 = vpack.c.b16 %v645, %v641
    %v1046 = vpack.c.b16 %v650, %v646
    %v1047 = vpack.c.b16 %v651, %v647
    %v1048 = vpack.c.b16 %v652, %v648
    %v1049 = vpack.c.b16 %v653, %v649
    %v1050 = vpack.c.b16 %v658, %v654
    %v1051 = vpack.c.b16 %v659, %v655
    %v1052 = vpack.c.b16 %v660, %v656
    %v1053 = vpack.c.b16 %v661, %v657
    %v1054 = vpack.c.b16 %v666, %v662
    %v1055 = vpack.c.b16 %v667, %v663
    %v1056 = vpack.c.b16 %v668, %v664
    %v1057 = vpack.c.b16 %v669, %v665
    %v1058 = vpack.c.b16 %v674, %v670
    %v1059 = vpack.c.b16 %v675, %v671
    %v1060 = vpack.c.b16 %v676, %v672
    %v1061 = vpack.c.b16 %v677, %v673
    %v1062 = vpack.c.b16 %v682, %v678
    %v1063 = vpack.c.b16 %v683, %v679
    %v1064 = vpack.c.b16 %v684, %v680
    %v1065 = vpack.c.b16 %v685, %v681
    %v1066 = vpack.c.b16 %v690, %v686
    %v1067 = vpack.c.b16 %v691, %v687
    %v1068 = vpack.c.b16 %v692, %v688
    %v1069 = vpack.c.b16 %v693, %v689
    %v1070 = vpack.c.b16 %v698, %v694
    %v1071 = vpack.c.b16 %v699, %v695
    %v1072 = vpack.c.b16 %v700, %v696
    %v1073 = vpack.c.b16 %v701, %v697
    %v1074 = vpack.c.b16 %v706, %v702
    %v1075 = vpack.c.b16 %v707, %v703
    %v1076 = vpack.c.b16 %v708, %v704
    %v1077 = vpack.c.b16 %v709, %v705
    %v1078 = vpack.c.b16 %v714, %v710
    %v1079 = vpack.c.b16 %v715, %v711
    %v1080 = vpack.c.b16 %v716, %v712
    %v1081 = vpack.c.b16 %v717, %v713
    %v1082 = vpack.c.b16 %v722, %v718
    %v1083 = vpack.c.b16 %v723, %v719
    %v1084 = vpack.c.b16 %v724, %v720
    %v1085 = vpack.c.b16 %v725, %v721
    %v1086 = vpack.c.b16 %v730, %v726
    %v1087 = vpack.c.b16 %v731, %v727
    %v1088 = vpack.c.b16 %v732, %v728
    %v1089 = vpack.c.b16 %v733, %v729
    %v1090 = vpack.c.b16 %v738, %v734
    %v1091 = vpack.c.b16 %v739, %v735
    %v1092 = vpack.c.b16 %v740, %v736
    %v1093 = vpack.c.b16 %v741, %v737
    %v1094 = vpack.c.b16 %v746, %v742
    %v1095 = vpack.c.b16 %v747, %v743
    %v1096 = vpack.c.b16 %v748, %v744
    %v1097 = vpack.c.b16 %v749, %v745
    %v1098 = vpack.c.b16 %v754, %v750
    %v1099 = vpack.c.b16 %v755, %v751
    %v1100 = vpack.c.b16 %v756, %v752
    %v1101 = vpack.c.b16 %v757, %v753
    %v1102 = vpack.c.b16 %v762, %v758
    %v1103 = vpack.c.b16 %v763, %v759
    %v1104 = vpack.c.b16 %v764, %v760
    %v1105 = vpack.c.b16 %v765, %v761
    %v1106 = vpack.c.b16 %v770, %v766
    %v1107 = vpack.c.b16 %v771, %v767
    %v1108 = vpack.c.b16 %v772, %v768
    %v1109 = vpack.c.b16 %v773, %v769
    %v1110 = vpack.c.b16 %v778, %v774
    %v1111 = vpack.c.b16 %v779, %v775
    %v1112 = vpack.c.b16 %v780, %v776
    %v1113 = vpack.c.b16 %v781, %v777
    %v1114 = vpack.c.b16 %v786, %v782
    %v1115 = vpack.c.b16 %v787, %v783
    %v1116 = vpack.c.b16 %v788, %v784
    %v1117 = vpack.c.b16 %v789, %v785
    %v1118 = vpack.c.b16 %v794, %v790
    %v1119 = vpack.c.b16 %v795, %v791
    %v1120 = vpack.c.b16 %v796, %v792
    %v1121 = vpack.c.b16 %v797, %v793
    %v1122 = vpack.c.b16 %v802, %v798
    %v1123 = vpack.c.b16 %v803, %v799
    %v1124 = vpack.c.b16 %v804, %v800
    %v1125 = vpack.c.b16 %v805, %v801
    %v1126 = vpack.c.b16 %v810, %v806
    %v1127 = vpack.c.b16 %v811, %v807
    %v1128 = vpack.c.b16 %v812, %v808
    %v1129 = vpack.c.b16 %v813, %v809
    %v1130 = vpack.c.b16 %v818, %v814
    %v1131 = vpack.c.b16 %v819, %v815
    %v1132 = vpack.c.b16 %v820, %v816
    %v1133 = vpack.c.b16 %v821, %v817
    %v1134 = vpack.c.b16 %v826, %v822
    %v1135 = vpack.c.b16 %v827, %v823
    %v1136 = vpack.c.b16 %v828, %v824
    %v1137 = vpack.c.b16 %v829, %v825
    %v1138 = vpack.c.b16 %v834, %v830
    %v1139 = vpack.c.b16 %v835, %v831
    %v1140 = vpack.c.b16 %v836, %v832
    %v1141 = vpack.c.b16 %v837, %v833
    %v1142 = vpack.c.b16 %v842, %v838
    %v1143 = vpack.c.b16 %v843, %v839
    %v1144 = vpack.c.b16 %v844, %v840
    %v1145 = vpack.c.b16 %v845, %v841
    %v1146 = vpack.c.b16 %v850, %v846
    %v1147 = vpack.c.b16 %v851, %v847
    %v1148 = vpack.c.b16 %v852, %v848
    %v1149 = vpack.c.b16 %v853, %v849
    %v1150 = vpack.c.b16 %v858, %v854
    %v1151 = vpack.c.b16 %v859, %v855
    %v1152 = vpack.c.b16 %v860, %v856
    %v1153 = vpack.c.b16 %v861, %v857
    %v1154 = vpack.c.b16 %v866, %v862
    %v1155 = vpack.c.b16 %v867, %v863
    %v1156 = vpack.c.b16 %v868, %v864
    %v1157 = vpack.c.b16 %v869, %v865
    %v1158 = vpack.c.b16 %v874, %v870
    %v1159 = vpack.c.b16 %v875, %v871
    %v1160 = vpack.c.b16 %v876, %v872
    %v1161 = vpack.c.b16 %v877, %v873
    %v1162 = vpack.c.b16 %v882, %v878
    %v1163 = vpack.c.b16 %v883, %v879
    %v1164 = vpack.c.b16 %v884, %v880
    %v1165 = vpack.c.b16 %v885, %v881
    %v1166 = vpack.c.b16 %v890, %v886
    %v1167 = vpack.c.b16 %v891, %v887
    %v1168 = vpack.c.b16 %v892, %v888
    %v1169 = vpack.c.b16 %v893, %v889
    %v1170 = vpack.c.b16 %v898, %v894
    %v1171 = vpack.c.b16 %v899, %v895
    %v1172 = vpack.c.b16 %v900, %v896
    %v1173 = vpack.c.b16 %v901, %v897
    %v1174 = vpack.c.b16 %v906, %v902
    %v1175 = vpack.c.b16 %v907, %v903
    %v1176 = vpack.c.b16 %v908, %v904
    %v1177 = vpack.c.b16 %v909, %v905
    %v1178 = vpack.c.b16 %v914, %v910
    %v1179 = vpack.c.b16 %v915, %v911
    %v1180 = vpack.c.b16 %v916, %v912
    %v1181 = vpack.c.b16 %v917, %v913
    %v1182 = vpack.c.b16 %v922, %v918
    %v1183 = vpack.c.b16 %v923, %v919
    %v1184 = vpack.c.b16 %v924, %v920
    %v1185 = vpack.c.b16 %v925, %v921
    %v1186 = vpack.c.b16 %v930, %v926
    %v1187 = vpack.c.b16 %v931, %v927
    %v1188 = vpack.c.b16 %v932, %v928
    %v1189 = vpack.c.b16 %v933, %v929
    %v1190 = vpack.c.b16 %v938, %v934
    %v1191 = vpack.c.b16 %v939, %v935
    %v1192 = vpack.c.b16 %v940, %v936
    %v1193 = vpack.c.b16 %v941, %v937
    %v1194 = vpack.c.b16 %v946, %v942
    %v1195 = vpack.c.b16 %v947, %v943
    %v1196 = vpack.c.b16 %v948, %v944
    %v1197 = vpack.c.b16 %v949, %v945
    %v1198 = vpack.c.b16 %v954, %v950
    %v1199 = vpack.c.b16 %v955, %v951
    %v1200 = vpack.c.b16 %v956, %v952
    %v1201 = vpack.c.b16 %v957, %v953
    %v1202 = vpack.c.b16 %v962, %v958
    %v1203 = vpack.c.b16 %v963, %v959
    %v1204 = vpack.c.b16 %v964, %v960
    %v1205 = vpack.c.b16 %v965, %v961
    %v1206 = vpack.c.b16 %v970, %v966
    %v1207 = vpack.c.b16 %v971, %v967
    %v1208 = vpack.c.b16 %v972, %v968
    %v1209 = vpack.c.b16 %v973, %v969
    %v1210 = vpack.c.b16 %v978, %v974
    %v1211 = vpack.c.b16 %v979, %v975
    %v1212 = vpack.c.b16 %v980, %v976
    %v1213 = vpack.c.b16 %v981, %v977
    %v1214 = vpack.c.b16 %v986, %v982
    %v1215 = vpack.c.b16 %v987, %v983
    %v1216 = vpack.c.b16 %v988, %v984
    %v1217 = vpack.c.b16 %v989, %v985
    %v1218 = vpack.c.b16 %v994, %v990
    %v1219 = vpack.c.b16 %v995, %v991
    %v1220 = vpack.c.b16 %v996, %v992
    %v1221 = vpack.c.b16 %v997, %v993
    %1446 = vmatprep.subr.bf16.mxu0 %v999
    %1447 = vmatpush1.bf16.msra.mxu0 %v998
    %1448 = vmatprep.subr.bf16.mxu0 %v1003
    %1449 = vmatpush1.bf16.msra.mxu0 %v1002
    %1450 = vmatprep.subr.bf16.mxu0 %v1007
    %1451 = vmatpush1.bf16.msra.mxu0 %v1006
    %1452 = vmatprep.subr.bf16.mxu0 %v1011
    %1453 = vmatpush1.bf16.msra.mxu0 %v1010
    %1454 = vmatprep.subr.bf16.mxu0 %v1015
    %1455 = vmatpush1.bf16.msra.mxu0 %v1014
    %1456 = vmatprep.subr.bf16.mxu0 %v1019
    %1457 = vmatpush1.bf16.msra.mxu0 %v1018
    %1458 = vmatprep.subr.bf16.mxu0 %v1023
    %1459 = vmatpush1.bf16.msra.mxu0 %v1022
    %1460 = vmatprep.subr.bf16.mxu0 %v1027
    %1461 = vmatpush1.bf16.msra.mxu0 %v1026
    %1462 = vmatprep.subr.bf16.mxu0 %v1031
    %1463 = vmatpush1.bf16.msra.mxu0 %v1030
    %1464 = vmatprep.subr.bf16.mxu0 %v1035
    %1465 = vmatpush1.bf16.msra.mxu0 %v1034
    %1466 = vmatprep.subr.bf16.mxu0 %v1039
    %1467 = vmatpush1.bf16.msra.mxu0 %v1038
    %1468 = vmatprep.subr.bf16.mxu0 %v1043
    %1469 = vmatpush1.bf16.msra.mxu0 %v1042
    %1470 = vmatprep.subr.bf16.mxu0 %v1047
    %1471 = vmatpush1.bf16.msra.mxu0 %v1046
    %1472 = vmatprep.subr.bf16.mxu0 %v1051
    %1473 = vmatpush1.bf16.msra.mxu0 %v1050
    %1474 = vmatprep.subr.bf16.mxu0 %v1055
    %1475 = vmatpush1.bf16.msra.mxu0 %v1054
    %1476 = vmatprep.subr.bf16.mxu0 %v1059
    %1477 = vmatpush1.bf16.msra.mxu0 %v1058
    %1478 = vmatprep.mubr.bf16.mxu0 %v74
    %1479 = vmatmul.mubr.bf16.gmra.mrb[0].mxu0 %v73
    %v1480 = vpop.f32.mrb[0].mxu0
    %v1481 = vadd.f32 %v309, %v1480
    %v1482 = vpop.f32.mrb[0].mxu0
    %v1483 = vadd.f32 %v313, %v1482
    %v1484 = vpop.f32.mrb[0].mxu0
    %v1485 = vpop.f32.mrb[0].mxu0
    %1486 = vdwg.mxu0
    %1487 = vmatprep.subr.bf16.mxu0 %v1063
    %1488 = vmatpush1.bf16.msra.mxu0 %v1062
    %1489 = vmatprep.subr.bf16.mxu0 %v1067
    %1490 = vmatpush1.bf16.msra.mxu0 %v1066
    %1491 = vmatprep.subr.bf16.mxu0 %v1071
    %1492 = vmatpush1.bf16.msra.mxu0 %v1070
    %1493 = vmatprep.subr.bf16.mxu0 %v1075
    %1494 = vmatpush1.bf16.msra.mxu0 %v1074
    %1495 = vmatprep.subr.bf16.mxu0 %v1079
    %1496 = vmatpush1.bf16.msra.mxu0 %v1078
    %1497 = vmatprep.subr.bf16.mxu0 %v1083
    %1498 = vmatpush1.bf16.msra.mxu0 %v1082
    %1499 = vmatprep.subr.bf16.mxu0 %v1087
    %1500 = vmatpush1.bf16.msra.mxu0 %v1086
    %1501 = vmatprep.subr.bf16.mxu0 %v1091
    %1502 = vmatpush1.bf16.msra.mxu0 %v1090
    %1503 = vmatprep.subr.bf16.mxu0 %v1095
    %1504 = vmatpush1.bf16.msra.mxu0 %v1094
    %1505 = vmatprep.subr.bf16.mxu0 %v1099
    %1506 = vmatpush1.bf16.msra.mxu0 %v1098
    %1507 = vmatprep.subr.bf16.mxu0 %v1103
    %1508 = vmatpush1.bf16.msra.mxu0 %v1102
    %1509 = vmatprep.subr.bf16.mxu0 %v1107
    %1510 = vmatpush1.bf16.msra.mxu0 %v1106
    %1511 = vmatprep.subr.bf16.mxu0 %v1111
    %1512 = vmatpush1.bf16.msra.mxu0 %v1110
    %1513 = vmatprep.subr.bf16.mxu0 %v1115
    %1514 = vmatpush1.bf16.msra.mxu0 %v1114
    %1515 = vmatprep.subr.bf16.mxu0 %v1119
    %1516 = vmatpush1.bf16.msra.mxu0 %v1118
    %1517 = vmatprep.subr.bf16.mxu0 %v1123
    %1518 = vmatpush1.bf16.msra.mxu0 %v1122
    %1519 = vmatprep.mubr.bf16.mxu0 %v76
    %1520 = vmatmul.mubr.bf16.gmra.mrb[0].mxu0 %v75
    %v1521 = vpop.f32.mrb[0].mxu0
    %v1522 = vadd.f32 %v1481, %v1521
    %v1523 = vpop.f32.mrb[0].mxu0
    %v1524 = vadd.f32 %v1483, %v1523
    %v1525 = vpop.f32.mrb[0].mxu0
    %v1526 = vpop.f32.mrb[0].mxu0
    %1527 = vdwg.mxu0
    %1528 = vmatprep.subr.bf16.mxu0 %v1127
    %1529 = vmatpush1.bf16.msra.mxu0 %v1126
    %1530 = vmatprep.subr.bf16.mxu0 %v1131
    %1531 = vmatpush1.bf16.msra.mxu0 %v1130
    %1532 = vmatprep.subr.bf16.mxu0 %v1135
    %1533 = vmatpush1.bf16.msra.mxu0 %v1134
    %1534 = vmatprep.subr.bf16.mxu0 %v1139
    %1535 = vmatpush1.bf16.msra.mxu0 %v1138
    %1536 = vmatprep.subr.bf16.mxu0 %v1143
    %1537 = vmatpush1.bf16.msra.mxu0 %v1142
    %1538 = vmatprep.subr.bf16.mxu0 %v1147
    %1539 = vmatpush1.bf16.msra.mxu0 %v1146
    %1540 = vmatprep.subr.bf16.mxu0 %v1151
    %1541 = vmatpush1.bf16.msra.mxu0 %v1150
    %1542 = vmatprep.subr.bf16.mxu0 %v1155
    %1543 = vmatpush1.bf16.msra.mxu0 %v1154
    %1544 = vmatprep.subr.bf16.mxu0 %v1159
    %1545 = vmatpush1.bf16.msra.mxu0 %v1158
    %1546 = vmatprep.subr.bf16.mxu0 %v1163
    %1547 = vmatpush1.bf16.msra.mxu0 %v1162
    %1548 = vmatprep.subr.bf16.mxu0 %v1167
    %1549 = vmatpush1.bf16.msra.mxu0 %v1166
    %1550 = vmatprep.subr.bf16.mxu0 %v1171
    %1551 = vmatpush1.bf16.msra.mxu0 %v1170
    %1552 = vmatprep.subr.bf16.mxu0 %v1175
    %1553 = vmatpush1.bf16.msra.mxu0 %v1174
    %1554 = vmatprep.subr.bf16.mxu0 %v1179
    %1555 = vmatpush1.bf16.msra.mxu0 %v1178
    %1556 = vmatprep.subr.bf16.mxu0 %v1183
    %1557 = vmatpush1.bf16.msra.mxu0 %v1182
    %1558 = vmatprep.subr.bf16.mxu0 %v1187
    %1559 = vmatpush1.bf16.msra.mxu0 %v1186
    %1560 = vmatprep.mubr.bf16.mxu0 %v78
    %1561 = vmatmul.mubr.bf16.gmra.mrb[0].mxu0 %v77
    %v1562 = vpop.f32.mrb[0].mxu0
    %v1563 = vadd.f32 %v1522, %v1562
    %v1564 = vpop.f32.mrb[0].mxu0
    %v1565 = vadd.f32 %v1524, %v1564
    %v1566 = vpop.f32.mrb[0].mxu0
    %v1567 = vpop.f32.mrb[0].mxu0
    %1568 = vdwg.mxu0
    %1569 = vmatprep.subr.bf16.mxu0 %v1191
    %1570 = vmatpush1.bf16.msra.mxu0 %v1190
    %1571 = vmatprep.subr.bf16.mxu0 %v1195
    %1572 = vmatpush1.bf16.msra.mxu0 %v1194
    %1573 = vmatprep.subr.bf16.mxu0 %v1199
    %1574 = vmatpush1.bf16.msra.mxu0 %v1198
    %1575 = vmatprep.subr.bf16.mxu0 %v1203
    %1576 = vmatpush1.bf16.msra.mxu0 %v1202
    %1577 = vmatprep.subr.bf16.mxu0 %v1207
    %1578 = vmatpush1.bf16.msra.mxu0 %v1206
    %1579 = vmatprep.subr.bf16.mxu0 %v1211
    %1580 = vmatpush1.bf16.msra.mxu0 %v1210
    %1581 = vmatprep.subr.bf16.mxu0 %v1215
    %1582 = vmatpush1.bf16.msra.mxu0 %v1214
    %1583 = vmatprep.subr.bf16.mxu0 %v1219
    %1584 = vmatpush1.bf16.msra.mxu0 %v1218
    %1585 = vmatprep.subr.bf16.mxu0 0
    %1586 = vmatpush1.bf16.msra.mxu0 0
    %1587 = vmatprep.subr.bf16.mxu0 0
    %1588 = vmatpush1.bf16.msra.mxu0 0
    %1589 = vmatprep.subr.bf16.mxu0 0
    %1590 = vmatpush1.bf16.msra.mxu0 0
    %1591 = vmatprep.subr.bf16.mxu0 0
    %1592 = vmatpush1.bf16.msra.mxu0 0
    %1593 = vmatprep.subr.bf16.mxu0 0
    %1594 = vmatpush1.bf16.msra.mxu0 0
    %1595 = vmatprep.subr.bf16.mxu0 0
    %1596 = vmatpush1.bf16.msra.mxu0 0
    %1597 = vmatprep.subr.bf16.mxu0 0
    %1598 = vmatpush1.bf16.msra.mxu0 0
    %1599 = vmatprep.subr.bf16.mxu0 0
    %1600 = vmatpush1.bf16.msra.mxu0 0
    %1601 = vmatprep.mubr.bf16.mxu0 0
    %1602 = vmatmul.mubr.bf16.gmra.mrb[0].mxu0 %v79
    %v1603 = vpop.f32.mrb[0].mxu0
    %v1604 = vadd.f32 %v1563, %v1603
    %v1605 = vpop.f32.mrb[0].mxu0
    %v1606 = vadd.f32 %v1565, %v1605
    %v1607 = vpop.f32.mrb[0].mxu0
    %v1608 = vpop.f32.mrb[0].mxu0
    %1609 = vdwg.mxu0
    %1610 = vmatprep.subr.bf16.mxu0 %v1001
    %1611 = vmatpush1.bf16.msra.mxu0 %v1000
    %1612 = vmatprep.subr.bf16.mxu0 %v1005
    %1613 = vmatpush1.bf16.msra.mxu0 %v1004
    %1614 = vmatprep.subr.bf16.mxu0 %v1009
    %1615 = vmatpush1.bf16.msra.mxu0 %v1008
    %1616 = vmatprep.subr.bf16.mxu0 %v1013
    %1617 = vmatpush1.bf16.msra.mxu0 %v1012
    %1618 = vmatprep.subr.bf16.mxu0 %v1017
    %1619 = vmatpush1.bf16.msra.mxu0 %v1016
    %1620 = vmatprep.subr.bf16.mxu0 %v1021
    %1621 = vmatpush1.bf16.msra.mxu0 %v1020
    %1622 = vmatprep.subr.bf16.mxu0 %v1025
    %1623 = vmatpush1.bf16.msra.mxu0 %v1024
    %1624 = vmatprep.subr.bf16.mxu0 %v1029
    %1625 = vmatpush1.bf16.msra.mxu0 %v1028
    %1626 = vmatprep.subr.bf16.mxu0 %v1033
    %1627 = vmatpush1.bf16.msra.mxu0 %v1032
    %1628 = vmatprep.subr.bf16.mxu0 %v1037
    %1629 = vmatpush1.bf16.msra.mxu0 %v1036
    %1630 = vmatprep.subr.bf16.mxu0 %v1041
    %1631 = vmatpush1.bf16.msra.mxu0 %v1040
    %1632 = vmatprep.subr.bf16.mxu0 %v1045
    %1633 = vmatpush1.bf16.msra.mxu0 %v1044
    %1634 = vmatprep.subr.bf16.mxu0 %v1049
    %1635 = vmatpush1.bf16.msra.mxu0 %v1048
    %1636 = vmatprep.subr.bf16.mxu0 %v1053
    %1637 = vmatpush1.bf16.msra.mxu0 %v1052
    %1638 = vmatprep.subr.bf16.mxu0 %v1057
    %1639 = vmatpush1.bf16.msra.mxu0 %v1056
    %1640 = vmatprep.subr.bf16.mxu0 %v1061
    %1641 = vmatpush1.bf16.msra.mxu0 %v1060
    %1642 = vmatprep.mubr.bf16.mxu0 %v74
    %1643 = vmatmul.mubr.bf16.gmra.mrb[0].mxu0 %v73
    %v1644 = vpop.f32.mrb[0].mxu0
    %v1645 = vadd.f32 %v317, %v1644
    %v1646 = vpop.f32.mrb[0].mxu0
    %v1647 = vadd.f32 %v321, %v1646
    %v1648 = vpop.f32.mrb[0].mxu0
    %v1649 = vpop.f32.mrb[0].mxu0
    %1650 = vdwg.mxu0
    %1651 = vmatprep.subr.bf16.mxu0 %v1065
    %1652 = vmatpush1.bf16.msra.mxu0 %v1064
    %1653 = vmatprep.subr.bf16.mxu0 %v1069
    %1654 = vmatpush1.bf16.msra.mxu0 %v1068
    %1655 = vmatprep.subr.bf16.mxu0 %v1073
    %1656 = vmatpush1.bf16.msra.mxu0 %v1072
    %1657 = vmatprep.subr.bf16.mxu0 %v1077
    %1658 = vmatpush1.bf16.msra.mxu0 %v1076
    %1659 = vmatprep.subr.bf16.mxu0 %v1081
    %1660 = vmatpush1.bf16.msra.mxu0 %v1080
    %1661 = vmatprep.subr.bf16.mxu0 %v1085
    %1662 = vmatpush1.bf16.msra.mxu0 %v1084
    %1663 = vmatprep.subr.bf16.mxu0 %v1089
    %1664 = vmatpush1.bf16.msra.mxu0 %v1088
    %1665 = vmatprep.subr.bf16.mxu0 %v1093
    %1666 = vmatpush1.bf16.msra.mxu0 %v1092
    %1667 = vmatprep.subr.bf16.mxu0 %v1097
    %1668 = vmatpush1.bf16.msra.mxu0 %v1096
    %1669 = vmatprep.subr.bf16.mxu0 %v1101
    %1670 = vmatpush1.bf16.msra.mxu0 %v1100
    %1671 = vmatprep.subr.bf16.mxu0 %v1105
    %1672 = vmatpush1.bf16.msra.mxu0 %v1104
    %1673 = vmatprep.subr.bf16.mxu0 %v1109
    %1674 = vmatpush1.bf16.msra.mxu0 %v1108
    %1675 = vmatprep.subr.bf16.mxu0 %v1113
    %1676 = vmatpush1.bf16.msra.mxu0 %v1112
    %1677 = vmatprep.subr.bf16.mxu0 %v1117
    %1678 = vmatpush1.bf16.msra.mxu0 %v1116
    %1679 = vmatprep.subr.bf16.mxu0 %v1121
    %1680 = vmatpush1.bf16.msra.mxu0 %v1120
    %1681 = vmatprep.subr.bf16.mxu0 %v1125
    %1682 = vmatpush1.bf16.msra.mxu0 %v1124
    %1683 = vmatprep.mubr.bf16.mxu0 %v76
    %1684 = vmatmul.mubr.bf16.gmra.mrb[0].mxu0 %v75
    %v1685 = vpop.f32.mrb[0].mxu0
    %v1686 = vadd.f32 %v1645, %v1685
    %v1687 = vpop.f32.mrb[0].mxu0
    %v1688 = vadd.f32 %v1647, %v1687
    %v1689 = vpop.f32.mrb[0].mxu0
    %v1690 = vpop.f32.mrb[0].mxu0
    %1691 = vdwg.mxu0
    %1692 = vmatprep.subr.bf16.mxu0 %v1129
    %1693 = vmatpush1.bf16.msra.mxu0 %v1128
    %1694 = vmatprep.subr.bf16.mxu0 %v1133
    %1695 = vmatpush1.bf16.msra.mxu0 %v1132
    %1696 = vmatprep.subr.bf16.mxu0 %v1137
    %1697 = vmatpush1.bf16.msra.mxu0 %v1136
    %1698 = vmatprep.subr.bf16.mxu0 %v1141
    %1699 = vmatpush1.bf16.msra.mxu0 %v1140
    %1700 = vmatprep.subr.bf16.mxu0 %v1145
    %1701 = vmatpush1.bf16.msra.mxu0 %v1144
    %1702 = vmatprep.subr.bf16.mxu0 %v1149
    %1703 = vmatpush1.bf16.msra.mxu0 %v1148
    %1704 = vmatprep.subr.bf16.mxu0 %v1153
    %1705 = vmatpush1.bf16.msra.mxu0 %v1152
    %1706 = vmatprep.subr.bf16.mxu0 %v1157
    %1707 = vmatpush1.bf16.msra.mxu0 %v1156
    %1708 = vmatprep.subr.bf16.mxu0 %v1161
    %1709 = vmatpush1.bf16.msra.mxu0 %v1160
    %1710 = vmatprep.subr.bf16.mxu0 %v1165
    %1711 = vmatpush1.bf16.msra.mxu0 %v1164
    %1712 = vmatprep.subr.bf16.mxu0 %v1169
    %1713 = vmatpush1.bf16.msra.mxu0 %v1168
    %1714 = vmatprep.subr.bf16.mxu0 %v1173
    %1715 = vmatpush1.bf16.msra.mxu0 %v1172
    %1716 = vmatprep.subr.bf16.mxu0 %v1177
    %1717 = vmatpush1.bf16.msra.mxu0 %v1176
    %1718 = vmatprep.subr.bf16.mxu0 %v1181
    %1719 = vmatpush1.bf16.msra.mxu0 %v1180
    %1720 = vmatprep.subr.bf16.mxu0 %v1185
    %1721 = vmatpush1.bf16.msra.mxu0 %v1184
    %1722 = vmatprep.subr.bf16.mxu0 %v1189
    %1723 = vmatpush1.bf16.msra.mxu0 %v1188
    %1724 = vmatprep.mubr.bf16.mxu0 %v78
    %1725 = vmatmul.mubr.bf16.gmra.mrb[0].mxu0 %v77
    %v1726 = vpop.f32.mrb[0].mxu0
    %v1727 = vadd.f32 %v1686, %v1726
    %v1728 = vpop.f32.mrb[0].mxu0
    %v1729 = vadd.f32 %v1688, %v1728
    %v1730 = vpop.f32.mrb[0].mxu0
    %v1731 = vpop.f32.mrb[0].mxu0
    %1732 = vdwg.mxu0
    %1733 = vmatprep.subr.bf16.mxu0 %v1193
    %1734 = vmatpush1.bf16.msra.mxu0 %v1192
    %1735 = vmatprep.subr.bf16.mxu0 %v1197
    %1736 = vmatpush1.bf16.msra.mxu0 %v1196
    %1737 = vmatprep.subr.bf16.mxu0 %v1201
    %1738 = vmatpush1.bf16.msra.mxu0 %v1200
    %1739 = vmatprep.subr.bf16.mxu0 %v1205
    %1740 = vmatpush1.bf16.msra.mxu0 %v1204
    %1741 = vmatprep.subr.bf16.mxu0 %v1209
    %1742 = vmatpush1.bf16.msra.mxu0 %v1208
    %1743 = vmatprep.subr.bf16.mxu0 %v1213
    %1744 = vmatpush1.bf16.msra.mxu0 %v1212
    %1745 = vmatprep.subr.bf16.mxu0 %v1217
    %1746 = vmatpush1.bf16.msra.mxu0 %v1216
    %1747 = vmatprep.subr.bf16.mxu0 %v1221
    %1748 = vmatpush1.bf16.msra.mxu0 %v1220
    %1749 = vmatprep.subr.bf16.mxu0 0
    %1750 = vmatpush1.bf16.msra.mxu0 0
    %1751 = vmatprep.subr.bf16.mxu0 0
    %1752 = vmatpush1.bf16.msra.mxu0 0
    %1753 = vmatprep.subr.bf16.mxu0 0
    %1754 = vmatpush1.bf16.msra.mxu0 0
    %1755 = vmatprep.subr.bf16.mxu0 0
    %1756 = vmatpush1.bf16.msra.mxu0 0
    %1757 = vmatprep.subr.bf16.mxu0 0
    %1758 = vmatpush1.bf16.msra.mxu0 0
    %1759 = vmatprep.subr.bf16.mxu0 0
    %1760 = vmatpush1.bf16.msra.mxu0 0
    %1761 = vmatprep.subr.bf16.mxu0 0
    %1762 = vmatpush1.bf16.msra.mxu0 0
    %1763 = vmatprep.subr.bf16.mxu0 0
    %1764 = vmatpush1.bf16.msra.mxu0 0
    %1765 = vmatprep.mubr.bf16.mxu0 0
    %1766 = vmatmul.mubr.bf16.gmra.mrb[0].mxu0 %v79
    %v1767 = vpop.f32.mrb[0].mxu0
    %v1768 = vadd.f32 %v1727, %v1767
    %v1769 = vpop.f32.mrb[0].mxu0
    %v1770 = vadd.f32 %v1729, %v1769
    %v1771 = vpop.f32.mrb[0].mxu0
    %v1772 = vpop.f32.mrb[0].mxu0
    %1773 = vdwg.mxu0
    %v1774 = vmax.f32 %v1604, 0.0
    %v1775 = vmax.f32 %v1606, 0.0
    %v1776 = vmax.f32 %v1768, 0.0
    %v1777 = vmax.f32 %v1770, 0.0
    %v1778 = vpack.c.bf16 %v1774, %v1774
    %v1779 = vpack.c.bf16 %v1775, %v1775
    %v1780 = vpack.c.bf16 %v1776, %v1776
    %v1781 = vpack.c.bf16 %v1777, %v1777
    %v1782 = vld [vmem:[%s4] sm:$0xf]
    %v1783 = vld [vmem:[%s4 + $0x4] sm:$0xf]
    %v1784 = vld [vmem:[%s4 + $0x8] sm:$0xf]
    %v1785 = vld [vmem:[%s4 + $0xc] sm:$0xf]
    %v1786 = vld [vmem:[%s4 + $0x10] sm:$0xf]
    %v1787 = vld [vmem:[%s4 + $0x14] sm:$0xf]
    %v1788 = vld [vmem:[%s4 + $0x18] sm:$0xf]
    %v1789 = vld [vmem:[%s4 + $0x1c] sm:$0xf]
    %v1790 = vld [vmem:[%s4 + $0x20] sm:$0xf]
    %v1791 = vld [vmem:[%s4 + $0x24] sm:$0xf]
    %v1792 = vld [vmem:[%s4 + $0x28] sm:$0xf]
    %v1793 = vld [vmem:[%s4 + $0x2c] sm:$0xf]
    %v1794 = vld [vmem:[%s4 + $0x30] sm:$0xf]
    %v1795 = vld [vmem:[%s4 + $0x34] sm:$0xf]
    %v1796 = vld [vmem:[%s4 + $0x38] sm:$0xf]
    %v1797 = vld [vmem:[%s4 + $0x3c] sm:$0xf]
    %v1798 = vld [vmem:[%s4 + $0x40] sm:$0xf]
    %v1799 = vld [vmem:[%s4 + $0x44] sm:$0xf]
    %v1800 = vld [vmem:[%s4 + $0x48] sm:$0xf]
    %v1801 = vld [vmem:[%s4 + $0x4c] sm:$0xf]
    %v1802 = vld [vmem:[%s4 + $0x50] sm:$0xf]
    %v1803 = vld [vmem:[%s4 + $0x54] sm:$0xf]
    %v1804 = vld [vmem:[%s4 + $0x58] sm:$0xf]
    %v1805 = vld [vmem:[%s4 + $0x5c] sm:$0xf]
    %v1806 = vld [vmem:[%s4 + $0x60] sm:$0xf]
    %v1807 = vld [vmem:[%s4 + $0x64] sm:$0xf]
    %v1808 = vld [vmem:[%s4 + $0x68] sm:$0xf]
    %v1809 = vld [vmem:[%s4 + $0x6c] sm:$0xf]
    %v1810 = vld [vmem:[%s4 + $0x70] sm:$0xf]
    %v1811 = vld [vmem:[%s4 + $0x74] sm:$0xf]
    %v1812 = vld [vmem:[%s4 + $0x78] sm:$0xf]
    %v1813 = vld [vmem:[%s4 + $0x7c] sm:$0xf]
    %v1814 = vld [vmem:[%s4 + $0x80] sm:$0xf]
    %v1815 = vld [vmem:[%s4 + $0x84] sm:$0xf]
    %v1816 = vld [vmem:[%s4 + $0x88] sm:$0xf]
    %v1817 = vld [vmem:[%s4 + $0x8c] sm:$0xf]
    %v1818 = vld [vmem:[%s4 + $0x90] sm:$0xf]
    %v1819 = vld [vmem:[%s4 + $0x94] sm:$0xf]
    %v1820 = vld [vmem:[%s4 + $0x98] sm:$0xf]
    %v1821 = vld [vmem:[%s4 + $0x9c] sm:$0xf]
    %v1822 = vld [vmem:[%s4 + $0xa0] sm:$0xf]
    %v1823 = vld [vmem:[%s4 + $0xa4] sm:$0xf]
    %v1824 = vld [vmem:[%s4 + $0xa8] sm:$0xf]
    %v1825 = vld [vmem:[%s4 + $0xac] sm:$0xf]
    %v1826 = vld [vmem:[%s4 + $0xb0] sm:$0xf]
    %v1827 = vld [vmem:[%s4 + $0xb4] sm:$0xf]
    %v1828 = vld [vmem:[%s4 + $0xb8] sm:$0xf]
    %v1829 = vld [vmem:[%s4 + $0xbc] sm:$0xf]
    %v1830 = vld [vmem:[%s4 + $0xc0] sm:$0xf]
    %v1831 = vld [vmem:[%s4 + $0xc4] sm:$0xf]
    %v1832 = vld [vmem:[%s4 + $0xc8] sm:$0xf]
    %v1833 = vld [vmem:[%s4 + $0xcc] sm:$0xf]
    %v1834 = vld [vmem:[%s4 + $0xd0] sm:$0xf]
    %v1835 = vld [vmem:[%s4 + $0xd4] sm:$0xf]
    %v1836 = vld [vmem:[%s4 + $0xd8] sm:$0xf]
    %v1837 = vld [vmem:[%s4 + $0xdc] sm:$0xf]
    %v1838 = vld [vmem:[%s4 + $0xe0] sm:$0xf]
    %v1839 = vld [vmem:[%s4 + $0xe4] sm:$0xf]
    %v1840 = vld [vmem:[%s4 + $0xe8] sm:$0xf]
    %v1841 = vld [vmem:[%s4 + $0xec] sm:$0xf]
    %v1842 = vld [vmem:[%s4 + $0xf0] sm:$0xf]
    %v1843 = vld [vmem:[%s4 + $0xf4] sm:$0xf]
    %v1844 = vld [vmem:[%s4 + $0xf8] sm:$0xf]
    %v1845 = vld [vmem:[%s4 + $0xfc] sm:$0xf]
    %v1846 = vld [vmem:[%s5] sm:$0x1]
    %v1848 = vlaneseq
    %v1849 = vshrl.u32 %v1848, 7
    %v1850 = vsub.s32 0, %v1849
    %v1851 = vrot.slane %v1846, %v1850
    %v1917 = vunpack.c.l.b16 %v1782
    %v1918 = vunpack.c.l.b16 %v1783
    %v1919 = vunpack.c.l.b16 %v1784
    %v1920 = vunpack.c.l.b16 %v1785
    %v1921 = vunpack.c.l.b16 %v1786
    %v1922 = vunpack.c.l.b16 %v1787
    %v1923 = vunpack.c.l.b16 %v1788
    %v1924 = vunpack.c.l.b16 %v1789
    %v1925 = vunpack.c.l.b16 %v1790
    %v1926 = vunpack.c.l.b16 %v1791
    %v1927 = vunpack.c.l.b16 %v1792
    %v1928 = vunpack.c.l.b16 %v1793
    %v1929 = vunpack.c.l.b16 %v1794
    %v1930 = vunpack.c.l.b16 %v1795
    %v1931 = vunpack.c.l.b16 %v1796
    %v1932 = vunpack.c.l.b16 %v1797
    %v1933 = vunpack.c.l.b16 %v1798
    %v1934 = vunpack.c.l.b16 %v1799
    %v1935 = vunpack.c.l.b16 %v1800
    %v1936 = vunpack.c.l.b16 %v1801
    %v1937 = vunpack.c.l.b16 %v1802
    %v1938 = vunpack.c.l.b16 %v1803
    %v1939 = vunpack.c.l.b16 %v1804
    %v1940 = vunpack.c.l.b16 %v1805
    %v1941 = vunpack.c.l.b16 %v1806
    %v1942 = vunpack.c.l.b16 %v1807
    %v1943 = vunpack.c.l.b16 %v1808
    %v1944 = vunpack.c.l.b16 %v1809
    %v1945 = vunpack.c.l.b16 %v1810
    %v1946 = vunpack.c.l.b16 %v1811
    %v1947 = vunpack.c.l.b16 %v1812
    %v1948 = vunpack.c.l.b16 %v1813
    %v1949 = vunpack.c.l.b16 %v1814
    %v1950 = vunpack.c.l.b16 %v1815
    %v1951 = vunpack.c.l.b16 %v1816
    %v1952 = vunpack.c.l.b16 %v1817
    %v1953 = vunpack.c.l.b16 %v1818
    %v1954 = vunpack.c.l.b16 %v1819
    %v1955 = vunpack.c.l.b16 %v1820
    %v1956 = vunpack.c.l.b16 %v1821
    %v1957 = vunpack.c.l.b16 %v1822
    %v1958 = vunpack.c.l.b16 %v1823
    %v1959 = vunpack.c.l.b16 %v1824
    %v1960 = vunpack.c.l.b16 %v1825
    %v1961 = vunpack.c.l.b16 %v1826
    %v1962 = vunpack.c.l.b16 %v1827
    %v1963 = vunpack.c.l.b16 %v1828
    %v1964 = vunpack.c.l.b16 %v1829
    %v1965 = vunpack.c.l.b16 %v1830
    %v1966 = vunpack.c.l.b16 %v1831
    %v1967 = vunpack.c.l.b16 %v1832
    %v1968 = vunpack.c.l.b16 %v1833
    %v1969 = vunpack.c.l.b16 %v1834
    %v1970 = vunpack.c.l.b16 %v1835
    %v1971 = vunpack.c.l.b16 %v1836
    %v1972 = vunpack.c.l.b16 %v1837
    %v1973 = vunpack.c.l.b16 %v1838
    %v1974 = vunpack.c.l.b16 %v1839
    %v1975 = vunpack.c.l.b16 %v1840
    %v1976 = vunpack.c.l.b16 %v1841
    %v1977 = vunpack.c.l.b16 %v1842
    %v1978 = vunpack.c.l.b16 %v1843
    %v1979 = vunpack.c.l.b16 %v1844
    %v1980 = vunpack.c.l.b16 %v1845
    %v1981 = vpack.c.b16 %v1918, %v1917
    %v1982 = vpack.c.b16 %v1920, %v1919
    %v1983 = vpack.c.b16 %v1922, %v1921
    %v1984 = vpack.c.b16 %v1924, %v1923
    %v1985 = vpack.c.b16 %v1926, %v1925
    %v1986 = vpack.c.b16 %v1928, %v1927
    %v1987 = vpack.c.b16 %v1930, %v1929
    %v1988 = vpack.c.b16 %v1932, %v1931
    %v1989 = vpack.c.b16 %v1934, %v1933
    %v1990 = vpack.c.b16 %v1936, %v1935
    %v1991 = vpack.c.b16 %v1938, %v1937
    %v1992 = vpack.c.b16 %v1940, %v1939
    %v1993 = vpack.c.b16 %v1942, %v1941
    %v1994 = vpack.c.b16 %v1944, %v1943
    %v1995 = vpack.c.b16 %v1946, %v1945
    %v1996 = vpack.c.b16 %v1948, %v1947
    %v1997 = vpack.c.b16 %v1950, %v1949
    %v1998 = vpack.c.b16 %v1952, %v1951
    %v1999 = vpack.c.b16 %v1954, %v1953
    %v2000 = vpack.c.b16 %v1956, %v1955
    %v2001 = vpack.c.b16 %v1958, %v1957
    %v2002 = vpack.c.b16 %v1960, %v1959
    %v2003 = vpack.c.b16 %v1962, %v1961
    %v2004 = vpack.c.b16 %v1964, %v1963
    %v2005 = vpack.c.b16 %v1966, %v1965
    %v2006 = vpack.c.b16 %v1968, %v1967
    %v2007 = vpack.c.b16 %v1970, %v1969
    %v2008 = vpack.c.b16 %v1972, %v1971
    %v2009 = vpack.c.b16 %v1974, %v1973
    %v2010 = vpack.c.b16 %v1976, %v1975
    %v2011 = vpack.c.b16 %v1978, %v1977
    %v2012 = vpack.c.b16 %v1980, %v1979
    %2045 = vmatprep.subr.bf16.mxu0 0
    %2046 = vmatpush1.bf16.msra.mxu0 %v1981
    %2047 = vmatprep.subr.bf16.mxu0 0
    %2048 = vmatpush1.bf16.msra.mxu0 %v1982
    %2049 = vmatprep.subr.bf16.mxu0 0
    %2050 = vmatpush1.bf16.msra.mxu0 %v1983
    %2051 = vmatprep.subr.bf16.mxu0 0
    %2052 = vmatpush1.bf16.msra.mxu0 %v1984
    %2053 = vmatprep.subr.bf16.mxu0 0
    %2054 = vmatpush1.bf16.msra.mxu0 %v1985
    %2055 = vmatprep.subr.bf16.mxu0 0
    %2056 = vmatpush1.bf16.msra.mxu0 %v1986
    %2057 = vmatprep.subr.bf16.mxu0 0
    %2058 = vmatpush1.bf16.msra.mxu0 %v1987
    %2059 = vmatprep.subr.bf16.mxu0 0
    %2060 = vmatpush1.bf16.msra.mxu0 %v1988
    %2061 = vmatprep.subr.bf16.mxu0 0
    %2062 = vmatpush1.bf16.msra.mxu0 %v1989
    %2063 = vmatprep.subr.bf16.mxu0 0
    %2064 = vmatpush1.bf16.msra.mxu0 %v1990
    %2065 = vmatprep.subr.bf16.mxu0 0
    %2066 = vmatpush1.bf16.msra.mxu0 %v1991
    %2067 = vmatprep.subr.bf16.mxu0 0
    %2068 = vmatpush1.bf16.msra.mxu0 %v1992
    %2069 = vmatprep.subr.bf16.mxu0 0
    %2070 = vmatpush1.bf16.msra.mxu0 %v1993
    %2071 = vmatprep.subr.bf16.mxu0 0
    %2072 = vmatpush1.bf16.msra.mxu0 %v1994
    %2073 = vmatprep.subr.bf16.mxu0 0
    %2074 = vmatpush1.bf16.msra.mxu0 %v1995
    %2075 = vmatprep.subr.bf16.mxu0 0
    %2076 = vmatpush1.bf16.msra.mxu0 %v1996
    %2077 = vmatprep.mubr.bf16.mxu0 %v1779
    %2078 = vmatmul.mubr.bf16.gmra.mrb[0].mxu0 %v1778
    %v2079 = vpop.f32.mrb[0].mxu0
    %v2080 = vadd.f32 %v1851, %v2079
    %v2081 = vpop.f32.mrb[0].mxu0
    %v2082 = vpop.f32.mrb[0].mxu0
    %v2083 = vpop.f32.mrb[0].mxu0
    %2084 = vdwg.mxu0
    %2085 = vmatprep.subr.bf16.mxu0 0
    %2086 = vmatpush1.bf16.msra.mxu0 %v1997
    %2087 = vmatprep.subr.bf16.mxu0 0
    %2088 = vmatpush1.bf16.msra.mxu0 %v1998
    %2089 = vmatprep.subr.bf16.mxu0 0
    %2090 = vmatpush1.bf16.msra.mxu0 %v1999
    %2091 = vmatprep.subr.bf16.mxu0 0
    %2092 = vmatpush1.bf16.msra.mxu0 %v2000
    %2093 = vmatprep.subr.bf16.mxu0 0
    %2094 = vmatpush1.bf16.msra.mxu0 %v2001
    %2095 = vmatprep.subr.bf16.mxu0 0
    %2096 = vmatpush1.bf16.msra.mxu0 %v2002
    %2097 = vmatprep.subr.bf16.mxu0 0
    %2098 = vmatpush1.bf16.msra.mxu0 %v2003
    %2099 = vmatprep.subr.bf16.mxu0 0
    %2100 = vmatpush1.bf16.msra.mxu0 %v2004
    %2101 = vmatprep.subr.bf16.mxu0 0
    %2102 = vmatpush1.bf16.msra.mxu0 %v2005
    %2103 = vmatprep.subr.bf16.mxu0 0
    %2104 = vmatpush1.bf16.msra.mxu0 %v2006
    %2105 = vmatprep.subr.bf16.mxu0 0
    %2106 = vmatpush1.bf16.msra.mxu0 %v2007
    %2107 = vmatprep.subr.bf16.mxu0 0
    %2108 = vmatpush1.bf16.msra.mxu0 %v2008
    %2109 = vmatprep.subr.bf16.mxu0 0
    %2110 = vmatpush1.bf16.msra.mxu0 %v2009
    %2111 = vmatprep.subr.bf16.mxu0 0
    %2112 = vmatpush1.bf16.msra.mxu0 %v2010
    %2113 = vmatprep.subr.bf16.mxu0 0
    %2114 = vmatpush1.bf16.msra.mxu0 %v2011
    %2115 = vmatprep.subr.bf16.mxu0 0
    %2116 = vmatpush1.bf16.msra.mxu0 %v2012
    %2117 = vmatprep.mubr.bf16.mxu0 %v1781
    %2118 = vmatmul.mubr.bf16.gmra.mrb[0].mxu0 %v1780
    %v2119 = vpop.f32.mrb[0].mxu0
    %v2120 = vadd.f32 %v2080, %v2119
    %v2121 = vpop.f32.mrb[0].mxu0
    %v2122 = vpop.f32.mrb[0].mxu0
    %v2123 = vpop.f32.mrb[0].mxu0
    %2124 = vdwg.mxu0
    %v2125 = vmul.f32 %v2120, 0.5
    %v2126 = vmul.f32 %v2125, 1.442695
    %v2127 = vpow.pop %v2126
    %v2128 = vld [vmem:[%s1] sm:$0xff]
    %2130 = vrot.lane.b32.xlu0 %v2127, 126
    %v2131 = vpop.permute.xlu0 %2130
    %v2133 = vmul.f32 %v2128, %v2131
    %v2134 = vadd.f32 %v2120, %v2133
    %v2135 = vld [vmem:[%s6] ss:$2 sm:$0xf]
    %2137 = vset.pattern.permute.xlu0 0
    %2138 = vperm.xlu0 %2137, %v2134
    %v2139 = vpop.permute.xlu0 %2138
    %v2142 = vlaneseq
    %v2143 = vshrl.u32 %v2142, 7
    %v2144 = vsub.s32 0, %v2143
    %v2145 = vrot.slane %v2135, %v2144
    %v2146 = vlaneseq
    %v2147 = vshrl.u32 %v2146, 7
    %v2148 = vsub.s32 1, %v2147
    %v2149 = vrot.slane %v2135, %v2148
    %v2150 = vlaneseq
    %v2151 = vshrl.u32 %v2150, 7
    %v2152 = vsub.s32 2, %v2151
    %v2153 = vrot.slane %v2135, %v2152
    %v2154 = vlaneseq
    %v2155 = vshrl.u32 %v2154, 7
    %v2156 = vsub.s32 3, %v2155
    %v2157 = vrot.slane %v2135, %v2156
    %v2162 = vmul.f32 %v2139, %v2145
    %v2163 = vmul.f32 %v2139, %v2149
    %v2164 = vmul.f32 %v2139, %v2153
    %v2165 = vmul.f32 %v2139, %v2157
    %s2166 = scalar_lea.vmem %s6, 1
    %v2167 = vld [vmem:[%s2166] ss:$2 sm:$0xf]
    %2168 = vset.pattern.permute.xlu0 1
    %2169 = vperm.xlu0 %2168, %v2134
    %v2170 = vpop.permute.xlu0 %2169
    %v2173 = vlaneseq
    %v2174 = vshrl.u32 %v2173, 7
    %v2175 = vsub.s32 0, %v2174
    %v2176 = vrot.slane %v2167, %v2175
    %v2177 = vlaneseq
    %v2178 = vshrl.u32 %v2177, 7
    %v2179 = vsub.s32 1, %v2178
    %v2180 = vrot.slane %v2167, %v2179
    %v2181 = vlaneseq
    %v2182 = vshrl.u32 %v2181, 7
    %v2183 = vsub.s32 2, %v2182
    %v2184 = vrot.slane %v2167, %v2183
    %v2185 = vlaneseq
    %v2186 = vshrl.u32 %v2185, 7
    %v2187 = vsub.s32 3, %v2186
    %v2188 = vrot.slane %v2167, %v2187
    %v2193 = vmul.f32 %v2170, %v2176
    %v2194 = vmul.f32 %v2170, %v2180
    %v2195 = vmul.f32 %v2170, %v2184
    %v2196 = vmul.f32 %v2170, %v2188
    %v2197 = vadd.f32 %v2162, %v2193
    %v2198 = vadd.f32 %v2163, %v2194
    %v2199 = vadd.f32 %v2164, %v2195
    %v2200 = vadd.f32 %v2165, %v2196
    %v2201 = vld [vmem:[%s7] sm:$0xf]
    %v2203 = vlaneseq
    %v2204 = vshrl.u32 %v2203, 7
    %v2205 = vsub.s32 0, %v2204
    %v2206 = vrot.slane %v2201, %v2205
    %v2207 = vlaneseq
    %v2208 = vshrl.u32 %v2207, 7
    %v2209 = vsub.s32 1, %v2208
    %v2210 = vrot.slane %v2201, %v2209
    %v2211 = vlaneseq
    %v2212 = vshrl.u32 %v2211, 7
    %v2213 = vsub.s32 2, %v2212
    %v2214 = vrot.slane %v2201, %v2213
    %v2215 = vlaneseq
    %v2216 = vshrl.u32 %v2215, 7
    %v2217 = vsub.s32 3, %v2216
    %v2218 = vrot.slane %v2201, %v2217
    %v2223 = vadd.f32 %v2197, %v2206
    %v2224 = vadd.f32 %v2198, %v2210
    %v2225 = vadd.f32 %v2199, %v2214
    %v2226 = vadd.f32 %v2200, %v2218
    %v2227 = vmax.f32 %v2223, 0.0
    %v2228 = vmax.f32 %v2224, 0.0
    %v2229 = vmax.f32 %v2225, 0.0
    %v2230 = vmax.f32 %v2226, 0.0
    %v2231 = vpack.c.bf16 %v2227, %v2227
    %v2232 = vpack.c.bf16 %v2228, %v2228
    %v2233 = vpack.c.bf16 %v2229, %v2229
    %v2234 = vpack.c.bf16 %v2230, %v2230
    %v2235 = vld [vmem:[#allocation4] sm:$0xff]
    %v2236 = vld [vmem:[#allocation4 + $0x8] sm:$0xff]
    %v2237 = vld [vmem:[#allocation4 + $0x10] sm:$0xff]
    %v2238 = vld [vmem:[#allocation4 + $0x18] sm:$0xf]
    %v2239 = vld [vmem:[#allocation4 + $0x1c] sm:$0xff]
    %v2240 = vld [vmem:[#allocation4 + $0x24] sm:$0xff]
    %v2241 = vld [vmem:[#allocation4 + $0x2c] sm:$0xff]
    %v2242 = vld [vmem:[#allocation4 + $0x34] sm:$0xf]
    %v2243 = vld [vmem:[#allocation4 + $0x38] sm:$0xff]
    %v2244 = vld [vmem:[#allocation4 + $0x40] sm:$0xff]
    %v2245 = vld [vmem:[#allocation4 + $0x48] sm:$0xff]
    %v2246 = vld [vmem:[#allocation4 + $0x50] sm:$0xf]
    %v2247 = vld [vmem:[#allocation4 + $0x54] sm:$0xff]
    %v2248 = vld [vmem:[#allocation4 + $0x5c] sm:$0xff]
    %v2249 = vld [vmem:[#allocation4 + $0x64] sm:$0xff]
    %v2250 = vld [vmem:[#allocation4 + $0x6c] sm:$0xf]
    %v2251 = vld [vmem:[#allocation4 + $0x70] sm:$0xff]
    %v2252 = vld [vmem:[#allocation4 + $0x78] sm:$0xff]
    %v2253 = vld [vmem:[#allocation4 + $0x80] sm:$0xff]
    %v2254 = vld [vmem:[#allocation4 + $0x88] sm:$0xf]
    %v2255 = vld [vmem:[#allocation4 + $0x8c] sm:$0xff]
    %v2256 = vld [vmem:[#allocation4 + $0x94] sm:$0xff]
    %v2257 = vld [vmem:[#allocation4 + $0x9c] sm:$0xff]
    %v2258 = vld [vmem:[#allocation4 + $0xa4] sm:$0xf]
    %v2259 = vld [vmem:[#allocation4 + $0xa8] sm:$0xff]
    %v2260 = vld [vmem:[#allocation4 + $0xb0] sm:$0xff]
    %v2261 = vld [vmem:[#allocation4 + $0xb8] sm:$0xff]
    %v2262 = vld [vmem:[#allocation4 + $0xc0] sm:$0xf]
    %v2263 = vld [vmem:[#allocation4 + $0xc4] sm:$0xff]
    %v2264 = vld [vmem:[#allocation4 + $0xcc] sm:$0xff]
    %v2265 = vld [vmem:[#allocation4 + $0xd4] sm:$0xff]
    %v2266 = vld [vmem:[#allocation4 + $0xdc] sm:$0xf]
    %v2267 = vld [vmem:[#allocation4 + $0xe0] sm:$0xff]
    %v2268 = vld [vmem:[#allocation4 + $0xe8] sm:$0xff]
    %v2269 = vld [vmem:[#allocation4 + $0xf0] sm:$0xff]
    %v2270 = vld [vmem:[#allocation4 + $0xf8] sm:$0xf]
    %v2271 = vld [vmem:[#allocation4 + $0xfc] sm:$0xff]
    %v2272 = vld [vmem:[#allocation4 + $0x104] sm:$0xff]
    %v2273 = vld [vmem:[#allocation4 + $0x10c] sm:$0xff]
    %v2274 = vld [vmem:[#allocation4 + $0x114] sm:$0xf]
    %v2275 = vld [vmem:[#allocation4 + $0x118] sm:$0xff]
    %v2276 = vld [vmem:[#allocation4 + $0x120] sm:$0xff]
    %v2277 = vld [vmem:[#allocation4 + $0x128] sm:$0xff]
    %v2278 = vld [vmem:[#allocation4 + $0x130] sm:$0xf]
    %v2279 = vld [vmem:[#allocation4 + $0x134] sm:$0xff]
    %v2280 = vld [vmem:[#allocation4 + $0x13c] sm:$0xff]
    %v2281 = vld [vmem:[#allocation4 + $0x144] sm:$0xff]
    %v2282 = vld [vmem:[#allocation4 + $0x14c] sm:$0xf]
    %v2283 = vld [vmem:[#allocation4 + $0x150] sm:$0xff]
    %v2284 = vld [vmem:[#allocation4 + $0x158] sm:$0xff]
    %v2285 = vld [vmem:[#allocation4 + $0x160] sm:$0xff]
    %v2286 = vld [vmem:[#allocation4 + $0x168] sm:$0xf]
    %v2287 = vld [vmem:[#allocation4 + $0x16c] sm:$0xff]
    %v2288 = vld [vmem:[#allocation4 + $0x174] sm:$0xff]
    %v2289 = vld [vmem:[#allocation4 + $0x17c] sm:$0xff]
    %v2290 = vld [vmem:[#allocation4 + $0x184] sm:$0xf]
    %v2291 = vld [vmem:[#allocation4 + $0x188] sm:$0xff]
    %v2292 = vld [vmem:[#allocation4 + $0x190] sm:$0xff]
    %v2293 = vld [vmem:[#allocation4 + $0x198] sm:$0xff]
    %v2294 = vld [vmem:[#allocation4 + $0x1a0] sm:$0xf]
    %v2295 = vld [vmem:[#allocation4 + $0x1a4] sm:$0xff]
    %v2296 = vld [vmem:[#allocation4 + $0x1ac] sm:$0xff]
    %v2297 = vld [vmem:[#allocation4 + $0x1b4] sm:$0xff]
    %v2298 = vld [vmem:[#allocation4 + $0x1bc] sm:$0xf]
    %v2299 = vld [vmem:[#allocation4 + $0x1c0] sm:$0xff]
    %v2300 = vld [vmem:[#allocation4 + $0x1c8] sm:$0xff]
    %v2301 = vld [vmem:[#allocation4 + $0x1d0] sm:$0xff]
    %v2302 = vld [vmem:[#allocation4 + $0x1d8] sm:$0xf]
    %v2303 = vld [vmem:[#allocation4 + $0x1dc] sm:$0xff]
    %v2304 = vld [vmem:[#allocation4 + $0x1e4] sm:$0xff]
    %v2305 = vld [vmem:[#allocation4 + $0x1ec] sm:$0xff]
    %v2306 = vld [vmem:[#allocation4 + $0x1f4] sm:$0xf]
    %v2307 = vld [vmem:[#allocation4 + $0x1f8] sm:$0xff]
    %v2308 = vld [vmem:[#allocation4 + $0x200] sm:$0xff]
    %v2309 = vld [vmem:[#allocation4 + $0x208] sm:$0xff]
    %v2310 = vld [vmem:[#allocation4 + $0x210] sm:$0xf]
    %v2311 = vld [vmem:[#allocation4 + $0x214] sm:$0xff]
    %v2312 = vld [vmem:[#allocation4 + $0x21c] sm:$0xff]
    %v2313 = vld [vmem:[#allocation4 + $0x224] sm:$0xff]
    %v2314 = vld [vmem:[#allocation4 + $0x22c] sm:$0xf]
    %v2315 = vld [vmem:[#allocation4 + $0x230] sm:$0xff]
    %v2316 = vld [vmem:[#allocation4 + $0x238] sm:$0xff]
    %v2317 = vld [vmem:[#allocation4 + $0x240] sm:$0xff]
    %v2318 = vld [vmem:[#allocation4 + $0x248] sm:$0xf]
    %v2319 = vld [vmem:[#allocation4 + $0x24c] sm:$0xff]
    %v2320 = vld [vmem:[#allocation4 + $0x254] sm:$0xff]
    %v2321 = vld [vmem:[#allocation4 + $0x25c] sm:$0xff]
    %v2322 = vld [vmem:[#allocation4 + $0x264] sm:$0xf]
    %v2323 = vld [vmem:[#allocation4 + $0x268] sm:$0xff]
    %v2324 = vld [vmem:[#allocation4 + $0x270] sm:$0xff]
    %v2325 = vld [vmem:[#allocation4 + $0x278] sm:$0xff]
    %v2326 = vld [vmem:[#allocation4 + $0x280] sm:$0xf]
    %v2327 = vld [vmem:[#allocation4 + $0x284] sm:$0xff]
    %v2328 = vld [vmem:[#allocation4 + $0x28c] sm:$0xff]
    %v2329 = vld [vmem:[#allocation4 + $0x294] sm:$0xff]
    %v2330 = vld [vmem:[#allocation4 + $0x29c] sm:$0xf]
    %v2331 = vld [vmem:[#allocation4 + $0x2a0] sm:$0xff]
    %v2332 = vld [vmem:[#allocation4 + $0x2a8] sm:$0xff]
    %v2333 = vld [vmem:[#allocation4 + $0x2b0] sm:$0xff]
    %v2334 = vld [vmem:[#allocation4 + $0x2b8] sm:$0xf]
    %v2335 = vld [vmem:[#allocation4 + $0x2bc] sm:$0xff]
    %v2336 = vld [vmem:[#allocation4 + $0x2c4] sm:$0xff]
    %v2337 = vld [vmem:[#allocation4 + $0x2cc] sm:$0xff]
    %v2338 = vld [vmem:[#allocation4 + $0x2d4] sm:$0xf]
    %v2339 = vld [vmem:[#allocation4 + $0x2d8] sm:$0xff]
    %v2340 = vld [vmem:[#allocation4 + $0x2e0] sm:$0xff]
    %v2341 = vld [vmem:[#allocation4 + $0x2e8] sm:$0xff]
    %v2342 = vld [vmem:[#allocation4 + $0x2f0] sm:$0xf]
    %v2343 = vld [vmem:[#allocation4 + $0x2f4] sm:$0xff]
    %v2344 = vld [vmem:[#allocation4 + $0x2fc] sm:$0xff]
    %v2345 = vld [vmem:[#allocation4 + $0x304] sm:$0xff]
    %v2346 = vld [vmem:[#allocation4 + $0x30c] sm:$0xf]
    %v2347 = vld [vmem:[#allocation4 + $0x310] sm:$0xff]
    %v2348 = vld [vmem:[#allocation4 + $0x318] sm:$0xff]
    %v2349 = vld [vmem:[#allocation4 + $0x320] sm:$0xff]
    %v2350 = vld [vmem:[#allocation4 + $0x328] sm:$0xf]
    %v2351 = vld [vmem:[#allocation4 + $0x32c] sm:$0xff]
    %v2352 = vld [vmem:[#allocation4 + $0x334] sm:$0xff]
    %v2353 = vld [vmem:[#allocation4 + $0x33c] sm:$0xff]
    %v2354 = vld [vmem:[#allocation4 + $0x344] sm:$0xf]
    %v2355 = vld [vmem:[#allocation4 + $0x348] sm:$0xff]
    %v2356 = vld [vmem:[#allocation4 + $0x350] sm:$0xff]
    %v2357 = vld [vmem:[#allocation4 + $0x358] sm:$0xff]
    %v2358 = vld [vmem:[#allocation4 + $0x360] sm:$0xf]
    %v2359 = vld [vmem:[#allocation4 + $0x364] sm:$0xff]
    %v2360 = vld [vmem:[#allocation4 + $0x36c] sm:$0xff]
    %v2361 = vld [vmem:[#allocation4 + $0x374] sm:$0xff]
    %v2362 = vld [vmem:[#allocation4 + $0x37c] sm:$0xf]
    %v2363 = vld [vmem:[#allocation4 + $0x380] sm:$0xff]
    %v2364 = vld [vmem:[#allocation4 + $0x388] sm:$0xff]
    %v2365 = vld [vmem:[#allocation4 + $0x390] sm:$0xff]
    %v2366 = vld [vmem:[#allocation4 + $0x398] sm:$0xf]
    %v2367 = vld [vmem:[#allocation4 + $0x39c] sm:$0xff]
    %v2368 = vld [vmem:[#allocation4 + $0x3a4] sm:$0xff]
    %v2369 = vld [vmem:[#allocation4 + $0x3ac] sm:$0xff]
    %v2370 = vld [vmem:[#allocation4 + $0x3b4] sm:$0xf]
    %v2371 = vld [vmem:[#allocation4 + $0x3b8] sm:$0xff]
    %v2372 = vld [vmem:[#allocation4 + $0x3c0] sm:$0xff]
    %v2373 = vld [vmem:[#allocation4 + $0x3c8] sm:$0xff]
    %v2374 = vld [vmem:[#allocation4 + $0x3d0] sm:$0xf]
    %v2375 = vld [vmem:[#allocation4 + $0x3d4] sm:$0xff]
    %v2376 = vld [vmem:[#allocation4 + $0x3dc] sm:$0xff]
    %v2377 = vld [vmem:[#allocation4 + $0x3e4] sm:$0xff]
    %v2378 = vld [vmem:[#allocation4 + $0x3ec] sm:$0xf]
    %v2379 = vld [vmem:[#allocation4 + $0x3f0] sm:$0xff]
    %v2380 = vld [vmem:[#allocation4 + $0x3f8] sm:$0xff]
    %v2381 = vld [vmem:[#allocation4 + $0x400] sm:$0xff]
    %v2382 = vld [vmem:[#allocation4 + $0x408] sm:$0xf]
    %v2383 = vld [vmem:[#allocation4 + $0x40c] sm:$0xff]
    %v2384 = vld [vmem:[#allocation4 + $0x414] sm:$0xff]
    %v2385 = vld [vmem:[#allocation4 + $0x41c] sm:$0xff]
    %v2386 = vld [vmem:[#allocation4 + $0x424] sm:$0xf]
    %v2387 = vld [vmem:[#allocation4 + $0x428] sm:$0xff]
    %v2388 = vld [vmem:[#allocation4 + $0x430] sm:$0xff]
    %v2389 = vld [vmem:[#allocation4 + $0x438] sm:$0xff]
    %v2390 = vld [vmem:[#allocation4 + $0x440] sm:$0xf]
    %v2391 = vld [vmem:[#allocation4 + $0x444] sm:$0xff]
    %v2392 = vld [vmem:[#allocation4 + $0x44c] sm:$0xff]
    %v2393 = vld [vmem:[#allocation4 + $0x454] sm:$0xff]
    %v2394 = vld [vmem:[#allocation4 + $0x45c] sm:$0xf]
    %v2395 = vld [vmem:[#allocation4 + $0x460] sm:$0xff]
    %v2396 = vld [vmem:[#allocation4 + $0x468] sm:$0xff]
    %v2397 = vld [vmem:[#allocation4 + $0x470] sm:$0xff]
    %v2398 = vld [vmem:[#allocation4 + $0x478] sm:$0xf]
    %v2399 = vld [vmem:[#allocation4 + $0x47c] sm:$0xff]
    %v2400 = vld [vmem:[#allocation4 + $0x484] sm:$0xff]
    %v2401 = vld [vmem:[#allocation4 + $0x48c] sm:$0xff]
    %v2402 = vld [vmem:[#allocation4 + $0x494] sm:$0xf]
    %v2403 = vld [vmem:[#allocation4 + $0x498] sm:$0xff]
    %v2404 = vld [vmem:[#allocation4 + $0x4a0] sm:$0xff]
    %v2405 = vld [vmem:[#allocation4 + $0x4a8] sm:$0xff]
    %v2406 = vld [vmem:[#allocation4 + $0x4b0] sm:$0xf]
    %v2407 = vld [vmem:[#allocation4 + $0x4b4] sm:$0xff]
    %v2408 = vld [vmem:[#allocation4 + $0x4bc] sm:$0xff]
    %v2409 = vld [vmem:[#allocation4 + $0x4c4] sm:$0xff]
    %v2410 = vld [vmem:[#allocation4 + $0x4cc] sm:$0xf]
    %v2411 = vld [vmem:[#allocation4 + $0x4d0] sm:$0xff]
    %v2412 = vld [vmem:[#allocation4 + $0x4d8] sm:$0xff]
    %v2413 = vld [vmem:[#allocation4 + $0x4e0] sm:$0xff]
    %v2414 = vld [vmem:[#allocation4 + $0x4e8] sm:$0xf]
    %v2415 = vld [vmem:[#allocation4 + $0x4ec] sm:$0xff]
    %v2416 = vld [vmem:[#allocation4 + $0x4f4] sm:$0xff]
    %v2417 = vld [vmem:[#allocation4 + $0x4fc] sm:$0xff]
    %v2418 = vld [vmem:[#allocation4 + $0x504] sm:$0xf]
    %v2419 = vld [vmem:[#allocation4 + $0x508] sm:$0xff]
    %v2420 = vld [vmem:[#allocation4 + $0x510] sm:$0xff]
    %v2421 = vld [vmem:[#allocation4 + $0x518] sm:$0xff]
    %v2422 = vld [vmem:[#allocation4 + $0x520] sm:$0xf]
    %v2423 = vld [vmem:[#allocation4 + $0x524] sm:$0xff]
    %v2424 = vld [vmem:[#allocation4 + $0x52c] sm:$0xff]
    %v2425 = vld [vmem:[#allocation4 + $0x534] sm:$0xff]
    %v2426 = vld [vmem:[#allocation4 + $0x53c] sm:$0xf]
    %v2427 = vld [vmem:[#allocation4 + $0x540] sm:$0xff]
    %v2428 = vld [vmem:[#allocation4 + $0x548] sm:$0xff]
    %v2429 = vld [vmem:[#allocation4 + $0x550] sm:$0xff]
    %v2430 = vld [vmem:[#allocation4 + $0x558] sm:$0xf]
    %v2431 = vld [vmem:[#allocation4 + $0x55c] sm:$0xff]
    %v2432 = vld [vmem:[#allocation4 + $0x564] sm:$0xff]
    %v2433 = vld [vmem:[#allocation4 + $0x56c] sm:$0xff]
    %v2434 = vld [vmem:[#allocation4 + $0x574] sm:$0xf]
    %v2435 = vld [vmem:[#allocation4 + $0x578] sm:$0xff]
    %v2436 = vld [vmem:[#allocation4 + $0x580] sm:$0xff]
    %v2437 = vld [vmem:[#allocation4 + $0x588] sm:$0xff]
    %v2438 = vld [vmem:[#allocation4 + $0x590] sm:$0xf]
    %v2439 = vld [vmem:[#allocation4 + $0x594] sm:$0xff]
    %v2440 = vld [vmem:[#allocation4 + $0x59c] sm:$0xff]
    %v2441 = vld [vmem:[#allocation4 + $0x5a4] sm:$0xff]
    %v2442 = vld [vmem:[#allocation4 + $0x5ac] sm:$0xf]
    %v2443 = vld [vmem:[#allocation4 + $0x5b0] sm:$0xff]
    %v2444 = vld [vmem:[#allocation4 + $0x5b8] sm:$0xff]
    %v2445 = vld [vmem:[#allocation4 + $0x5c0] sm:$0xff]
    %v2446 = vld [vmem:[#allocation4 + $0x5c8] sm:$0xf]
    %v2447 = vld [vmem:[#allocation4 + $0x5cc] sm:$0xff]
    %v2448 = vld [vmem:[#allocation4 + $0x5d4] sm:$0xff]
    %v2449 = vld [vmem:[#allocation4 + $0x5dc] sm:$0xff]
    %v2450 = vld [vmem:[#allocation4 + $0x5e4] sm:$0xf]
    %v2451 = vld [vmem:[#allocation4 + $0x5e8] sm:$0xff]
    %v2452 = vld [vmem:[#allocation4 + $0x5f0] sm:$0xff]
    %v2453 = vld [vmem:[#allocation4 + $0x5f8] sm:$0xff]
    %v2454 = vld [vmem:[#allocation4 + $0x600] sm:$0xf]
    %v2455 = vld [vmem:[#allocation4 + $0x604] sm:$0xff]
    %v2456 = vld [vmem:[#allocation4 + $0x60c] sm:$0xff]
    %v2457 = vld [vmem:[#allocation4 + $0x614] sm:$0xff]
    %v2458 = vld [vmem:[#allocation4 + $0x61c] sm:$0xf]
    %v2459 = vld [vmem:[#allocation4 + $0x620] sm:$0xff]
    %v2460 = vld [vmem:[#allocation4 + $0x628] sm:$0xff]
    %v2461 = vld [vmem:[#allocation4 + $0x630] sm:$0xff]
    %v2462 = vld [vmem:[#allocation4 + $0x638] sm:$0xf]
    %v2463 = vld [vmem:[#allocation4 + $0x63c] sm:$0xff]
    %v2464 = vld [vmem:[#allocation4 + $0x644] sm:$0xff]
    %v2465 = vld [vmem:[#allocation4 + $0x64c] sm:$0xff]
    %v2466 = vld [vmem:[#allocation4 + $0x654] sm:$0xf]
    %v2467 = vld [vmem:[#allocation4 + $0x658] sm:$0xff]
    %v2468 = vld [vmem:[#allocation4 + $0x660] sm:$0xff]
    %v2469 = vld [vmem:[#allocation4 + $0x668] sm:$0xff]
    %v2470 = vld [vmem:[#allocation4 + $0x670] sm:$0xf]
    %v2471 = vld [vmem:[#allocation4 + $0x674] sm:$0xff]
    %v2472 = vld [vmem:[#allocation4 + $0x67c] sm:$0xff]
    %v2473 = vld [vmem:[#allocation4 + $0x684] sm:$0xff]
    %v2474 = vld [vmem:[#allocation4 + $0x68c] sm:$0xf]
    %v2475 = vld [vmem:[#allocation4 + $0x690] sm:$0xff]
    %v2476 = vld [vmem:[#allocation4 + $0x698] sm:$0xff]
    %v2477 = vld [vmem:[#allocation4 + $0x6a0] sm:$0xff]
    %v2478 = vld [vmem:[#allocation4 + $0x6a8] sm:$0xf]
    %v2479 = vld [vmem:[#allocation4 + $0x6ac] sm:$0xff]
    %v2480 = vld [vmem:[#allocation4 + $0x6b4] sm:$0xff]
    %v2481 = vld [vmem:[#allocation4 + $0x6bc] sm:$0xff]
    %v2482 = vld [vmem:[#allocation4 + $0x6c4] sm:$0xf]
    %v2483 = vld [vmem:[#allocation4 + $0x6c8] sm:$0xff]
    %v2484 = vld [vmem:[#allocation4 + $0x6d0] sm:$0xff]
    %v2485 = vld [vmem:[#allocation4 + $0x6d8] sm:$0xff]
    %v2486 = vld [vmem:[#allocation4 + $0x6e0] sm:$0xf]
    %v2487 = vld [vmem:[#allocation4 + $0x6e4] sm:$0xff]
    %v2488 = vld [vmem:[#allocation4 + $0x6ec] sm:$0xff]
    %v2489 = vld [vmem:[#allocation4 + $0x6f4] sm:$0xff]
    %v2490 = vld [vmem:[#allocation4 + $0x6fc] sm:$0xf]
    %v2491 = vld [vmem:[%s9] sm:$0xff]
    %v2493 = vlaneseq
    %v2494 = vshrl.u32 %v2493, 7
    %v2495 = vsub.s32 0, %v2494
    %v2496 = vrot.slane %v2491, %v2495
    %v2497 = vlaneseq
    %v2498 = vshrl.u32 %v2497, 7
    %v2499 = vsub.s32 1, %v2498
    %v2500 = vrot.slane %v2491, %v2499
    %v2501 = vlaneseq
    %v2502 = vshrl.u32 %v2501, 7
    %v2503 = vsub.s32 2, %v2502
    %v2504 = vrot.slane %v2491, %v2503
    %v2505 = vlaneseq
    %v2506 = vshrl.u32 %v2505, 7
    %v2507 = vsub.s32 3, %v2506
    %v2508 = vrot.slane %v2491, %v2507
    %v2509 = vlaneseq
    %v2510 = vshrl.u32 %v2509, 7
    %v2511 = vsub.s32 4, %v2510
    %v2512 = vrot.slane %v2491, %v2511
    %v2513 = vlaneseq
    %v2514 = vshrl.u32 %v2513, 7
    %v2515 = vsub.s32 5, %v2514
    %v2516 = vrot.slane %v2491, %v2515
    %v2517 = vlaneseq
    %v2518 = vshrl.u32 %v2517, 7
    %v2519 = vsub.s32 6, %v2518
    %v2520 = vrot.slane %v2491, %v2519
    %v2784 = vunpack.c.l.b16 %v2235
    %v2785 = vunpack.c.h.b16 %v2235
    %v2786 = vunpack.c.l.b16 %v2236
    %v2787 = vunpack.c.h.b16 %v2236
    %v2788 = vunpack.c.l.b16 %v2237
    %v2789 = vunpack.c.h.b16 %v2237
    %v2790 = vunpack.c.l.b16 %v2238
    %v2791 = vunpack.c.l.b16 %v2239
    %v2792 = vunpack.c.h.b16 %v2239
    %v2793 = vunpack.c.l.b16 %v2240
    %v2794 = vunpack.c.h.b16 %v2240
    %v2795 = vunpack.c.l.b16 %v2241
    %v2796 = vunpack.c.h.b16 %v2241
    %v2797 = vunpack.c.l.b16 %v2242
    %v2798 = vunpack.c.l.b16 %v2243
    %v2799 = vunpack.c.h.b16 %v2243
    %v2800 = vunpack.c.l.b16 %v2244
    %v2801 = vunpack.c.h.b16 %v2244
    %v2802 = vunpack.c.l.b16 %v2245
    %v2803 = vunpack.c.h.b16 %v2245
    %v2804 = vunpack.c.l.b16 %v2246
    %v2805 = vunpack.c.l.b16 %v2247
    %v2806 = vunpack.c.h.b16 %v2247
    %v2807 = vunpack.c.l.b16 %v2248
    %v2808 = vunpack.c.h.b16 %v2248
    %v2809 = vunpack.c.l.b16 %v2249
    %v2810 = vunpack.c.h.b16 %v2249
    %v2811 = vunpack.c.l.b16 %v2250
    %v2812 = vunpack.c.l.b16 %v2251
    %v2813 = vunpack.c.h.b16 %v2251
    %v2814 = vunpack.c.l.b16 %v2252
    %v2815 = vunpack.c.h.b16 %v2252
    %v2816 = vunpack.c.l.b16 %v2253
    %v2817 = vunpack.c.h.b16 %v2253
    %v2818 = vunpack.c.l.b16 %v2254
    %v2819 = vunpack.c.l.b16 %v2255
    %v2820 = vunpack.c.h.b16 %v2255
    %v2821 = vunpack.c.l.b16 %v2256
    %v2822 = vunpack.c.h.b16 %v2256
    %v2823 = vunpack.c.l.b16 %v2257
    %v2824 = vunpack.c.h.b16 %v2257
    %v2825 = vunpack.c.l.b16 %v2258
    %v2826 = vunpack.c.l.b16 %v2259
    %v2827 = vunpack.c.h.b16 %v2259
    %v2828 = vunpack.c.l.b16 %v2260
    %v2829 = vunpack.c.h.b16 %v2260
    %v2830 = vunpack.c.l.b16 %v2261
    %v2831 = vunpack.c.h.b16 %v2261
    %v2832 = vunpack.c.l.b16 %v2262
    %v2833 = vunpack.c.l.b16 %v2263
    %v2834 = vunpack.c.h.b16 %v2263
    %v2835 = vunpack.c.l.b16 %v2264
    %v2836 = vunpack.c.h.b16 %v2264
    %v2837 = vunpack.c.l.b16 %v2265
    %v2838 = vunpack.c.h.b16 %v2265
    %v2839 = vunpack.c.l.b16 %v2266
    %v2840 = vunpack.c.l.b16 %v2267
    %v2841 = vunpack.c.h.b16 %v2267
    %v2842 = vunpack.c.l.b16 %v2268
    %v2843 = vunpack.c.h.b16 %v2268
    %v2844 = vunpack.c.l.b16 %v2269
    %v2845 = vunpack.c.h.b16 %v2269
    %v2846 = vunpack.c.l.b16 %v2270
    %v2847 = vunpack.c.l.b16 %v2271
    %v2848 = vunpack.c.h.b16 %v2271
    %v2849 = vunpack.c.l.b16 %v2272
    %v2850 = vunpack.c.h.b16 %v2272
    %v2851 = vunpack.c.l.b16 %v2273
    %v2852 = vunpack.c.h.b16 %v2273
    %v2853 = vunpack.c.l.b16 %v2274
    %v2854 = vunpack.c.l.b16 %v2275
    %v2855 = vunpack.c.h.b16 %v2275
    %v2856 = vunpack.c.l.b16 %v2276
    %v2857 = vunpack.c.h.b16 %v2276
    %v2858 = vunpack.c.l.b16 %v2277
    %v2859 = vunpack.c.h.b16 %v2277
    %v2860 = vunpack.c.l.b16 %v2278
    %v2861 = vunpack.c.l.b16 %v2279
    %v2862 = vunpack.c.h.b16 %v2279
    %v2863 = vunpack.c.l.b16 %v2280
    %v2864 = vunpack.c.h.b16 %v2280
    %v2865 = vunpack.c.l.b16 %v2281
    %v2866 = vunpack.c.h.b16 %v2281
    %v2867 = vunpack.c.l.b16 %v2282
    %v2868 = vunpack.c.l.b16 %v2283
    %v2869 = vunpack.c.h.b16 %v2283
    %v2870 = vunpack.c.l.b16 %v2284
    %v2871 = vunpack.c.h.b16 %v2284
    %v2872 = vunpack.c.l.b16 %v2285
    %v2873 = vunpack.c.h.b16 %v2285
    %v2874 = vunpack.c.l.b16 %v2286
    %v2875 = vunpack.c.l.b16 %v2287
    %v2876 = vunpack.c.h.b16 %v2287
    %v2877 = vunpack.c.l.b16 %v2288
    %v2878 = vunpack.c.h.b16 %v2288
    %v2879 = vunpack.c.l.b16 %v2289
    %v2880 = vunpack.c.h.b16 %v2289
    %v2881 = vunpack.c.l.b16 %v2290
    %v2882 = vunpack.c.l.b16 %v2291
    %v2883 = vunpack.c.h.b16 %v2291
    %v2884 = vunpack.c.l.b16 %v2292
    %v2885 = vunpack.c.h.b16 %v2292
    %v2886 = vunpack.c.l.b16 %v2293
    %v2887 = vunpack.c.h.b16 %v2293
    %v2888 = vunpack.c.l.b16 %v2294
    %v2889 = vunpack.c.l.b16 %v2295
    %v2890 = vunpack.c.h.b16 %v2295
    %v2891 = vunpack.c.l.b16 %v2296
    %v2892 = vunpack.c.h.b16 %v2296
    %v2893 = vunpack.c.l.b16 %v2297
    %v2894 = vunpack.c.h.b16 %v2297
    %v2895 = vunpack.c.l.b16 %v2298
    %v2896 = vunpack.c.l.b16 %v2299
    %v2897 = vunpack.c.h.b16 %v2299
    %v2898 = vunpack.c.l.b16 %v2300
    %v2899 = vunpack.c.h.b16 %v2300
    %v2900 = vunpack.c.l.b16 %v2301
    %v2901 = vunpack.c.h.b16 %v2301
    %v2902 = vunpack.c.l.b16 %v2302
    %v2903 = vunpack.c.l.b16 %v2303
    %v2904 = vunpack.c.h.b16 %v2303
    %v2905 = vunpack.c.l.b16 %v2304
    %v2906 = vunpack.c.h.b16 %v2304
    %v2907 = vunpack.c.l.b16 %v2305
    %v2908 = vunpack.c.h.b16 %v2305
    %v2909 = vunpack.c.l.b16 %v2306
    %v2910 = vunpack.c.l.b16 %v2307
    %v2911 = vunpack.c.h.b16 %v2307
    %v2912 = vunpack.c.l.b16 %v2308
    %v2913 = vunpack.c.h.b16 %v2308
    %v2914 = vunpack.c.l.b16 %v2309
    %v2915 = vunpack.c.h.b16 %v2309
    %v2916 = vunpack.c.l.b16 %v2310
    %v2917 = vunpack.c.l.b16 %v2311
    %v2918 = vunpack.c.h.b16 %v2311
    %v2919 = vunpack.c.l.b16 %v2312
    %v2920 = vunpack.c.h.b16 %v2312
    %v2921 = vunpack.c.l.b16 %v2313
    %v2922 = vunpack.c.h.b16 %v2313
    %v2923 = vunpack.c.l.b16 %v2314
    %v2924 = vunpack.c.l.b16 %v2315
    %v2925 = vunpack.c.h.b16 %v2315
    %v2926 = vunpack.c.l.b16 %v2316
    %v2927 = vunpack.c.h.b16 %v2316
    %v2928 = vunpack.c.l.b16 %v2317
    %v2929 = vunpack.c.h.b16 %v2317
    %v2930 = vunpack.c.l.b16 %v2318
    %v2931 = vunpack.c.l.b16 %v2319
    %v2932 = vunpack.c.h.b16 %v2319
    %v2933 = vunpack.c.l.b16 %v2320
    %v2934 = vunpack.c.h.b16 %v2320
    %v2935 = vunpack.c.l.b16 %v2321
    %v2936 = vunpack.c.h.b16 %v2321
    %v2937 = vunpack.c.l.b16 %v2322
    %v2938 = vunpack.c.l.b16 %v2323
    %v2939 = vunpack.c.h.b16 %v2323
    %v2940 = vunpack.c.l.b16 %v2324
    %v2941 = vunpack.c.h.b16 %v2324
    %v2942 = vunpack.c.l.b16 %v2325
    %v2943 = vunpack.c.h.b16 %v2325
    %v2944 = vunpack.c.l.b16 %v2326
    %v2945 = vunpack.c.l.b16 %v2327
    %v2946 = vunpack.c.h.b16 %v2327
    %v2947 = vunpack.c.l.b16 %v2328
    %v2948 = vunpack.c.h.b16 %v2328
    %v2949 = vunpack.c.l.b16 %v2329
    %v2950 = vunpack.c.h.b16 %v2329
    %v2951 = vunpack.c.l.b16 %v2330
    %v2952 = vunpack.c.l.b16 %v2331
    %v2953 = vunpack.c.h.b16 %v2331
    %v2954 = vunpack.c.l.b16 %v2332
    %v2955 = vunpack.c.h.b16 %v2332
    %v2956 = vunpack.c.l.b16 %v2333
    %v2957 = vunpack.c.h.b16 %v2333
    %v2958 = vunpack.c.l.b16 %v2334
    %v2959 = vunpack.c.l.b16 %v2335
    %v2960 = vunpack.c.h.b16 %v2335
    %v2961 = vunpack.c.l.b16 %v2336
    %v2962 = vunpack.c.h.b16 %v2336
    %v2963 = vunpack.c.l.b16 %v2337
    %v2964 = vunpack.c.h.b16 %v2337
    %v2965 = vunpack.c.l.b16 %v2338
    %v2966 = vunpack.c.l.b16 %v2339
    %v2967 = vunpack.c.h.b16 %v2339
    %v2968 = vunpack.c.l.b16 %v2340
    %v2969 = vunpack.c.h.b16 %v2340
    %v2970 = vunpack.c.l.b16 %v2341
    %v2971 = vunpack.c.h.b16 %v2341
    %v2972 = vunpack.c.l.b16 %v2342
    %v2973 = vunpack.c.l.b16 %v2343
    %v2974 = vunpack.c.h.b16 %v2343
    %v2975 = vunpack.c.l.b16 %v2344
    %v2976 = vunpack.c.h.b16 %v2344
    %v2977 = vunpack.c.l.b16 %v2345
    %v2978 = vunpack.c.h.b16 %v2345
    %v2979 = vunpack.c.l.b16 %v2346
    %v2980 = vunpack.c.l.b16 %v2347
    %v2981 = vunpack.c.h.b16 %v2347
    %v2982 = vunpack.c.l.b16 %v2348
    %v2983 = vunpack.c.h.b16 %v2348
    %v2984 = vunpack.c.l.b16 %v2349
    %v2985 = vunpack.c.h.b16 %v2349
    %v2986 = vunpack.c.l.b16 %v2350
    %v2987 = vunpack.c.l.b16 %v2351
    %v2988 = vunpack.c.h.b16 %v2351
    %v2989 = vunpack.c.l.b16 %v2352
    %v2990 = vunpack.c.h.b16 %v2352
    %v2991 = vunpack.c.l.b16 %v2353
    %v2992 = vunpack.c.h.b16 %v2353
    %v2993 = vunpack.c.l.b16 %v2354
    %v2994 = vunpack.c.l.b16 %v2355
    %v2995 = vunpack.c.h.b16 %v2355
    %v2996 = vunpack.c.l.b16 %v2356
    %v2997 = vunpack.c.h.b16 %v2356
    %v2998 = vunpack.c.l.b16 %v2357
    %v2999 = vunpack.c.h.b16 %v2357
    %v3000 = vunpack.c.l.b16 %v2358
    %v3001 = vunpack.c.l.b16 %v2359
    %v3002 = vunpack.c.h.b16 %v2359
    %v3003 = vunpack.c.l.b16 %v2360
    %v3004 = vunpack.c.h.b16 %v2360
    %v3005 = vunpack.c.l.b16 %v2361
    %v3006 = vunpack.c.h.b16 %v2361
    %v3007 = vunpack.c.l.b16 %v2362
    %v3008 = vunpack.c.l.b16 %v2363
    %v3009 = vunpack.c.h.b16 %v2363
    %v3010 = vunpack.c.l.b16 %v2364
    %v3011 = vunpack.c.h.b16 %v2364
    %v3012 = vunpack.c.l.b16 %v2365
    %v3013 = vunpack.c.h.b16 %v2365
    %v3014 = vunpack.c.l.b16 %v2366
    %v3015 = vunpack.c.l.b16 %v2367
    %v3016 = vunpack.c.h.b16 %v2367
    %v3017 = vunpack.c.l.b16 %v2368
    %v3018 = vunpack.c.h.b16 %v2368
    %v3019 = vunpack.c.l.b16 %v2369
    %v3020 = vunpack.c.h.b16 %v2369
    %v3021 = vunpack.c.l.b16 %v2370
    %v3022 = vunpack.c.l.b16 %v2371
    %v3023 = vunpack.c.h.b16 %v2371
    %v3024 = vunpack.c.l.b16 %v2372
    %v3025 = vunpack.c.h.b16 %v2372
    %v3026 = vunpack.c.l.b16 %v2373
    %v3027 = vunpack.c.h.b16 %v2373
    %v3028 = vunpack.c.l.b16 %v2374
    %v3029 = vunpack.c.l.b16 %v2375
    %v3030 = vunpack.c.h.b16 %v2375
    %v3031 = vunpack.c.l.b16 %v2376
    %v3032 = vunpack.c.h.b16 %v2376
    %v3033 = vunpack.c.l.b16 %v2377
    %v3034 = vunpack.c.h.b16 %v2377
    %v3035 = vunpack.c.l.b16 %v2378
    %v3036 = vunpack.c.l.b16 %v2379
    %v3037 = vunpack.c.h.b16 %v2379
    %v3038 = vunpack.c.l.b16 %v2380
    %v3039 = vunpack.c.h.b16 %v2380
    %v3040 = vunpack.c.l.b16 %v2381
    %v3041 = vunpack.c.h.b16 %v2381
    %v3042 = vunpack.c.l.b16 %v2382
    %v3043 = vunpack.c.l.b16 %v2383
    %v3044 = vunpack.c.h.b16 %v2383
    %v3045 = vunpack.c.l.b16 %v2384
    %v3046 = vunpack.c.h.b16 %v2384
    %v3047 = vunpack.c.l.b16 %v2385
    %v3048 = vunpack.c.h.b16 %v2385
    %v3049 = vunpack.c.l.b16 %v2386
    %v3050 = vunpack.c.l.b16 %v2387
    %v3051 = vunpack.c.h.b16 %v2387
    %v3052 = vunpack.c.l.b16 %v2388
    %v3053 = vunpack.c.h.b16 %v2388
    %v3054 = vunpack.c.l.b16 %v2389
    %v3055 = vunpack.c.h.b16 %v2389
    %v3056 = vunpack.c.l.b16 %v2390
    %v3057 = vunpack.c.l.b16 %v2391
    %v3058 = vunpack.c.h.b16 %v2391
    %v3059 = vunpack.c.l.b16 %v2392
    %v3060 = vunpack.c.h.b16 %v2392
    %v3061 = vunpack.c.l.b16 %v2393
    %v3062 = vunpack.c.h.b16 %v2393
    %v3063 = vunpack.c.l.b16 %v2394
    %v3064 = vunpack.c.l.b16 %v2395
    %v3065 = vunpack.c.h.b16 %v2395
    %v3066 = vunpack.c.l.b16 %v2396
    %v3067 = vunpack.c.h.b16 %v2396
    %v3068 = vunpack.c.l.b16 %v2397
    %v3069 = vunpack.c.h.b16 %v2397
    %v3070 = vunpack.c.l.b16 %v2398
    %v3071 = vunpack.c.l.b16 %v2399
    %v3072 = vunpack.c.h.b16 %v2399
    %v3073 = vunpack.c.l.b16 %v2400
    %v3074 = vunpack.c.h.b16 %v2400
    %v3075 = vunpack.c.l.b16 %v2401
    %v3076 = vunpack.c.h.b16 %v2401
    %v3077 = vunpack.c.l.b16 %v2402
    %v3078 = vunpack.c.l.b16 %v2403
    %v3079 = vunpack.c.h.b16 %v2403
    %v3080 = vunpack.c.l.b16 %v2404
    %v3081 = vunpack.c.h.b16 %v2404
    %v3082 = vunpack.c.l.b16 %v2405
    %v3083 = vunpack.c.h.b16 %v2405
    %v3084 = vunpack.c.l.b16 %v2406
    %v3085 = vunpack.c.l.b16 %v2407
    %v3086 = vunpack.c.h.b16 %v2407
    %v3087 = vunpack.c.l.b16 %v2408
    %v3088 = vunpack.c.h.b16 %v2408
    %v3089 = vunpack.c.l.b16 %v2409
    %v3090 = vunpack.c.h.b16 %v2409
    %v3091 = vunpack.c.l.b16 %v2410
    %v3092 = vunpack.c.l.b16 %v2411
    %v3093 = vunpack.c.h.b16 %v2411
    %v3094 = vunpack.c.l.b16 %v2412
    %v3095 = vunpack.c.h.b16 %v2412
    %v3096 = vunpack.c.l.b16 %v2413
    %v3097 = vunpack.c.h.b16 %v2413
    %v3098 = vunpack.c.l.b16 %v2414
    %v3099 = vunpack.c.l.b16 %v2415
    %v3100 = vunpack.c.h.b16 %v2415
    %v3101 = vunpack.c.l.b16 %v2416
    %v3102 = vunpack.c.h.b16 %v2416
    %v3103 = vunpack.c.l.b16 %v2417
    %v3104 = vunpack.c.h.b16 %v2417
    %v3105 = vunpack.c.l.b16 %v2418
    %v3106 = vunpack.c.l.b16 %v2419
    %v3107 = vunpack.c.h.b16 %v2419
    %v3108 = vunpack.c.l.b16 %v2420
    %v3109 = vunpack.c.h.b16 %v2420
    %v3110 = vunpack.c.l.b16 %v2421
    %v3111 = vunpack.c.h.b16 %v2421
    %v3112 = vunpack.c.l.b16 %v2422
    %v3113 = vunpack.c.l.b16 %v2423
    %v3114 = vunpack.c.h.b16 %v2423
    %v3115 = vunpack.c.l.b16 %v2424
    %v3116 = vunpack.c.h.b16 %v2424
    %v3117 = vunpack.c.l.b16 %v2425
    %v3118 = vunpack.c.h.b16 %v2425
    %v3119 = vunpack.c.l.b16 %v2426
    %v3120 = vunpack.c.l.b16 %v2427
    %v3121 = vunpack.c.h.b16 %v2427
    %v3122 = vunpack.c.l.b16 %v2428
    %v3123 = vunpack.c.h.b16 %v2428
    %v3124 = vunpack.c.l.b16 %v2429
    %v3125 = vunpack.c.h.b16 %v2429
    %v3126 = vunpack.c.l.b16 %v2430
    %v3127 = vunpack.c.l.b16 %v2431
    %v3128 = vunpack.c.h.b16 %v2431
    %v3129 = vunpack.c.l.b16 %v2432
    %v3130 = vunpack.c.h.b16 %v2432
    %v3131 = vunpack.c.l.b16 %v2433
    %v3132 = vunpack.c.h.b16 %v2433
    %v3133 = vunpack.c.l.b16 %v2434
    %v3134 = vunpack.c.l.b16 %v2435
    %v3135 = vunpack.c.h.b16 %v2435
    %v3136 = vunpack.c.l.b16 %v2436
    %v3137 = vunpack.c.h.b16 %v2436
    %v3138 = vunpack.c.l.b16 %v2437
    %v3139 = vunpack.c.h.b16 %v2437
    %v3140 = vunpack.c.l.b16 %v2438
    %v3141 = vunpack.c.l.b16 %v2439
    %v3142 = vunpack.c.h.b16 %v2439
    %v3143 = vunpack.c.l.b16 %v2440
    %v3144 = vunpack.c.h.b16 %v2440
    %v3145 = vunpack.c.l.b16 %v2441
    %v3146 = vunpack.c.h.b16 %v2441
    %v3147 = vunpack.c.l.b16 %v2442
    %v3148 = vunpack.c.l.b16 %v2443
    %v3149 = vunpack.c.h.b16 %v2443
    %v3150 = vunpack.c.l.b16 %v2444
    %v3151 = vunpack.c.h.b16 %v2444
    %v3152 = vunpack.c.l.b16 %v2445
    %v3153 = vunpack.c.h.b16 %v2445
    %v3154 = vunpack.c.l.b16 %v2446
    %v3155 = vunpack.c.l.b16 %v2447
    %v3156 = vunpack.c.h.b16 %v2447
    %v3157 = vunpack.c.l.b16 %v2448
    %v3158 = vunpack.c.h.b16 %v2448
    %v3159 = vunpack.c.l.b16 %v2449
    %v3160 = vunpack.c.h.b16 %v2449
    %v3161 = vunpack.c.l.b16 %v2450
    %v3162 = vunpack.c.l.b16 %v2451
    %v3163 = vunpack.c.h.b16 %v2451
    %v3164 = vunpack.c.l.b16 %v2452
    %v3165 = vunpack.c.h.b16 %v2452
    %v3166 = vunpack.c.l.b16 %v2453
    %v3167 = vunpack.c.h.b16 %v2453
    %v3168 = vunpack.c.l.b16 %v2454
    %v3169 = vunpack.c.l.b16 %v2455
    %v3170 = vunpack.c.h.b16 %v2455
    %v3171 = vunpack.c.l.b16 %v2456
    %v3172 = vunpack.c.h.b16 %v2456
    %v3173 = vunpack.c.l.b16 %v2457
    %v3174 = vunpack.c.h.b16 %v2457
    %v3175 = vunpack.c.l.b16 %v2458
    %v3176 = vunpack.c.l.b16 %v2459
    %v3177 = vunpack.c.h.b16 %v2459
    %v3178 = vunpack.c.l.b16 %v2460
    %v3179 = vunpack.c.h.b16 %v2460
    %v3180 = vunpack.c.l.b16 %v2461
    %v3181 = vunpack.c.h.b16 %v2461
    %v3182 = vunpack.c.l.b16 %v2462
    %v3183 = vunpack.c.l.b16 %v2463
    %v3184 = vunpack.c.h.b16 %v2463
    %v3185 = vunpack.c.l.b16 %v2464
    %v3186 = vunpack.c.h.b16 %v2464
    %v3187 = vunpack.c.l.b16 %v2465
    %v3188 = vunpack.c.h.b16 %v2465
    %v3189 = vunpack.c.l.b16 %v2466
    %v3190 = vunpack.c.l.b16 %v2467
    %v3191 = vunpack.c.h.b16 %v2467
    %v3192 = vunpack.c.l.b16 %v2468
    %v3193 = vunpack.c.h.b16 %v2468
    %v3194 = vunpack.c.l.b16 %v2469
    %v3195 = vunpack.c.h.b16 %v2469
    %v3196 = vunpack.c.l.b16 %v2470
    %v3197 = vunpack.c.l.b16 %v2471
    %v3198 = vunpack.c.h.b16 %v2471
    %v3199 = vunpack.c.l.b16 %v2472
    %v3200 = vunpack.c.h.b16 %v2472
    %v3201 = vunpack.c.l.b16 %v2473
    %v3202 = vunpack.c.h.b16 %v2473
    %v3203 = vunpack.c.l.b16 %v2474
    %v3204 = vunpack.c.l.b16 %v2475
    %v3205 = vunpack.c.h.b16 %v2475
    %v3206 = vunpack.c.l.b16 %v2476
    %v3207 = vunpack.c.h.b16 %v2476
    %v3208 = vunpack.c.l.b16 %v2477
    %v3209 = vunpack.c.h.b16 %v2477
    %v3210 = vunpack.c.l.b16 %v2478
    %v3211 = vunpack.c.l.b16 %v2479
    %v3212 = vunpack.c.h.b16 %v2479
    %v3213 = vunpack.c.l.b16 %v2480
    %v3214 = vunpack.c.h.b16 %v2480
    %v3215 = vunpack.c.l.b16 %v2481
    %v3216 = vunpack.c.h.b16 %v2481
    %v3217 = vunpack.c.l.b16 %v2482
    %v3218 = vunpack.c.l.b16 %v2483
    %v3219 = vunpack.c.h.b16 %v2483
    %v3220 = vunpack.c.l.b16 %v2484
    %v3221 = vunpack.c.h.b16 %v2484
    %v3222 = vunpack.c.l.b16 %v2485
    %v3223 = vunpack.c.h.b16 %v2485
    %v3224 = vunpack.c.l.b16 %v2486
    %v3225 = vunpack.c.l.b16 %v2487
    %v3226 = vunpack.c.h.b16 %v2487
    %v3227 = vunpack.c.l.b16 %v2488
    %v3228 = vunpack.c.h.b16 %v2488
    %v3229 = vunpack.c.l.b16 %v2489
    %v3230 = vunpack.c.h.b16 %v2489
    %v3231 = vunpack.c.l.b16 %v2490
    %v3232 = vpack.c.b16 %v2791, %v2784
    %v3233 = vpack.c.b16 %v2792, %v2785
    %v3234 = vpack.c.b16 %v2793, %v2786
    %v3235 = vpack.c.b16 %v2794, %v2787
    %v3236 = vpack.c.b16 %v2795, %v2788
    %v3237 = vpack.c.b16 %v2796, %v2789
    %v3238 = vpack.c.b16 %v2797, %v2790
    %v3239 = vpack.c.b16 %v2805, %v2798
    %v3240 = vpack.c.b16 %v2806, %v2799
    %v3241 = vpack.c.b16 %v2807, %v2800
    %v3242 = vpack.c.b16 %v2808, %v2801
    %v3243 = vpack.c.b16 %v2809, %v2802
    %v3244 = vpack.c.b16 %v2810, %v2803
    %v3245 = vpack.c.b16 %v2811, %v2804
    %v3246 = vpack.c.b16 %v2819, %v2812
    %v3247 = vpack.c.b16 %v2820, %v2813
    %v3248 = vpack.c.b16 %v2821, %v2814
    %v3249 = vpack.c.b16 %v2822, %v2815
    %v3250 = vpack.c.b16 %v2823, %v2816
    %v3251 = vpack.c.b16 %v2824, %v2817
    %v3252 = vpack.c.b16 %v2825, %v2818
    %v3253 = vpack.c.b16 %v2833, %v2826
    %v3254 = vpack.c.b16 %v2834, %v2827
    %v3255 = vpack.c.b16 %v2835, %v2828
    %v3256 = vpack.c.b16 %v2836, %v2829
    %v3257 = vpack.c.b16 %v2837, %v2830
    %v3258 = vpack.c.b16 %v2838, %v2831
    %v3259 = vpack.c.b16 %v2839, %v2832
    %v3260 = vpack.c.b16 %v2847, %v2840
    %v3261 = vpack.c.b16 %v2848, %v2841
    %v3262 = vpack.c.b16 %v2849, %v2842
    %v3263 = vpack.c.b16 %v2850, %v2843
    %v3264 = vpack.c.b16 %v2851, %v2844
    %v3265 = vpack.c.b16 %v2852, %v2845
    %v3266 = vpack.c.b16 %v2853, %v2846
    %v3267 = vpack.c.b16 %v2861, %v2854
    %v3268 = vpack.c.b16 %v2862, %v2855
    %v3269 = vpack.c.b16 %v2863, %v2856
    %v3270 = vpack.c.b16 %v2864, %v2857
    %v3271 = vpack.c.b16 %v2865, %v2858
    %v3272 = vpack.c.b16 %v2866, %v2859
    %v3273 = vpack.c.b16 %v2867, %v2860
    %v3274 = vpack.c.b16 %v2875, %v2868
    %v3275 = vpack.c.b16 %v2876, %v2869
    %v3276 = vpack.c.b16 %v2877, %v2870
    %v3277 = vpack.c.b16 %v2878, %v2871
    %v3278 = vpack.c.b16 %v2879, %v2872
    %v3279 = vpack.c.b16 %v2880, %v2873
    %v3280 = vpack.c.b16 %v2881, %v2874
    %v3281 = vpack.c.b16 %v2889, %v2882
    %v3282 = vpack.c.b16 %v2890, %v2883
    %v3283 = vpack.c.b16 %v2891, %v2884
    %v3284 = vpack.c.b16 %v2892, %v2885
    %v3285 = vpack.c.b16 %v2893, %v2886
    %v3286 = vpack.c.b16 %v2894, %v2887
    %v3287 = vpack.c.b16 %v2895, %v2888
    %v3288 = vpack.c.b16 %v2903, %v2896
    %v3289 = vpack.c.b16 %v2904, %v2897
    %v3290 = vpack.c.b16 %v2905, %v2898
    %v3291 = vpack.c.b16 %v2906, %v2899
    %v3292 = vpack.c.b16 %v2907, %v2900
    %v3293 = vpack.c.b16 %v2908, %v2901
    %v3294 = vpack.c.b16 %v2909, %v2902
    %v3295 = vpack.c.b16 %v2917, %v2910
    %v3296 = vpack.c.b16 %v2918, %v2911
    %v3297 = vpack.c.b16 %v2919, %v2912
    %v3298 = vpack.c.b16 %v2920, %v2913
    %v3299 = vpack.c.b16 %v2921, %v2914
    %v3300 = vpack.c.b16 %v2922, %v2915
    %v3301 = vpack.c.b16 %v2923, %v2916
    %v3302 = vpack.c.b16 %v2931, %v2924
    %v3303 = vpack.c.b16 %v2932, %v2925
    %v3304 = vpack.c.b16 %v2933, %v2926
    %v3305 = vpack.c.b16 %v2934, %v2927
    %v3306 = vpack.c.b16 %v2935, %v2928
    %v3307 = vpack.c.b16 %v2936, %v2929
    %v3308 = vpack.c.b16 %v2937, %v2930
    %v3309 = vpack.c.b16 %v2945, %v2938
    %v3310 = vpack.c.b16 %v2946, %v2939
    %v3311 = vpack.c.b16 %v2947, %v2940
    %v3312 = vpack.c.b16 %v2948, %v2941
    %v3313 = vpack.c.b16 %v2949, %v2942
    %v3314 = vpack.c.b16 %v2950, %v2943
    %v3315 = vpack.c.b16 %v2951, %v2944
    %v3316 = vpack.c.b16 %v2959, %v2952
    %v3317 = vpack.c.b16 %v2960, %v2953
    %v3318 = vpack.c.b16 %v2961, %v2954
    %v3319 = vpack.c.b16 %v2962, %v2955
    %v3320 = vpack.c.b16 %v2963, %v2956
    %v3321 = vpack.c.b16 %v2964, %v2957
    %v3322 = vpack.c.b16 %v2965, %v2958
    %v3323 = vpack.c.b16 %v2973, %v2966
    %v3324 = vpack.c.b16 %v2974, %v2967
    %v3325 = vpack.c.b16 %v2975, %v2968
    %v3326 = vpack.c.b16 %v2976, %v2969
    %v3327 = vpack.c.b16 %v2977, %v2970
    %v3328 = vpack.c.b16 %v2978, %v2971
    %v3329 = vpack.c.b16 %v2979, %v2972
    %v3330 = vpack.c.b16 %v2987, %v2980
    %v3331 = vpack.c.b16 %v2988, %v2981
    %v3332 = vpack.c.b16 %v2989, %v2982
    %v3333 = vpack.c.b16 %v2990, %v2983
    %v3334 = vpack.c.b16 %v2991, %v2984
    %v3335 = vpack.c.b16 %v2992, %v2985
    %v3336 = vpack.c.b16 %v2993, %v2986
    %v3337 = vpack.c.b16 %v3001, %v2994
    %v3338 = vpack.c.b16 %v3002, %v2995
    %v3339 = vpack.c.b16 %v3003, %v2996
    %v3340 = vpack.c.b16 %v3004, %v2997
    %v3341 = vpack.c.b16 %v3005, %v2998
    %v3342 = vpack.c.b16 %v3006, %v2999
    %v3343 = vpack.c.b16 %v3007, %v3000
    %v3344 = vpack.c.b16 %v3015, %v3008
    %v3345 = vpack.c.b16 %v3016, %v3009
    %v3346 = vpack.c.b16 %v3017, %v3010
    %v3347 = vpack.c.b16 %v3018, %v3011
    %v3348 = vpack.c.b16 %v3019, %v3012
    %v3349 = vpack.c.b16 %v3020, %v3013
    %v3350 = vpack.c.b16 %v3021, %v3014
    %v3351 = vpack.c.b16 %v3029, %v3022
    %v3352 = vpack.c.b16 %v3030, %v3023
    %v3353 = vpack.c.b16 %v3031, %v3024
    %v3354 = vpack.c.b16 %v3032, %v3025
    %v3355 = vpack.c.b16 %v3033, %v3026
    %v3356 = vpack.c.b16 %v3034, %v3027
    %v3357 = vpack.c.b16 %v3035, %v3028
    %v3358 = vpack.c.b16 %v3043, %v3036
    %v3359 = vpack.c.b16 %v3044, %v3037
    %v3360 = vpack.c.b16 %v3045, %v3038
    %v3361 = vpack.c.b16 %v3046, %v3039
    %v3362 = vpack.c.b16 %v3047, %v3040
    %v3363 = vpack.c.b16 %v3048, %v3041
    %v3364 = vpack.c.b16 %v3049, %v3042
    %v3365 = vpack.c.b16 %v3057, %v3050
    %v3366 = vpack.c.b16 %v3058, %v3051
    %v3367 = vpack.c.b16 %v3059, %v3052
    %v3368 = vpack.c.b16 %v3060, %v3053
    %v3369 = vpack.c.b16 %v3061, %v3054
    %v3370 = vpack.c.b16 %v3062, %v3055
    %v3371 = vpack.c.b16 %v3063, %v3056
    %v3372 = vpack.c.b16 %v3071, %v3064
    %v3373 = vpack.c.b16 %v3072, %v3065
    %v3374 = vpack.c.b16 %v3073, %v3066
    %v3375 = vpack.c.b16 %v3074, %v3067
    %v3376 = vpack.c.b16 %v3075, %v3068
    %v3377 = vpack.c.b16 %v3076, %v3069
    %v3378 = vpack.c.b16 %v3077, %v3070
    %v3379 = vpack.c.b16 %v3085, %v3078
    %v3380 = vpack.c.b16 %v3086, %v3079
    %v3381 = vpack.c.b16 %v3087, %v3080
    %v3382 = vpack.c.b16 %v3088, %v3081
    %v3383 = vpack.c.b16 %v3089, %v3082
    %v3384 = vpack.c.b16 %v3090, %v3083
    %v3385 = vpack.c.b16 %v3091, %v3084
    %v3386 = vpack.c.b16 %v3099, %v3092
    %v3387 = vpack.c.b16 %v3100, %v3093
    %v3388 = vpack.c.b16 %v3101, %v3094
    %v3389 = vpack.c.b16 %v3102, %v3095
    %v3390 = vpack.c.b16 %v3103, %v3096
    %v3391 = vpack.c.b16 %v3104, %v3097
    %v3392 = vpack.c.b16 %v3105, %v3098
    %v3393 = vpack.c.b16 %v3113, %v3106
    %v3394 = vpack.c.b16 %v3114, %v3107
    %v3395 = vpack.c.b16 %v3115, %v3108
    %v3396 = vpack.c.b16 %v3116, %v3109
    %v3397 = vpack.c.b16 %v3117, %v3110
    %v3398 = vpack.c.b16 %v3118, %v3111
    %v3399 = vpack.c.b16 %v3119, %v3112
    %v3400 = vpack.c.b16 %v3127, %v3120
    %v3401 = vpack.c.b16 %v3128, %v3121
    %v3402 = vpack.c.b16 %v3129, %v3122
    %v3403 = vpack.c.b16 %v3130, %v3123
    %v3404 = vpack.c.b16 %v3131, %v3124
    %v3405 = vpack.c.b16 %v3132, %v3125
    %v3406 = vpack.c.b16 %v3133, %v3126
    %v3407 = vpack.c.b16 %v3141, %v3134
    %v3408 = vpack.c.b16 %v3142, %v3135
    %v3409 = vpack.c.b16 %v3143, %v3136
    %v3410 = vpack.c.b16 %v3144, %v3137
    %v3411 = vpack.c.b16 %v3145, %v3138
    %v3412 = vpack.c.b16 %v3146, %v3139
    %v3413 = vpack.c.b16 %v3147, %v3140
    %v3414 = vpack.c.b16 %v3155, %v3148
    %v3415 = vpack.c.b16 %v3156, %v3149
    %v3416 = vpack.c.b16 %v3157, %v3150
    %v3417 = vpack.c.b16 %v3158, %v3151
    %v3418 = vpack.c.b16 %v3159, %v3152
    %v3419 = vpack.c.b16 %v3160, %v3153
    %v3420 = vpack.c.b16 %v3161, %v3154
    %v3421 = vpack.c.b16 %v3169, %v3162
    %v3422 = vpack.c.b16 %v3170, %v3163
    %v3423 = vpack.c.b16 %v3171, %v3164
    %v3424 = vpack.c.b16 %v3172, %v3165
    %v3425 = vpack.c.b16 %v3173, %v3166
    %v3426 = vpack.c.b16 %v3174, %v3167
    %v3427 = vpack.c.b16 %v3175, %v3168
    %v3428 = vpack.c.b16 %v3183, %v3176
    %v3429 = vpack.c.b16 %v3184, %v3177
    %v3430 = vpack.c.b16 %v3185, %v3178
    %v3431 = vpack.c.b16 %v3186, %v3179
    %v3432 = vpack.c.b16 %v3187, %v3180
    %v3433 = vpack.c.b16 %v3188, %v3181
    %v3434 = vpack.c.b16 %v3189, %v3182
    %v3435 = vpack.c.b16 %v3197, %v3190
    %v3436 = vpack.c.b16 %v3198, %v3191
    %v3437 = vpack.c.b16 %v3199, %v3192
    %v3438 = vpack.c.b16 %v3200, %v3193
    %v3439 = vpack.c.b16 %v3201, %v3194
    %v3440 = vpack.c.b16 %v3202, %v3195
    %v3441 = vpack.c.b16 %v3203, %v3196
    %v3442 = vpack.c.b16 %v3211, %v3204
    %v3443 = vpack.c.b16 %v3212, %v3205
    %v3444 = vpack.c.b16 %v3213, %v3206
    %v3445 = vpack.c.b16 %v3214, %v3207
    %v3446 = vpack.c.b16 %v3215, %v3208
    %v3447 = vpack.c.b16 %v3216, %v3209
    %v3448 = vpack.c.b16 %v3217, %v3210
    %v3449 = vpack.c.b16 %v3225, %v3218
    %v3450 = vpack.c.b16 %v3226, %v3219
    %v3451 = vpack.c.b16 %v3227, %v3220
    %v3452 = vpack.c.b16 %v3228, %v3221
    %v3453 = vpack.c.b16 %v3229, %v3222
    %v3454 = vpack.c.b16 %v3230, %v3223
    %v3455 = vpack.c.b16 %v3231, %v3224
    %3680 = vmatprep.subr.bf16.mxu0 %v3233
    %3681 = vmatpush1.bf16.msra.mxu0 %v3232
    %3682 = vmatprep.subr.bf16.mxu0 %v3240
    %3683 = vmatpush1.bf16.msra.mxu0 %v3239
    %3684 = vmatprep.subr.bf16.mxu0 %v3247
    %3685 = vmatpush1.bf16.msra.mxu0 %v3246
    %3686 = vmatprep.subr.bf16.mxu0 %v3254
    %3687 = vmatpush1.bf16.msra.mxu0 %v3253
    %3688 = vmatprep.subr.bf16.mxu0 %v3261
    %3689 = vmatpush1.bf16.msra.mxu0 %v3260
    %3690 = vmatprep.subr.bf16.mxu0 %v3268
    %3691 = vmatpush1.bf16.msra.mxu0 %v3267
    %3692 = vmatprep.subr.bf16.mxu0 %v3275
    %3693 = vmatpush1.bf16.msra.mxu0 %v3274
    %3694 = vmatprep.subr.bf16.mxu0 %v3282
    %3695 = vmatpush1.bf16.msra.mxu0 %v3281
    %3696 = vmatprep.subr.bf16.mxu0 %v3289
    %3697 = vmatpush1.bf16.msra.mxu0 %v3288
    %3698 = vmatprep.subr.bf16.mxu0 %v3296
    %3699 = vmatpush1.bf16.msra.mxu0 %v3295
    %3700 = vmatprep.subr.bf16.mxu0 %v3303
    %3701 = vmatpush1.bf16.msra.mxu0 %v3302
    %3702 = vmatprep.subr.bf16.mxu0 %v3310
    %3703 = vmatpush1.bf16.msra.mxu0 %v3309
    %3704 = vmatprep.subr.bf16.mxu0 %v3317
    %3705 = vmatpush1.bf16.msra.mxu0 %v3316
    %3706 = vmatprep.subr.bf16.mxu0 %v3324
    %3707 = vmatpush1.bf16.msra.mxu0 %v3323
    %3708 = vmatprep.subr.bf16.mxu0 %v3331
    %3709 = vmatpush1.bf16.msra.mxu0 %v3330
    %3710 = vmatprep.subr.bf16.mxu0 %v3338
    %3711 = vmatpush1.bf16.msra.mxu0 %v3337
    %3712 = vmatprep.mubr.bf16.mxu0 %v2232
    %3713 = vmatmul.mubr.bf16.gmra.mrb[0].mxu0 %v2231
    %v3714 = vpop.f32.mrb[0].mxu0
    %v3715 = vadd.f32 %v2496, %v3714
    %v3716 = vpop.f32.mrb[0].mxu0
    %v3717 = vadd.f32 %v2500, %v3716
    %v3718 = vpop.f32.mrb[0].mxu0
    %v3719 = vpop.f32.mrb[0].mxu0
    %3720 = vdwg.mxu0
    %3721 = vmatprep.subr.bf16.mxu0 %v3345
    %3722 = vmatpush1.bf16.msra.mxu0 %v3344
    %3723 = vmatprep.subr.bf16.mxu0 %v3352
    %3724 = vmatpush1.bf16.msra.mxu0 %v3351
    %3725 = vmatprep.subr.bf16.mxu0 %v3359
    %3726 = vmatpush1.bf16.msra.mxu0 %v3358
    %3727 = vmatprep.subr.bf16.mxu0 %v3366
    %3728 = vmatpush1.bf16.msra.mxu0 %v3365
    %3729 = vmatprep.subr.bf16.mxu0 %v3373
    %3730 = vmatpush1.bf16.msra.mxu0 %v3372
    %3731 = vmatprep.subr.bf16.mxu0 %v3380
    %3732 = vmatpush1.bf16.msra.mxu0 %v3379
    %3733 = vmatprep.subr.bf16.mxu0 %v3387
    %3734 = vmatpush1.bf16.msra.mxu0 %v3386
    %3735 = vmatprep.subr.bf16.mxu0 %v3394
    %3736 = vmatpush1.bf16.msra.mxu0 %v3393
    %3737 = vmatprep.subr.bf16.mxu0 %v3401
    %3738 = vmatpush1.bf16.msra.mxu0 %v3400
    %3739 = vmatprep.subr.bf16.mxu0 %v3408
    %3740 = vmatpush1.bf16.msra.mxu0 %v3407
    %3741 = vmatprep.subr.bf16.mxu0 %v3415
    %3742 = vmatpush1.bf16.msra.mxu0 %v3414
    %3743 = vmatprep.subr.bf16.mxu0 %v3422
    %3744 = vmatpush1.bf16.msra.mxu0 %v3421
    %3745 = vmatprep.subr.bf16.mxu0 %v3429
    %3746 = vmatpush1.bf16.msra.mxu0 %v3428
    %3747 = vmatprep.subr.bf16.mxu0 %v3436
    %3748 = vmatpush1.bf16.msra.mxu0 %v3435
    %3749 = vmatprep.subr.bf16.mxu0 %v3443
    %3750 = vmatpush1.bf16.msra.mxu0 %v3442
    %3751 = vmatprep.subr.bf16.mxu0 %v3450
    %3752 = vmatpush1.bf16.msra.mxu0 %v3449
    %3753 = vmatprep.mubr.bf16.mxu0 %v2234
    %3754 = vmatmul.mubr.bf16.gmra.mrb[0].mxu0 %v2233
    %v3755 = vpop.f32.mrb[0].mxu0
    %v3756 = vadd.f32 %v3715, %v3755
    %v3757 = vpop.f32.mrb[0].mxu0
    %v3758 = vadd.f32 %v3717, %v3757
    %v3759 = vpop.f32.mrb[0].mxu0
    %v3760 = vpop.f32.mrb[0].mxu0
    %3761 = vdwg.mxu0
    %3762 = vmatprep.subr.bf16.mxu0 %v3235
    %3763 = vmatpush1.bf16.msra.mxu0 %v3234
    %3764 = vmatprep.subr.bf16.mxu0 %v3242
    %3765 = vmatpush1.bf16.msra.mxu0 %v3241
    %3766 = vmatprep.subr.bf16.mxu0 %v3249
    %3767 = vmatpush1.bf16.msra.mxu0 %v3248
    %3768 = vmatprep.subr.bf16.mxu0 %v3256
    %3769 = vmatpush1.bf16.msra.mxu0 %v3255
    %3770 = vmatprep.subr.bf16.mxu0 %v3263
    %3771 = vmatpush1.bf16.msra.mxu0 %v3262
    %3772 = vmatprep.subr.bf16.mxu0 %v3270
    %3773 = vmatpush1.bf16.msra.mxu0 %v3269
    %3774 = vmatprep.subr.bf16.mxu0 %v3277
    %3775 = vmatpush1.bf16.msra.mxu0 %v3276
    %3776 = vmatprep.subr.bf16.mxu0 %v3284
    %3777 = vmatpush1.bf16.msra.mxu0 %v3283
    %3778 = vmatprep.subr.bf16.mxu0 %v3291
    %3779 = vmatpush1.bf16.msra.mxu0 %v3290
    %3780 = vmatprep.subr.bf16.mxu0 %v3298
    %3781 = vmatpush1.bf16.msra.mxu0 %v3297
    %3782 = vmatprep.subr.bf16.mxu0 %v3305
    %3783 = vmatpush1.bf16.msra.mxu0 %v3304
    %3784 = vmatprep.subr.bf16.mxu0 %v3312
    %3785 = vmatpush1.bf16.msra.mxu0 %v3311
    %3786 = vmatprep.subr.bf16.mxu0 %v3319
    %3787 = vmatpush1.bf16.msra.mxu0 %v3318
    %3788 = vmatprep.subr.bf16.mxu0 %v3326
    %3789 = vmatpush1.bf16.msra.mxu0 %v3325
    %3790 = vmatprep.subr.bf16.mxu0 %v3333
    %3791 = vmatpush1.bf16.msra.mxu0 %v3332
    %3792 = vmatprep.subr.bf16.mxu0 %v3340
    %3793 = vmatpush1.bf16.msra.mxu0 %v3339
    %3794 = vmatprep.mubr.bf16.mxu0 %v2232
    %3795 = vmatmul.mubr.bf16.gmra.mrb[0].mxu0 %v2231
    %v3796 = vpop.f32.mrb[0].mxu0
    %v3797 = vadd.f32 %v2504, %v3796
    %v3798 = vpop.f32.mrb[0].mxu0
    %v3799 = vadd.f32 %v2508, %v3798
    %v3800 = vpop.f32.mrb[0].mxu0
    %v3801 = vpop.f32.mrb[0].mxu0
    %3802 = vdwg.mxu0
    %3803 = vmatprep.subr.bf16.mxu0 %v3347
    %3804 = vmatpush1.bf16.msra.mxu0 %v3346
    %3805 = vmatprep.subr.bf16.mxu0 %v3354
    %3806 = vmatpush1.bf16.msra.mxu0 %v3353
    %3807 = vmatprep.subr.bf16.mxu0 %v3361
    %3808 = vmatpush1.bf16.msra.mxu0 %v3360
    %3809 = vmatprep.subr.bf16.mxu0 %v3368
    %3810 = vmatpush1.bf16.msra.mxu0 %v3367
    %3811 = vmatprep.subr.bf16.mxu0 %v3375
    %3812 = vmatpush1.bf16.msra.mxu0 %v3374
    %3813 = vmatprep.subr.bf16.mxu0 %v3382
    %3814 = vmatpush1.bf16.msra.mxu0 %v3381
    %3815 = vmatprep.subr.bf16.mxu0 %v3389
    %3816 = vmatpush1.bf16.msra.mxu0 %v3388
    %3817 = vmatprep.subr.bf16.mxu0 %v3396
    %3818 = vmatpush1.bf16.msra.mxu0 %v3395
    %3819 = vmatprep.subr.bf16.mxu0 %v3403
    %3820 = vmatpush1.bf16.msra.mxu0 %v3402
    %3821 = vmatprep.subr.bf16.mxu0 %v3410
    %3822 = vmatpush1.bf16.msra.mxu0 %v3409
    %3823 = vmatprep.subr.bf16.mxu0 %v3417
    %3824 = vmatpush1.bf16.msra.mxu0 %v3416
    %3825 = vmatprep.subr.bf16.mxu0 %v3424
    %3826 = vmatpush1.bf16.msra.mxu0 %v3423
    %3827 = vmatprep.subr.bf16.mxu0 %v3431
    %3828 = vmatpush1.bf16.msra.mxu0 %v3430
    %3829 = vmatprep.subr.bf16.mxu0 %v3438
    %3830 = vmatpush1.bf16.msra.mxu0 %v3437
    %3831 = vmatprep.subr.bf16.mxu0 %v3445
    %3832 = vmatpush1.bf16.msra.mxu0 %v3444
    %3833 = vmatprep.subr.bf16.mxu0 %v3452
    %3834 = vmatpush1.bf16.msra.mxu0 %v3451
    %3835 = vmatprep.mubr.bf16.mxu0 %v2234
    %3836 = vmatmul.mubr.bf16.gmra.mrb[0].mxu0 %v2233
    %v3837 = vpop.f32.mrb[0].mxu0
    %v3838 = vadd.f32 %v3797, %v3837
    %v3839 = vpop.f32.mrb[0].mxu0
    %v3840 = vadd.f32 %v3799, %v3839
    %v3841 = vpop.f32.mrb[0].mxu0
    %v3842 = vpop.f32.mrb[0].mxu0
    %3843 = vdwg.mxu0
    %3844 = vmatprep.subr.bf16.mxu0 %v3237
    %3845 = vmatpush1.bf16.msra.mxu0 %v3236
    %3846 = vmatprep.subr.bf16.mxu0 %v3244
    %3847 = vmatpush1.bf16.msra.mxu0 %v3243
    %3848 = vmatprep.subr.bf16.mxu0 %v3251
    %3849 = vmatpush1.bf16.msra.mxu0 %v3250
    %3850 = vmatprep.subr.bf16.mxu0 %v3258
    %3851 = vmatpush1.bf16.msra.mxu0 %v3257
    %3852 = vmatprep.subr.bf16.mxu0 %v3265
    %3853 = vmatpush1.bf16.msra.mxu0 %v3264
    %3854 = vmatprep.subr.bf16.mxu0 %v3272
    %3855 = vmatpush1.bf16.msra.mxu0 %v3271
    %3856 = vmatprep.subr.bf16.mxu0 %v3279
    %3857 = vmatpush1.bf16.msra.mxu0 %v3278
    %3858 = vmatprep.subr.bf16.mxu0 %v3286
    %3859 = vmatpush1.bf16.msra.mxu0 %v3285
    %3860 = vmatprep.subr.bf16.mxu0 %v3293
    %3861 = vmatpush1.bf16.msra.mxu0 %v3292
    %3862 = vmatprep.subr.bf16.mxu0 %v3300
    %3863 = vmatpush1.bf16.msra.mxu0 %v3299
    %3864 = vmatprep.subr.bf16.mxu0 %v3307
    %3865 = vmatpush1.bf16.msra.mxu0 %v3306
    %3866 = vmatprep.subr.bf16.mxu0 %v3314
    %3867 = vmatpush1.bf16.msra.mxu0 %v3313
    %3868 = vmatprep.subr.bf16.mxu0 %v3321
    %3869 = vmatpush1.bf16.msra.mxu0 %v3320
    %3870 = vmatprep.subr.bf16.mxu0 %v3328
    %3871 = vmatpush1.bf16.msra.mxu0 %v3327
    %3872 = vmatprep.subr.bf16.mxu0 %v3335
    %3873 = vmatpush1.bf16.msra.mxu0 %v3334
    %3874 = vmatprep.subr.bf16.mxu0 %v3342
    %3875 = vmatpush1.bf16.msra.mxu0 %v3341
    %3876 = vmatprep.mubr.bf16.mxu0 %v2232
    %3877 = vmatmul.mubr.bf16.gmra.mrb[0].mxu0 %v2231
    %v3878 = vpop.f32.mrb[0].mxu0
    %v3879 = vadd.f32 %v2512, %v3878
    %v3880 = vpop.f32.mrb[0].mxu0
    %v3881 = vadd.f32 %v2516, %v3880
    %v3882 = vpop.f32.mrb[0].mxu0
    %v3883 = vpop.f32.mrb[0].mxu0
    %3884 = vdwg.mxu0
    %3885 = vmatprep.subr.bf16.mxu0 %v3349
    %3886 = vmatpush1.bf16.msra.mxu0 %v3348
    %3887 = vmatprep.subr.bf16.mxu0 %v3356
    %3888 = vmatpush1.bf16.msra.mxu0 %v3355
    %3889 = vmatprep.subr.bf16.mxu0 %v3363
    %3890 = vmatpush1.bf16.msra.mxu0 %v3362
    %3891 = vmatprep.subr.bf16.mxu0 %v3370
    %3892 = vmatpush1.bf16.msra.mxu0 %v3369
    %3893 = vmatprep.subr.bf16.mxu0 %v3377
    %3894 = vmatpush1.bf16.msra.mxu0 %v3376
    %3895 = vmatprep.subr.bf16.mxu0 %v3384
    %3896 = vmatpush1.bf16.msra.mxu0 %v3383
    %3897 = vmatprep.subr.bf16.mxu0 %v3391
    %3898 = vmatpush1.bf16.msra.mxu0 %v3390
    %3899 = vmatprep.subr.bf16.mxu0 %v3398
    %3900 = vmatpush1.bf16.msra.mxu0 %v3397
    %3901 = vmatprep.subr.bf16.mxu0 %v3405
    %3902 = vmatpush1.bf16.msra.mxu0 %v3404
    %3903 = vmatprep.subr.bf16.mxu0 %v3412
    %3904 = vmatpush1.bf16.msra.mxu0 %v3411
    %3905 = vmatprep.subr.bf16.mxu0 %v3419
    %3906 = vmatpush1.bf16.msra.mxu0 %v3418
    %3907 = vmatprep.subr.bf16.mxu0 %v3426
    %3908 = vmatpush1.bf16.msra.mxu0 %v3425
    %3909 = vmatprep.subr.bf16.mxu0 %v3433
    %3910 = vmatpush1.bf16.msra.mxu0 %v3432
    %3911 = vmatprep.subr.bf16.mxu0 %v3440
    %3912 = vmatpush1.bf16.msra.mxu0 %v3439
    %3913 = vmatprep.subr.bf16.mxu0 %v3447
    %3914 = vmatpush1.bf16.msra.mxu0 %v3446
    %3915 = vmatprep.subr.bf16.mxu0 %v3454
    %3916 = vmatpush1.bf16.msra.mxu0 %v3453
    %3917 = vmatprep.mubr.bf16.mxu0 %v2234
    %3918 = vmatmul.mubr.bf16.gmra.mrb[0].mxu0 %v2233
    %v3919 = vpop.f32.mrb[0].mxu0
    %v3920 = vadd.f32 %v3879, %v3919
    %v3921 = vpop.f32.mrb[0].mxu0
    %v3922 = vadd.f32 %v3881, %v3921
    %v3923 = vpop.f32.mrb[0].mxu0
    %v3924 = vpop.f32.mrb[0].mxu0
    %3925 = vdwg.mxu0
    %3926 = vmatprep.subr.bf16.mxu0 0
    %3927 = vmatpush1.bf16.msra.mxu0 %v3238
    %3928 = vmatprep.subr.bf16.mxu0 0
    %3929 = vmatpush1.bf16.msra.mxu0 %v3245
    %3930 = vmatprep.subr.bf16.mxu0 0
    %3931 = vmatpush1.bf16.msra.mxu0 %v3252
    %3932 = vmatprep.subr.bf16.mxu0 0
    %3933 = vmatpush1.bf16.msra.mxu0 %v3259
    %3934 = vmatprep.subr.bf16.mxu0 0
    %3935 = vmatpush1.bf16.msra.mxu0 %v3266
    %3936 = vmatprep.subr.bf16.mxu0 0
    %3937 = vmatpush1.bf16.msra.mxu0 %v3273
    %3938 = vmatprep.subr.bf16.mxu0 0
    %3939 = vmatpush1.bf16.msra.mxu0 %v3280
    %3940 = vmatprep.subr.bf16.mxu0 0
    %3941 = vmatpush1.bf16.msra.mxu0 %v3287
    %3942 = vmatprep.subr.bf16.mxu0 0
    %3943 = vmatpush1.bf16.msra.mxu0 %v3294
    %3944 = vmatprep.subr.bf16.mxu0 0
    %3945 = vmatpush1.bf16.msra.mxu0 %v3301
    %3946 = vmatprep.subr.bf16.mxu0 0
    %3947 = vmatpush1.bf16.msra.mxu0 %v3308
    %3948 = vmatprep.subr.bf16.mxu0 0
    %3949 = vmatpush1.bf16.msra.mxu0 %v3315
    %3950 = vmatprep.subr.bf16.mxu0 0
    %3951 = vmatpush1.bf16.msra.mxu0 %v3322
    %3952 = vmatprep.subr.bf16.mxu0 0
    %3953 = vmatpush1.bf16.msra.mxu0 %v3329
    %3954 = vmatprep.subr.bf16.mxu0 0
    %3955 = vmatpush1.bf16.msra.mxu0 %v3336
    %3956 = vmatprep.subr.bf16.mxu0 0
    %3957 = vmatpush1.bf16.msra.mxu0 %v3343
    %3958 = vmatprep.mubr.bf16.mxu0 %v2232
    %3959 = vmatmul.mubr.bf16.gmra.mrb[0].mxu0 %v2231
    %v3960 = vpop.f32.mrb[0].mxu0
    %v3961 = vadd.f32 %v2520, %v3960
    %v3962 = vpop.f32.mrb[0].mxu0
    %v3963 = vpop.f32.mrb[0].mxu0
    %v3964 = vpop.f32.mrb[0].mxu0
    %3965 = vdwg.mxu0
    %3966 = vmatprep.subr.bf16.mxu0 0
    %3967 = vmatpush1.bf16.msra.mxu0 %v3350
    %3968 = vmatprep.subr.bf16.mxu0 0
    %3969 = vmatpush1.bf16.msra.mxu0 %v3357
    %3970 = vmatprep.subr.bf16.mxu0 0
    %3971 = vmatpush1.bf16.msra.mxu0 %v3364
    %3972 = vmatprep.subr.bf16.mxu0 0
    %3973 = vmatpush1.bf16.msra.mxu0 %v3371
    %3974 = vmatprep.subr.bf16.mxu0 0
    %3975 = vmatpush1.bf16.msra.mxu0 %v3378
    %3976 = vmatprep.subr.bf16.mxu0 0
    %3977 = vmatpush1.bf16.msra.mxu0 %v3385
    %3978 = vmatprep.subr.bf16.mxu0 0
    %3979 = vmatpush1.bf16.msra.mxu0 %v3392
    %3980 = vmatprep.subr.bf16.mxu0 0
    %3981 = vmatpush1.bf16.msra.mxu0 %v3399
    %3982 = vmatprep.subr.bf16.mxu0 0
    %3983 = vmatpush1.bf16.msra.mxu0 %v3406
    %3984 = vmatprep.subr.bf16.mxu0 0
    %3985 = vmatpush1.bf16.msra.mxu0 %v3413
    %3986 = vmatprep.subr.bf16.mxu0 0
    %3987 = vmatpush1.bf16.msra.mxu0 %v3420
    %3988 = vmatprep.subr.bf16.mxu0 0
    %3989 = vmatpush1.bf16.msra.mxu0 %v3427
    %3990 = vmatprep.subr.bf16.mxu0 0
    %3991 = vmatpush1.bf16.msra.mxu0 %v3434
    %3992 = vmatprep.subr.bf16.mxu0 0
    %3993 = vmatpush1.bf16.msra.mxu0 %v3441
    %3994 = vmatprep.subr.bf16.mxu0 0
    %3995 = vmatpush1.bf16.msra.mxu0 %v3448
    %3996 = vmatprep.subr.bf16.mxu0 0
    %3997 = vmatpush1.bf16.msra.mxu0 %v3455
    %3998 = vmatprep.mubr.bf16.mxu0 %v2234
    %3999 = vmatmul.mubr.bf16.gmra.mrb[0].mxu0 %v2233
    %v4000 = vpop.f32.mrb[0].mxu0
    %v4001 = vadd.f32 %v3961, %v4000
    %v4002 = vpop.f32.mrb[0].mxu0
    %v4003 = vpop.f32.mrb[0].mxu0
    %v4004 = vpop.f32.mrb[0].mxu0
    %4005 = vdwg.mxu0
    %v4006 = vxor.u32 %v3756, 2147483648
    %v4007 = vxor.u32 %v3758, 2147483648
    %v4008 = vxor.u32 %v3838, 2147483648
    %v4009 = vxor.u32 %v3840, 2147483648
    %v4010 = vxor.u32 %v3920, 2147483648
    %v4011 = vxor.u32 %v3922, 2147483648
    %v4012 = vxor.u32 %v4001, 2147483648
    %v4013 = vmul.f32 %v4006, 1.442695
    %v4014 = vpow.pop %v4013
    %v4015 = vmul.f32 %v4007, 1.442695
    %v4016 = vpow.pop %v4015
    %v4017 = vmul.f32 %v4008, 1.442695
    %v4018 = vpow.pop %v4017
    %v4019 = vmul.f32 %v4009, 1.442695
    %v4020 = vpow.pop %v4019
    %v4021 = vmul.f32 %v4010, 1.442695
    %v4022 = vpow.pop %v4021
    %v4023 = vmul.f32 %v4011, 1.442695
    %v4024 = vpow.pop %v4023
    %v4025 = vmul.f32 %v4012, 1.442695
    %v4026 = vpow.pop %v4025
    %v4027 = vadd.f32 %v4014, 1.0
    %v4028 = vadd.f32 %v4016, 1.0
    %v4029 = vadd.f32 %v4018, 1.0
    %v4030 = vadd.f32 %v4020, 1.0
    %v4031 = vadd.f32 %v4022, 1.0
    %v4032 = vadd.f32 %v4024, 1.0
    %v4033 = vadd.f32 %v4026, 1.0
    %v4034 = vrcp.pop %v4027
    %v4035 = vmul.f32 1.0, %v4034
    %v4036 = vrcp.pop %v4028
    %v4037 = vmul.f32 1.0, %v4036
    %v4038 = vrcp.pop %v4029
    %v4039 = vmul.f32 1.0, %v4038
    %v4040 = vrcp.pop %v4030
    %v4041 = vmul.f32 1.0, %v4040
    %v4042 = vrcp.pop %v4031
    %v4043 = vmul.f32 1.0, %v4042
    %v4044 = vrcp.pop %v4032
    %v4045 = vmul.f32 1.0, %v4044
    %v4046 = vrcp.pop %v4033
    %v4047 = vmul.f32 1.0, %v4046
    %4048 = vst [vmem:[%s10] sm:$0xff] %v4035
    %4049 = vst [vmem:[%s10 + $0x8] sm:$0xff] %v4037
    %4050 = vst [vmem:[%s10 + $0x10] sm:$0xff] %v4039
    %4051 = vst [vmem:[%s10 + $0x18] sm:$0xff] %v4041
    %4052 = vst [vmem:[%s10 + $0x20] sm:$0xff] %v4043
    %4053 = vst [vmem:[%s10 + $0x28] sm:$0xff] %v4045
    %4054 = vst [vmem:[%s10 + $0x30] sm:$0xff] %v4047
    %4055 = vst [vmem:[%s11] sm:$0xff] %v2120
    %4056 = vrot.lane.b32.xlu0 %v2134, 4
    %v4057 = vpop.permute.xlu0 %4056
    %vm4059 = vcmask 48160
    %4060 = vst.msk [vmem:[%s11] sm:$0xff] %vm4059, %v4057
    // Predicated region
    $region50: #{vae_forward.1} parent=1 // pred_check
      _
    $region51: #{vae_forward.1} parent=1 // pred_check_branch
      %4062 = sbr.rel (0) target = $region53
    $region52: #{vae_forward.1} parent=1 // pred_region
      _
    $region53: #{vae_forward.1} parent=1 // pred_fallthru
      _
    // Predicated region
    $region54: #{vae_forward.1} parent=1 // pred_check
      _
    $region55: #{vae_forward.1} parent=1 // pred_check_branch
      %4064 = sbr.rel (0) target = $region57
    $region56: #{vae_forward.1} parent=1 // pred_region
      _
    $region57: #{vae_forward.1} parent=1 // pred_fallthru
      _
    // Predicated region
    $region58: #{vae_forward.1} parent=1 // pred_check
      _
    $region59: #{vae_forward.1} parent=1 // pred_check_branch
      %4066 = sbr.rel (0) target = $region61
    $region60: #{vae_forward.1} parent=1 // pred_region
      _
    $region61: #{vae_forward.1} parent=1 // pred_fallthru
      _
    // Predicated region
    $region62: #{vae_forward.1} parent=1 // pred_check
      _
    $region63: #{vae_forward.1} parent=1 // pred_check_branch
      %4068 = sbr.rel (0) target = $region65
    $region64: #{vae_forward.1} parent=1 // pred_region
      _
    $region65: #{vae_forward.1} parent=1 // pred_fallthru
      _
    %4069 = vsyncpa [#allocation3], 1
    %4070 = vsyncpa [#allocation5], 1

</llo_original>
